<compile_context>
chip_gen: v7x
topology: tpu7x:2x2x1
jax: 0.10.0
libtpu: 0.0.40
codegen_flags: <defaults>
</compile_context>

<pallas_src>
import functools

import jax
import jax.numpy as jnp
from jax.experimental import pallas as pl
from jax.experimental.pallas import tpu as pltpu

CONV_SHAPE_TABLE = {32 * i: 256 * i ** 2 for i in range(1, 5)}

ACT_NONE, ACT_LRELU, ACT_SIGMOID = 0, 1, 2
BN_EPS = 1e-5

# Decoder architecture constants (fixed by the PyTorch module): 4 ConvTranspose2d
# layers, all stride=2 / kernel=3; paddings and fused activations below.
DEC_PADS = (0, 1, 1, 1)
DEC_ACTS = (ACT_LRELU, ACT_LRELU, ACT_LRELU, ACT_SIGMOID)
DEC_IN_HW = 8          # Reshape(-1, no_channels, 8, 8)


# --------------------------------------------------------------------------- kernels

def _gemm_affine_act_kernel(x_ref, w_ref, s_ref, b_ref, o_ref, *, act):
    """One (tm, K) x (K, N) GEMM block with fused affine + activation epilogue."""
    y = jnp.dot(x_ref[...], w_ref[...], preferred_element_type=jnp.float32)
    y = y * s_ref[...] + b_ref[...]
    if act == ACT_LRELU:
        y = jnp.where(y > 0, y, 0.1 * y)
    elif act == ACT_SIGMOID:
        # numerically stable sigmoid; exp lands on the EUP slot.
        e = jnp.exp(-jnp.abs(y))
        y = jnp.where(y >= 0, 1.0, e) / (1.0 + e)
    o_ref[...] = y.astype(o_ref.dtype)


def gemm_affine_act(x, w, scale, bias, act, out_dtype=jnp.bfloat16, tm_max=256):
    """y = act((x @ w) * scale + bias);  x:[M,K], w:[K,N], scale/bias:[N].

    Operands are cast to bf16 (f32 accumulation, f32 epilogue).  M is only rounded
    up to a multiple of 8 (no full-tile padding round-trip); tm adapts to M so small
    layers run as a single block while large-M layers get >=2 parallel blocks.
    """
    M, K = x.shape
    Kw, N = w.shape
    assert K == Kw, (K, Kw)

    # Pad K to a multiple of 8 (exact: zero rows/cols).  Only the first encoder conv
    # (K = 3*3*3 = 27 -> 32) hits this; it avoids sublane-ragged layouts.
    if K % 8:
        kp = 8 - K % 8
        x = jnp.pad(x, ((0, 0), (0, kp)))
        w = jnp.pad(w, ((0, kp), (0, 0)))
        K += kp

    x = x.astype(jnp.bfloat16)
    w = w.astype(jnp.bfloat16)

    Mp = ((M + 7) // 8) * 8
    if Mp != M:
        x = jnp.pad(x, ((0, Mp - M), (0, 0)))

    tm = min(tm_max, Mp)
    grid_m = (Mp + tm - 1) // tm

    out = pl.pallas_call(
        functools.partial(_gemm_affine_act_kernel, act=act),
        out_shape=jax.ShapeDtypeStruct((Mp, N), out_dtype),
        grid_spec=pltpu.PrefetchScalarGridSpec(
            num_scalar_prefetch=0,
            grid=(grid_m,),
            in_specs=[
                pl.BlockSpec((tm, K), lambda i: (i, 0)),
                pl.BlockSpec((K, N), lambda i: (0, 0)),
                pl.BlockSpec((1, N), lambda i: (0, 0)),
                pl.BlockSpec((1, N), lambda i: (0, 0)),
            ],
            out_specs=pl.BlockSpec((tm, N), lambda i: (i, 0)),
        ),
        compiler_params=pltpu.CompilerParams(
            dimension_semantics=("parallel",)),
    )(x, w,
      scale.reshape(1, N).astype(jnp.float32),
      bias.reshape(1, N).astype(jnp.float32))
    return out[:M] if Mp != M else out


def _latent_kernel(flat_ref, zmw_ref, zmb_ref, zvw_ref, zvb_ref, eps_ref,
                   dw_ref, db_ref, enc_ref, zm_ref, zv_ref, h_ref):
    """Fused z_mean / z_log_var linears + reparameterize + decoder Linear."""
    flat = flat_ref[...].astype(jnp.float32)
    mu = jnp.dot(flat, zmw_ref[...], preferred_element_type=jnp.float32) + zmb_ref[...]
    lv = jnp.dot(flat, zvw_ref[...], preferred_element_type=jnp.float32) + zvb_ref[...]
    z = mu + eps_ref[...] * jnp.exp(0.5 * lv)
    zm_ref[...] = mu
    zv_ref[...] = lv
    enc_ref[...] = z
    h = jnp.dot(z, dw_ref[...], preferred_element_type=jnp.float32) + db_ref[...]
    h_ref[...] = h.astype(h_ref.dtype)


def latent_block(flat, zm_w, zm_b, zv_w, zv_b, eps, dec_w, dec_b):
    B, F = flat.shape
    L = zm_w.shape[1]
    Bp = max(8, ((B + 7) // 8) * 8)
    if Bp != B:
        flat = jnp.pad(flat, ((0, Bp - B), (0, 0)))
        eps = jnp.pad(eps, ((0, Bp - B), (0, 0)))

    def spec(shape):
        nd = len(shape)
        return pl.BlockSpec(shape, lambda i: (0,) * nd)

    enc, zm, zv, h = pl.pallas_call(
        _latent_kernel,
        out_shape=(jax.ShapeDtypeStruct((Bp, L), jnp.float32),
                   jax.ShapeDtypeStruct((Bp, L), jnp.float32),
                   jax.ShapeDtypeStruct((Bp, L), jnp.float32),
                   jax.ShapeDtypeStruct((Bp, F), jnp.bfloat16)),
        grid=(1,),
        in_specs=[spec((Bp, F)), spec((F, L)), spec((1, L)),
                  spec((F, L)), spec((1, L)), spec((Bp, L)),
                  spec((L, F)), spec((1, F))],
        out_specs=(spec((Bp, L)), spec((Bp, L)), spec((Bp, L)), spec((Bp, F))),
    )(flat,
      zm_w.astype(jnp.float32), zm_b.reshape(1, L).astype(jnp.float32),
      zv_w.astype(jnp.float32), zv_b.reshape(1, L).astype(jnp.float32),
      eps.astype(jnp.float32),
      dec_w.astype(jnp.float32), dec_b.reshape(1, F).astype(jnp.float32))
    return enc[:B], zm[:B], zv[:B], h[:B]


# --------------------------------------------------------------------------- conv glue

def _im2col(x, k, stride, pad):
    """x: NHWC -> patch matrix [B*Ho*Wo, k*k*C], columns ordered (kh, kw, Cin)."""
    B, H, W, C = x.shape
    xp = jnp.pad(x, ((0, 0), (pad, pad), (pad, pad), (0, 0)))
    Ho = (H + 2 * pad - k) // stride + 1
    Wo = (W + 2 * pad - k) // stride + 1
    cols = []
    for i in range(k):
        for j in range(k):
            cols.append(xp[:, i:i + stride * (Ho - 1) + 1:stride,
                           j:j + stride * (Wo - 1) + 1:stride, :])
    cols = jnp.concatenate(cols, axis=-1)        # [B, Ho, Wo, k*k*C]
    return cols.reshape(B * Ho * Wo, k * k * C), (B, Ho, Wo)


def _conv_w_to_mat(w):
    # PyTorch Conv2d weight [Cout, Cin, kh, kw] -> [kh*kw*Cin, Cout]
    Cout, Cin, kh, kw = w.shape
    return jnp.transpose(w, (2, 3, 1, 0)).reshape(kh * kw * Cin, Cout)


def conv_layer(x, w_mat, scale, bias, k, stride, pad, act, out_dtype=jnp.bfloat16):
    cols, (B, Ho, Wo) = _im2col(x, k, stride, pad)
    y = gemm_affine_act(cols, w_mat, scale, bias, act, out_dtype=out_dtype)
    return y.reshape(B, Ho, Wo, -1)


def _convT_w_subpixel(w, pad):
    """PyTorch ConvTranspose2d weight [Cin, Cout, 3, 3] (stride 2) -> sub-pixel GEMM
    weight [4*Cin, 4*Cout]: rows ordered (dh, dw, ci) over the 2x2 input patch,
    columns ordered (r, s, co) over the 2x2 output block (pixel-shuffle groups)."""
    Cin, Cout = w.shape[0], w.shape[1]
    # (output parity r, patch offset dh) -> kernel tap kh   (missing => contributes 0)
    if pad == 1:
        tap = {(0, 0): 1, (1, 0): 2, (1, 1): 0}
    else:  # pad == 0 (patch rooted one row/col earlier; see convT_subpixel)
        tap = {(0, 0): 2, (0, 1): 0, (1, 1): 1}
    w4 = jnp.zeros((4 * Cin, 4 * Cout), jnp.float32)
    for r in range(2):
        for s in range(2):
            for dh in range(2):
                for dw in range(2):
                    kh, kw = tap.get((r, dh)), tap.get((s, dw))
                    if kh is None or kw is None:
                        continue
                    w4 = w4.at[(dh * 2 + dw) * Cin:(dh * 2 + dw + 1) * Cin,
                               (r * 2 + s) * Cout:(r * 2 + s + 1) * Cout].set(
                                   w[:, :, kh, kw])
    return w4


def convT_subpixel(x, w4, scale4, bias4, pad, act, out_crop,
                   out_dtype=jnp.bfloat16):
    """ConvTranspose2d(stride=2, k=3, padding=pad), computing only the top-left
    out_crop x out_crop window of the output (exactly equal to the full op
    followed by [:, :out_crop, :out_crop])."""
    B, Hi, Wi, C = x.shape
    A = (out_crop + 1) // 2                  # number of 2x2 output blocks per dim
    lo = 0 if pad == 1 else 1                # pad==0 patches are rooted at (a-1, b-1)
    need = A + 1 - lo                        # real input rows/cols required
    take = min(need, Hi)
    hi_pad = need - take                     # >0 only when the crop reaches the
    xs = x[:, :take, :take, :]               # bottom/right edge of the full output
    if lo or hi_pad:
        xs = jnp.pad(xs, ((0, 0), (lo, hi_pad), (lo, hi_pad), (0, 0)))
    # 2x2 stride-1 patches of the (un-dilated) input -> [B*A*A, 4*C]
    cols = jnp.concatenate([xs[:, :-1, :-1, :], xs[:, :-1, 1:, :],
                            xs[:, 1:, :-1, :], xs[:, 1:, 1:, :]], axis=-1)
    cols = cols.reshape(B * A * A, 4 * C)
    y = gemm_affine_act(cols, w4, scale4, bias4, act, out_dtype=out_dtype)
    Cout = w4.shape[1] // 4
    # depth-to-space: (r, s, co) channel groups -> 2x interleaved spatial output
    y = y.reshape(B, A, A, 2, 2, Cout).transpose(0, 1, 3, 2, 4, 5)
    y = y.reshape(B, 2 * A, 2 * A, Cout)
    return y[:, :out_crop, :out_crop, :]


# --------------------------------------------------------------------------- parameters

def _fold_bn(gamma, beta, mean, var, conv_bias=None):
    inv = gamma / jnp.sqrt(var + BN_EPS)
    b = beta - mean * inv
    if conv_bias is not None:
        b = b + conv_bias * inv
    return inv, b


def init_params(key, num_channels, img_size, num_latent_dims):
    encoder_out_shape = CONV_SHAPE_TABLE[img_size]
    no_channels = encoder_out_shape // 64
    keys = iter(jax.random.split(key, 64))

    def nrm(shape, std):
        return std * jax.random.normal(next(keys), shape, jnp.float32)

    params = {}

    # ---- encoder: 4 x [Conv2d(k3,s2,p1,bias=False) + BN(eval) + LeakyReLU(0.1)]
    enc_chans = [(num_channels, 32), (32, 64), (64, 64), (64, 64)]
    enc = []
    for cin, cout in enc_chans:
        w = nrm((cout, cin, 3, 3), (2.0 / (cin * 9)) ** 0.5)
        gamma = 1.0 + nrm((cout,), 0.1)
        beta = nrm((cout,), 0.1)
        s, b = _fold_bn(gamma, beta, jnp.zeros((cout,), jnp.float32),
                        jnp.ones((cout,), jnp.float32))
        enc.append((_conv_w_to_mat(w).astype(jnp.bfloat16), s, b))
    params["enc"] = enc

    # ---- z_mean / z_log_var / decoder Linear
    F = encoder_out_shape
    L = num_latent_dims
    params["zm_w"] = nrm((F, L), (1.0 / F) ** 0.5)
    params["zm_b"] = nrm((L,), 0.01)
    params["zv_w"] = nrm((F, L), (1.0 / F) ** 0.5)
    params["zv_b"] = nrm((L,), 0.01)
    params["dec_w"] = nrm((L, F), (1.0 / L) ** 0.5)
    params["dec_b"] = nrm((F,), 0.01)

    # ---- decoder transposed convs (bias=True); BN on all but the last
    dec_cfg = [(no_channels, 64, 0, True), (64, 64, 1, True),
               (64, 32, 1, True), (32, num_channels, 1, False)]
    dec = []
    for cin, cout, pad, has_bn in dec_cfg:
        w = nrm((cin, cout, 3, 3), (2.0 / (cin * 9)) ** 0.5)
        cb = nrm((cout,), 0.01)
        if has_bn:
            gamma = 1.0 + nrm((cout,), 0.1)
            beta = nrm((cout,), 0.1)
            s, b = _fold_bn(gamma, beta, jnp.zeros((cout,), jnp.float32),
                            jnp.ones((cout,), jnp.float32), conv_bias=cb)
        else:
            s, b = jnp.ones((cout,), jnp.float32), cb
        dec.append((_convT_w_subpixel(w, pad).astype(jnp.bfloat16),
                    jnp.tile(s, 4), jnp.tile(b, 4)))
    params["dec_convs"] = dec
    return params


# --------------------------------------------------------------------------- forward

def vae_forward(params, x_nchw, eps, *, img_size):
    x = jnp.transpose(x_nchw, (0, 2, 3, 1)).astype(jnp.bfloat16)   # NCHW -> NHWC
    B = x.shape[0]

    # ---- encoder (Dropout2d is identity in eval mode)
    for w_mat, s, b in params["enc"]:
        x = conv_layer(x, w_mat, s, b, k=3, stride=2, pad=1, act=ACT_LRELU)
    flat = jnp.transpose(x, (0, 3, 1, 2)).reshape(B, -1)    # PyTorch Flatten (C,H,W)

    # ---- fused z_mean / z_log_var / reparameterize / decoder Linear
    encoded, z_mean, z_log_var, h = latent_block(
        flat, params["zm_w"], params["zm_b"], params["zv_w"], params["zv_b"],
        eps, params["dec_w"], params["dec_b"])

    # ---- decoder
    F = params["dec_w"].shape[1]
    nc = F // 64
    h = h.reshape(B, nc, DEC_IN_HW, DEC_IN_HW)     # Reshape(-1, nc, 8, 8)  (NCHW)
    h = jnp.transpose(h, (0, 2, 3, 1))             # -> NHWC

    # Propagate the final Trim(img,img) backwards through the transposed convs so
    # only the surviving output window (plus its halo) is ever computed.
    full, hi = [], DEC_IN_HW
    for p in DEC_PADS:
        hi = (hi - 1) * 2 + 3 - 2 * p
        full.append(hi)
    crops = [0] * len(DEC_PADS)
    crops[-1] = min(img_size, full[-1])
    for i in range(len(DEC_PADS) - 2, -1, -1):
        need = (crops[i + 1] + 1) // 2 + (1 if DEC_PADS[i + 1] == 1 else 0)
        crops[i] = min(need, full[i])

    for (w4, s4, b4), pad, act, crop in zip(params["dec_convs"], DEC_PADS,
                                            DEC_ACTS, crops):
        out_dtype = jnp.float32 if act == ACT_SIGMOID else jnp.bfloat16
        h = convT_subpixel(h, w4, s4, b4, pad, act, crop, out_dtype=out_dtype)

    # sigmoid already fused into the last kernel (elementwise, commutes with Trim)
    decoded = jnp.transpose(h[:, :img_size, :img_size, :], (0, 3, 1, 2))  # -> NCHW
    return encoded, z_mean, z_log_var, decoded


# --------------------------------------------------------------------------- main

if __name__ == "__main__":
    num_channels, img_size, num_latent_dims, batch = 3, 32, 16, 2

    key = jax.random.PRNGKey(0)
    k_param, k_x, k_eps = jax.random.split(key, 3)

    params = init_params(k_param, num_channels, img_size, num_latent_dims)
    x = jax.random.normal(k_x, (batch, num_channels, img_size, img_size), jnp.float32)
    # TODO(synk): PyTorch draws eps with torch.randn inside forward(); here it is a
    # deterministic jax.random input.
    eps = jax.random.normal(k_eps, (batch, num_latent_dims), jnp.float32)

    fwd = jax.jit(functools.partial(vae_forward, img_size=img_size))
    encoded, z_mean, z_log_var, decoded = fwd(params, x, eps)
    jax.block_until_ready((encoded, z_mean, z_log_var, decoded))

    assert encoded.shape == (batch, num_latent_dims)
    assert z_mean.shape == (batch, num_latent_dims)
    assert z_log_var.shape == (batch, num_latent_dims)
    assert decoded.shape == (batch, num_channels, img_size, img_size)
    assert bool(jnp.all(jnp.isfinite(decoded)))
    assert bool(jnp.all((decoded >= 0.0) & (decoded <= 1.0)))
    print("KERNEL_OK")
</pallas_src>

<mosaic_0001>
module attributes {stable_mosaic.version = 11 : i64} {
  func.func @_gemm_affine_act_kernel(%arg0: i32, %arg1: memref<256x32xbf16, #tpu.memory_space<vmem>>, %arg2: memref<32x32xbf16, #tpu.memory_space<vmem>>, %arg3: memref<1x32xf32, #tpu.memory_space<vmem>>, %arg4: memref<1x32xf32, #tpu.memory_space<vmem>>, %arg5: memref<256x32xbf16, #tpu.memory_space<vmem>>) attributes {dimension_semantics = [#tpu.dimension_semantics<parallel>], iteration_bounds = array<i64: 2>, scalar_prefetch = 0 : i64, scratch_operands = 0 : i64, tpu.core_type = #tpu.core_type<tc>, window_params = [{transform_indices = @transform_0, window_bounds = array<i64: 256, 32>}, {pipeline_mode = #tpu.pipeline_mode<synchronous>, transform_indices = @transform_1, window_bounds = array<i64: 32, 32>}, {pipeline_mode = #tpu.pipeline_mode<synchronous>, transform_indices = @transform_2, window_bounds = array<i64: 1, 32>}, {pipeline_mode = #tpu.pipeline_mode<synchronous>, transform_indices = @transform_3, window_bounds = array<i64: 1, 32>}, {transform_indices = @transform_4, window_bounds = array<i64: 256, 32>}]} {
    %c0 = arith.constant 0 : index
    %c0_0 = arith.constant 0 : index
    %0 = vector.load %arg1[%c0, %c0_0] : memref<256x32xbf16, #tpu.memory_space<vmem>>, vector<256x32xbf16>
    %c0_1 = arith.constant 0 : index
    %c0_2 = arith.constant 0 : index
    %1 = vector.load %arg2[%c0_1, %c0_2] : memref<32x32xbf16, #tpu.memory_space<vmem>>, vector<32x32xbf16>
    %cst = arith.constant dense<0.000000e+00> : vector<256x32xf32>
    %2 = tpu.matmul %0, %1, %cst {dimension_numbers = #tpu.dot_dimension_numbers<[1], [0], [0], [1], [0, 0, 1, 1], [], []>} : vector<256x32xbf16>, vector<32x32xbf16>, vector<256x32xf32> -> vector<256x32xf32>
    %c0_3 = arith.constant 0 : index
    %c0_4 = arith.constant 0 : index
    %3 = vector.load %arg3[%c0_3, %c0_4] : memref<1x32xf32, #tpu.memory_space<vmem>>, vector<1x32xf32>
    %4 = vector.broadcast %3 : vector<1x32xf32> to vector<256x32xf32>
    %5 = arith.mulf %2, %4 : vector<256x32xf32>
    %c0_5 = arith.constant 0 : index
    %c0_6 = arith.constant 0 : index
    %6 = vector.load %arg4[%c0_5, %c0_6] : memref<1x32xf32, #tpu.memory_space<vmem>>, vector<1x32xf32>
    %7 = vector.broadcast %6 : vector<1x32xf32> to vector<256x32xf32>
    %8 = arith.addf %5, %7 : vector<256x32xf32>
    %cst_7 = arith.constant 0.000000e+00 : f32
    %9 = vector.broadcast %cst_7 : f32 to vector<256x32xf32>
    %10 = arith.cmpf ogt, %8, %9 : vector<256x32xf32>
    %cst_8 = arith.constant 1.000000e-01 : f32
    %11 = vector.broadcast %cst_8 : f32 to vector<256x32xf32>
    %12 = arith.mulf %11, %8 : vector<256x32xf32>
    %13 = arith.select %10, %8, %12 : vector<256x32xi1>, vector<256x32xf32>
    %14 = arith.truncf %13 : vector<256x32xf32> to vector<256x32xbf16>
    %c0_9 = arith.constant 0 : index
    %c0_10 = arith.constant 0 : index
    %15 = vector.load %arg5[%c0_9, %c0_10] : memref<256x32xbf16, #tpu.memory_space<vmem>>, vector<256x32xbf16>
    tpu.vector_store %arg5[%c0_9, %c0_10], %14 {strides = array<i32>} : memref<256x32xbf16, #tpu.memory_space<vmem>>, vector<256x32xbf16>,
    return
  }
  func.func @transform_0(%arg0: i32) -> (i32, i32) {
    %c0_i32 = arith.constant 0 : i32
    %c0_i32_0 = arith.constant 0 : i32
    return %arg0, %c0_i32 : i32, i32
  }
  func.func @transform_1(%arg0: i32) -> (i32, i32) {
    %c0_i32 = arith.constant 0 : i32
    %c0_i32_0 = arith.constant 0 : i32
    %c0_i32_1 = arith.constant 0 : i32
    return %c0_i32, %c0_i32_0 : i32, i32
  }
  func.func @transform_2(%arg0: i32) -> (i32, i32) {
    %c0_i32 = arith.constant 0 : i32
    %c0_i32_0 = arith.constant 0 : i32
    %c0_i32_1 = arith.constant 0 : i32
    return %c0_i32, %c0_i32_0 : i32, i32
  }
  func.func @transform_3(%arg0: i32) -> (i32, i32) {
    %c0_i32 = arith.constant 0 : i32
    %c0_i32_0 = arith.constant 0 : i32
    %c0_i32_1 = arith.constant 0 : i32
    return %c0_i32, %c0_i32_0 : i32, i32
  }
  func.func @transform_4(%arg0: i32) -> (i32, i32) {
    %c0_i32 = arith.constant 0 : i32
    %c0_i32_0 = arith.constant 0 : i32
    return %arg0, %c0_i32 : i32, i32
  }
}

module attributes {stable_mosaic.version = 11 : i64} {
  func.func @_gemm_affine_act_kernel(%arg0: i32, %arg1: memref<128x288xbf16, #tpu.memory_space<vmem>>, %arg2: memref<288x64xbf16, #tpu.memory_space<vmem>>, %arg3: memref<1x64xf32, #tpu.memory_space<vmem>>, %arg4: memref<1x64xf32, #tpu.memory_space<vmem>>, %arg5: memref<128x64xbf16, #tpu.memory_space<vmem>>) attributes {dimension_semantics = [#tpu.dimension_semantics<parallel>], iteration_bounds = array<i64: 1>, scalar_prefetch = 0 : i64, scratch_operands = 0 : i64, tpu.core_type = #tpu.core_type<tc>, window_params = [{transform_indices = @transform_0, window_bounds = array<i64: 128, 288>}, {pipeline_mode = #tpu.pipeline_mode<synchronous>, transform_indices = @transform_1, window_bounds = array<i64: 288, 64>}, {pipeline_mode = #tpu.pipeline_mode<synchronous>, transform_indices = @transform_2, window_bounds = array<i64: 1, 64>}, {pipeline_mode = #tpu.pipeline_mode<synchronous>, transform_indices = @transform_3, window_bounds = array<i64: 1, 64>}, {transform_indices = @transform_4, window_bounds = array<i64: 128, 64>}]} {
    %c0 = arith.constant 0 : index
    %c0_0 = arith.constant 0 : index
    %0 = vector.load %arg1[%c0, %c0_0] : memref<128x288xbf16, #tpu.memory_space<vmem>>, vector<128x288xbf16>
    %c0_1 = arith.constant 0 : index
    %c0_2 = arith.constant 0 : index
    %1 = vector.load %arg2[%c0_1, %c0_2] : memref<288x64xbf16, #tpu.memory_space<vmem>>, vector<288x64xbf16>
    %cst = arith.constant dense<0.000000e+00> : vector<128x64xf32>
    %2 = tpu.matmul %0, %1, %cst {dimension_numbers = #tpu.dot_dimension_numbers<[1], [0], [0], [1], [0, 0, 1, 1], [], []>} : vector<128x288xbf16>, vector<288x64xbf16>, vector<128x64xf32> -> vector<128x64xf32>
    %c0_3 = arith.constant 0 : index
    %c0_4 = arith.constant 0 : index
    %3 = vector.load %arg3[%c0_3, %c0_4] : memref<1x64xf32, #tpu.memory_space<vmem>>, vector<1x64xf32>
    %4 = vector.broadcast %3 : vector<1x64xf32> to vector<128x64xf32>
    %5 = arith.mulf %2, %4 : vector<128x64xf32>
    %c0_5 = arith.constant 0 : index
    %c0_6 = arith.constant 0 : index
    %6 = vector.load %arg4[%c0_5, %c0_6] : memref<1x64xf32, #tpu.memory_space<vmem>>, vector<1x64xf32>
    %7 = vector.broadcast %6 : vector<1x64xf32> to vector<128x64xf32>
    %8 = arith.addf %5, %7 : vector<128x64xf32>
    %cst_7 = arith.constant 0.000000e+00 : f32
    %9 = vector.broadcast %cst_7 : f32 to vector<128x64xf32>
    %10 = arith.cmpf ogt, %8, %9 : vector<128x64xf32>
    %cst_8 = arith.constant 1.000000e-01 : f32
    %11 = vector.broadcast %cst_8 : f32 to vector<128x64xf32>
    %12 = arith.mulf %11, %8 : vector<128x64xf32>
    %13 = arith.select %10, %8, %12 : vector<128x64xi1>, vector<128x64xf32>
    %14 = arith.truncf %13 : vector<128x64xf32> to vector<128x64xbf16>
    %c0_9 = arith.constant 0 : index
    %c0_10 = arith.constant 0 : index
    %15 = vector.load %arg5[%c0_9, %c0_10] : memref<128x64xbf16, #tpu.memory_space<vmem>>, vector<128x64xbf16>
    tpu.vector_store %arg5[%c0_9, %c0_10], %14 {strides = array<i32>} : memref<128x64xbf16, #tpu.memory_space<vmem>>, vector<128x64xbf16>,
    return
  }
  func.func @transform_0(%arg0: i32) -> (i32, i32) {
    %c0_i32 = arith.constant 0 : i32
    %c0_i32_0 = arith.constant 0 : i32
    return %arg0, %c0_i32 : i32, i32
  }
  func.func @transform_1(%arg0: i32) -> (i32, i32) {
    %c0_i32 = arith.constant 0 : i32
    %c0_i32_0 = arith.constant 0 : i32
    %c0_i32_1 = arith.constant 0 : i32
    return %c0_i32, %c0_i32_0 : i32, i32
  }
  func.func @transform_2(%arg0: i32) -> (i32, i32) {
    %c0_i32 = arith.constant 0 : i32
    %c0_i32_0 = arith.constant 0 : i32
    %c0_i32_1 = arith.constant 0 : i32
    return %c0_i32, %c0_i32_0 : i32, i32
  }
  func.func @transform_3(%arg0: i32) -> (i32, i32) {
    %c0_i32 = arith.constant 0 : i32
    %c0_i32_0 = arith.constant 0 : i32
    %c0_i32_1 = arith.constant 0 : i32
    return %c0_i32, %c0_i32_0 : i32, i32
  }
  func.func @transform_4(%arg0: i32) -> (i32, i32) {
    %c0_i32 = arith.constant 0 : i32
    %c0_i32_0 = arith.constant 0 : i32
    return %arg0, %c0_i32 : i32, i32
  }
}

module attributes {stable_mosaic.version = 11 : i64} {
  func.func @_gemm_affine_act_kernel(%arg0: i32, %arg1: memref<32x576xbf16, #tpu.memory_space<vmem>>, %arg2: memref<576x64xbf16, #tpu.memory_space<vmem>>, %arg3: memref<1x64xf32, #tpu.memory_space<vmem>>, %arg4: memref<1x64xf32, #tpu.memory_space<vmem>>, %arg5: memref<32x64xbf16, #tpu.memory_space<vmem>>) attributes {dimension_semantics = [#tpu.dimension_semantics<parallel>], iteration_bounds = array<i64: 1>, scalar_prefetch = 0 : i64, scratch_operands = 0 : i64, tpu.core_type = #tpu.core_type<tc>, window_params = [{transform_indices = @transform_0, window_bounds = array<i64: 32, 576>}, {pipeline_mode = #tpu.pipeline_mode<synchronous>, transform_indices = @transform_1, window_bounds = array<i64: 576, 64>}, {pipeline_mode = #tpu.pipeline_mode<synchronous>, transform_indices = @transform_2, window_bounds = array<i64: 1, 64>}, {pipeline_mode = #tpu.pipeline_mode<synchronous>, transform_indices = @transform_3, window_bounds = array<i64: 1, 64>}, {transform_indices = @transform_4, window_bounds = array<i64: 32, 64>}]} {
    %c0 = arith.constant 0 : index
    %c0_0 = arith.constant 0 : index
    %0 = vector.load %arg1[%c0, %c0_0] : memref<32x576xbf16, #tpu.memory_space<vmem>>, vector<32x576xbf16>
    %c0_1 = arith.constant 0 : index
    %c0_2 = arith.constant 0 : index
    %1 = vector.load %arg2[%c0_1, %c0_2] : memref<576x64xbf16, #tpu.memory_space<vmem>>, vector<576x64xbf16>
    %cst = arith.constant dense<0.000000e+00> : vector<32x64xf32>
    %2 = tpu.matmul %0, %1, %cst {dimension_numbers = #tpu.dot_dimension_numbers<[1], [0], [0], [1], [0, 0, 1, 1], [], []>} : vector<32x576xbf16>, vector<576x64xbf16>, vector<32x64xf32> -> vector<32x64xf32>
    %c0_3 = arith.constant 0 : index
    %c0_4 = arith.constant 0 : index
    %3 = vector.load %arg3[%c0_3, %c0_4] : memref<1x64xf32, #tpu.memory_space<vmem>>, vector<1x64xf32>
    %4 = vector.broadcast %3 : vector<1x64xf32> to vector<32x64xf32>
    %5 = arith.mulf %2, %4 : vector<32x64xf32>
    %c0_5 = arith.constant 0 : index
    %c0_6 = arith.constant 0 : index
    %6 = vector.load %arg4[%c0_5, %c0_6] : memref<1x64xf32, #tpu.memory_space<vmem>>, vector<1x64xf32>
    %7 = vector.broadcast %6 : vector<1x64xf32> to vector<32x64xf32>
    %8 = arith.addf %5, %7 : vector<32x64xf32>
    %cst_7 = arith.constant 0.000000e+00 : f32
    %9 = vector.broadcast %cst_7 : f32 to vector<32x64xf32>
    %10 = arith.cmpf ogt, %8, %9 : vector<32x64xf32>
    %cst_8 = arith.constant 1.000000e-01 : f32
    %11 = vector.broadcast %cst_8 : f32 to vector<32x64xf32>
    %12 = arith.mulf %11, %8 : vector<32x64xf32>
    %13 = arith.select %10, %8, %12 : vector<32x64xi1>, vector<32x64xf32>
    %14 = arith.truncf %13 : vector<32x64xf32> to vector<32x64xbf16>
    %c0_9 = arith.constant 0 : index
    %c0_10 = arith.constant 0 : index
    %15 = vector.load %arg5[%c0_9, %c0_10] : memref<32x64xbf16, #tpu.memory_space<vmem>>, vector<32x64xbf16>
    tpu.vector_store %arg5[%c0_9, %c0_10], %14 {strides = array<i32>} : memref<32x64xbf16, #tpu.memory_space<vmem>>, vector<32x64xbf16>,
    return
  }
  func.func @transform_0(%arg0: i32) -> (i32, i32) {
    %c0_i32 = arith.constant 0 : i32
    %c0_i32_0 = arith.constant 0 : i32
    return %arg0, %c0_i32 : i32, i32
  }
  func.func @transform_1(%arg0: i32) -> (i32, i32) {
    %c0_i32 = arith.constant 0 : i32
    %c0_i32_0 = arith.constant 0 : i32
    %c0_i32_1 = arith.constant 0 : i32
    return %c0_i32, %c0_i32_0 : i32, i32
  }
  func.func @transform_2(%arg0: i32) -> (i32, i32) {
    %c0_i32 = arith.constant 0 : i32
    %c0_i32_0 = arith.constant 0 : i32
    %c0_i32_1 = arith.constant 0 : i32
    return %c0_i32, %c0_i32_0 : i32, i32
  }
  func.func @transform_3(%arg0: i32) -> (i32, i32) {
    %c0_i32 = arith.constant 0 : i32
    %c0_i32_0 = arith.constant 0 : i32
    %c0_i32_1 = arith.constant 0 : i32
    return %c0_i32, %c0_i32_0 : i32, i32
  }
  func.func @transform_4(%arg0: i32) -> (i32, i32) {
    %c0_i32 = arith.constant 0 : i32
    %c0_i32_0 = arith.constant 0 : i32
    return %arg0, %c0_i32 : i32, i32
  }
}

module attributes {stable_mosaic.version = 11 : i64} {
  func.func @_gemm_affine_act_kernel(%arg0: i32, %arg1: memref<8x576xbf16, #tpu.memory_space<vmem>>, %arg2: memref<576x64xbf16, #tpu.memory_space<vmem>>, %arg3: memref<1x64xf32, #tpu.memory_space<vmem>>, %arg4: memref<1x64xf32, #tpu.memory_space<vmem>>, %arg5: memref<8x64xbf16, #tpu.memory_space<vmem>>) attributes {dimension_semantics = [#tpu.dimension_semantics<parallel>], iteration_bounds = array<i64: 1>, scalar_prefetch = 0 : i64, scratch_operands = 0 : i64, tpu.core_type = #tpu.core_type<tc>, window_params = [{transform_indices = @transform_0, window_bounds = array<i64: 8, 576>}, {pipeline_mode = #tpu.pipeline_mode<synchronous>, transform_indices = @transform_1, window_bounds = array<i64: 576, 64>}, {pipeline_mode = #tpu.pipeline_mode<synchronous>, transform_indices = @transform_2, window_bounds = array<i64: 1, 64>}, {pipeline_mode = #tpu.pipeline_mode<synchronous>, transform_indices = @transform_3, window_bounds = array<i64: 1, 64>}, {transform_indices = @transform_4, window_bounds = array<i64: 8, 64>}]} {
    %c0 = arith.constant 0 : index
    %c0_0 = arith.constant 0 : index
    %0 = vector.load %arg1[%c0, %c0_0] : memref<8x576xbf16, #tpu.memory_space<vmem>>, vector<8x576xbf16>
    %c0_1 = arith.constant 0 : index
    %c0_2 = arith.constant 0 : index
    %1 = vector.load %arg2[%c0_1, %c0_2] : memref<576x64xbf16, #tpu.memory_space<vmem>>, vector<576x64xbf16>
    %cst = arith.constant dense<0.000000e+00> : vector<8x64xf32>
    %2 = tpu.matmul %0, %1, %cst {dimension_numbers = #tpu.dot_dimension_numbers<[1], [0], [0], [1], [0, 0, 1, 1], [], []>} : vector<8x576xbf16>, vector<576x64xbf16>, vector<8x64xf32> -> vector<8x64xf32>
    %c0_3 = arith.constant 0 : index
    %c0_4 = arith.constant 0 : index
    %3 = vector.load %arg3[%c0_3, %c0_4] : memref<1x64xf32, #tpu.memory_space<vmem>>, vector<1x64xf32>
    %4 = vector.broadcast %3 : vector<1x64xf32> to vector<8x64xf32>
    %5 = arith.mulf %2, %4 : vector<8x64xf32>
    %c0_5 = arith.constant 0 : index
    %c0_6 = arith.constant 0 : index
    %6 = vector.load %arg4[%c0_5, %c0_6] : memref<1x64xf32, #tpu.memory_space<vmem>>, vector<1x64xf32>
    %7 = vector.broadcast %6 : vector<1x64xf32> to vector<8x64xf32>
    %8 = arith.addf %5, %7 : vector<8x64xf32>
    %cst_7 = arith.constant 0.000000e+00 : f32
    %9 = vector.broadcast %cst_7 : f32 to vector<8x64xf32>
    %10 = arith.cmpf ogt, %8, %9 : vector<8x64xf32>
    %cst_8 = arith.constant 1.000000e-01 : f32
    %11 = vector.broadcast %cst_8 : f32 to vector<8x64xf32>
    %12 = arith.mulf %11, %8 : vector<8x64xf32>
    %13 = arith.select %10, %8, %12 : vector<8x64xi1>, vector<8x64xf32>
    %14 = arith.truncf %13 : vector<8x64xf32> to vector<8x64xbf16>
    %c0_9 = arith.constant 0 : index
    %c0_10 = arith.constant 0 : index
    %15 = vector.load %arg5[%c0_9, %c0_10] : memref<8x64xbf16, #tpu.memory_space<vmem>>, vector<8x64xbf16>
    tpu.vector_store %arg5[%c0_9, %c0_10], %14 {strides = array<i32>} : memref<8x64xbf16, #tpu.memory_space<vmem>>, vector<8x64xbf16>,
    return
  }
  func.func @transform_0(%arg0: i32) -> (i32, i32) {
    %c0_i32 = arith.constant 0 : i32
    %c0_i32_0 = arith.constant 0 : i32
    return %arg0, %c0_i32 : i32, i32
  }
  func.func @transform_1(%arg0: i32) -> (i32, i32) {
    %c0_i32 = arith.constant 0 : i32
    %c0_i32_0 = arith.constant 0 : i32
    %c0_i32_1 = arith.constant 0 : i32
    return %c0_i32, %c0_i32_0 : i32, i32
  }
  func.func @transform_2(%arg0: i32) -> (i32, i32) {
    %c0_i32 = arith.constant 0 : i32
    %c0_i32_0 = arith.constant 0 : i32
    %c0_i32_1 = arith.constant 0 : i32
    return %c0_i32, %c0_i32_0 : i32, i32
  }
  func.func @transform_3(%arg0: i32) -> (i32, i32) {
    %c0_i32 = arith.constant 0 : i32
    %c0_i32_0 = arith.constant 0 : i32
    %c0_i32_1 = arith.constant 0 : i32
    return %c0_i32, %c0_i32_0 : i32, i32
  }
  func.func @transform_4(%arg0: i32) -> (i32, i32) {
    %c0_i32 = arith.constant 0 : i32
    %c0_i32_0 = arith.constant 0 : i32
    return %arg0, %c0_i32 : i32, i32
  }
}

module attributes {stable_mosaic.version = 11 : i64} {
  func.func @_latent_kernel(%arg0: i32, %arg1: memref<8x256xbf16, #tpu.memory_space<vmem>>, %arg2: memref<256x16xf32, #tpu.memory_space<vmem>>, %arg3: memref<1x16xf32, #tpu.memory_space<vmem>>, %arg4: memref<256x16xf32, #tpu.memory_space<vmem>>, %arg5: memref<1x16xf32, #tpu.memory_space<vmem>>, %arg6: memref<8x16xf32, #tpu.memory_space<vmem>>, %arg7: memref<16x256xf32, #tpu.memory_space<vmem>>, %arg8: memref<1x256xf32, #tpu.memory_space<vmem>>, %arg9: memref<8x16xf32, #tpu.memory_space<vmem>>, %arg10: memref<8x16xf32, #tpu.memory_space<vmem>>, %arg11: memref<8x16xf32, #tpu.memory_space<vmem>>, %arg12: memref<8x256xbf16, #tpu.memory_space<vmem>>) attributes {dimension_semantics = [#tpu.dimension_semantics<arbitrary>], iteration_bounds = array<i64: 1>, scalar_prefetch = 0 : i64, scratch_operands = 0 : i64, tpu.core_type = #tpu.core_type<tc>, window_params = [{pipeline_mode = #tpu.pipeline_mode<synchronous>, transform_indices = @transform_0, window_bounds = array<i64: 8, 256>}, {pipeline_mode = #tpu.pipeline_mode<synchronous>, transform_indices = @transform_1, window_bounds = array<i64: 256, 16>}, {pipeline_mode = #tpu.pipeline_mode<synchronous>, transform_indices = @transform_2, window_bounds = array<i64: 1, 16>}, {pipeline_mode = #tpu.pipeline_mode<synchronous>, transform_indices = @transform_3, window_bounds = array<i64: 256, 16>}, {pipeline_mode = #tpu.pipeline_mode<synchronous>, transform_indices = @transform_4, window_bounds = array<i64: 1, 16>}, {pipeline_mode = #tpu.pipeline_mode<synchronous>, transform_indices = @transform_5, window_bounds = array<i64: 8, 16>}, {pipeline_mode = #tpu.pipeline_mode<synchronous>, transform_indices = @transform_6, window_bounds = array<i64: 16, 256>}, {pipeline_mode = #tpu.pipeline_mode<synchronous>, transform_indices = @transform_7, window_bounds = array<i64: 1, 256>}, {pipeline_mode = #tpu.pipeline_mode<synchronous>, transform_indices = @transform_8, window_bounds = array<i64: 8, 16>}, {pipeline_mode = #tpu.pipeline_mode<synchronous>, transform_indices = @transform_9, window_bounds = array<i64: 8, 16>}, {pipeline_mode = #tpu.pipeline_mode<synchronous>, transform_indices = @transform_10, window_bounds = array<i64: 8, 16>}, {pipeline_mode = #tpu.pipeline_mode<synchronous>, transform_indices = @transform_11, window_bounds = array<i64: 8, 256>}]} {
    %c0 = arith.constant 0 : index
    %c0_0 = arith.constant 0 : index
    %0 = vector.load %arg1[%c0, %c0_0] : memref<8x256xbf16, #tpu.memory_space<vmem>>, vector<8x256xbf16>
    %1 = arith.extf %0 : vector<8x256xbf16> to vector<8x256xf32>
    %c0_1 = arith.constant 0 : index
    %c0_2 = arith.constant 0 : index
    %2 = vector.load %arg2[%c0_1, %c0_2] : memref<256x16xf32, #tpu.memory_space<vmem>>, vector<256x16xf32>
    %cst = arith.constant dense<0.000000e+00> : vector<8x16xf32>
    %3 = tpu.matmul %1, %2, %cst {dimension_numbers = #tpu.dot_dimension_numbers<[1], [0], [0], [1], [0, 0, 1, 1], [], []>} : vector<8x256xf32>, vector<256x16xf32>, vector<8x16xf32> -> vector<8x16xf32>
    %c0_3 = arith.constant 0 : index
    %c0_4 = arith.constant 0 : index
    %4 = vector.load %arg3[%c0_3, %c0_4] : memref<1x16xf32, #tpu.memory_space<vmem>>, vector<1x16xf32>
    %5 = vector.broadcast %4 : vector<1x16xf32> to vector<8x16xf32>
    %6 = arith.addf %3, %5 : vector<8x16xf32>
    %c0_5 = arith.constant 0 : index
    %c0_6 = arith.constant 0 : index
    %7 = vector.load %arg4[%c0_5, %c0_6] : memref<256x16xf32, #tpu.memory_space<vmem>>, vector<256x16xf32>
    %cst_7 = arith.constant dense<0.000000e+00> : vector<8x16xf32>
    %8 = tpu.matmul %1, %7, %cst_7 {dimension_numbers = #tpu.dot_dimension_numbers<[1], [0], [0], [1], [0, 0, 1, 1], [], []>} : vector<8x256xf32>, vector<256x16xf32>, vector<8x16xf32> -> vector<8x16xf32>
    %c0_8 = arith.constant 0 : index
    %c0_9 = arith.constant 0 : index
    %9 = vector.load %arg5[%c0_8, %c0_9] : memref<1x16xf32, #tpu.memory_space<vmem>>, vector<1x16xf32>
    %10 = vector.broadcast %9 : vector<1x16xf32> to vector<8x16xf32>
    %11 = arith.addf %8, %10 : vector<8x16xf32>
    %c0_10 = arith.constant 0 : index
    %c0_11 = arith.constant 0 : index
    %12 = vector.load %arg6[%c0_10, %c0_11] : memref<8x16xf32, #tpu.memory_space<vmem>>, vector<8x16xf32>
    %cst_12 = arith.constant 5.000000e-01 : f32
    %13 = vector.broadcast %cst_12 : f32 to vector<8x16xf32>
    %14 = arith.mulf %13, %11 : vector<8x16xf32>
    %15 = math.exp %14 : vector<8x16xf32>
    %16 = arith.mulf %12, %15 : vector<8x16xf32>
    %17 = arith.addf %6, %16 : vector<8x16xf32>
    %c0_13 = arith.constant 0 : index
    %c0_14 = arith.constant 0 : index
    %18 = vector.load %arg10[%c0_13, %c0_14] : memref<8x16xf32, #tpu.memory_space<vmem>>, vector<8x16xf32>
    tpu.vector_store %arg10[%c0_13, %c0_14], %6 {strides = array<i32>} : memref<8x16xf32, #tpu.memory_space<vmem>>, vector<8x16xf32>,
    %c0_15 = arith.constant 0 : index
    %c0_16 = arith.constant 0 : index
    %19 = vector.load %arg11[%c0_15, %c0_16] : memref<8x16xf32, #tpu.memory_space<vmem>>, vector<8x16xf32>
    tpu.vector_store %arg11[%c0_15, %c0_16], %11 {strides = array<i32>} : memref<8x16xf32, #tpu.memory_space<vmem>>, vector<8x16xf32>,
    %c0_17 = arith.constant 0 : index
    %c0_18 = arith.constant 0 : index
    %20 = vector.load %arg9[%c0_17, %c0_18] : memref<8x16xf32, #tpu.memory_space<vmem>>, vector<8x16xf32>
    tpu.vector_store %arg9[%c0_17, %c0_18], %17 {strides = array<i32>} : memref<8x16xf32, #tpu.memory_space<vmem>>, vector<8x16xf32>,
    %c0_19 = arith.constant 0 : index
    %c0_20 = arith.constant 0 : index
    %21 = vector.load %arg7[%c0_19, %c0_20] : memref<16x256xf32, #tpu.memory_space<vmem>>, vector<16x256xf32>
    %cst_21 = arith.constant dense<0.000000e+00> : vector<8x256xf32>
    %22 = tpu.matmul %17, %21, %cst_21 {dimension_numbers = #tpu.dot_dimension_numbers<[1], [0], [0], [1], [0, 0, 1, 1], [], []>} : vector<8x16xf32>, vector<16x256xf32>, vector<8x256xf32> -> vector<8x256xf32>
    %c0_22 = arith.constant 0 : index
    %c0_23 = arith.constant 0 : index
    %23 = vector.load %arg8[%c0_22, %c0_23] : memref<1x256xf32, #tpu.memory_space<vmem>>, vector<1x256xf32>
    %24 = vector.broadcast %23 : vector<1x256xf32> to vector<8x256xf32>
    %25 = arith.addf %22, %24 : vector<8x256xf32>
    %26 = arith.truncf %25 : vector<8x256xf32> to vector<8x256xbf16>
    %c0_24 = arith.constant 0 : index
    %c0_25 = arith.constant 0 : index
    %27 = vector.load %arg12[%c0_24, %c0_25] : memref<8x256xbf16, #tpu.memory_space<vmem>>, vector<8x256xbf16>
    tpu.vector_store %arg12[%c0_24, %c0_25], %26 {strides = array<i32>} : memref<8x256xbf16, #tpu.memory_space<vmem>>, vector<8x256xbf16>,
    return
  }
  func.func @transform_0(%arg0: i32) -> (i32, i32) {
    %c0_i32 = arith.constant 0 : i32
    %c0_i32_0 = arith.constant 0 : i32
    %c0_i32_1 = arith.constant 0 : i32
    return %c0_i32, %c0_i32_0 : i32, i32
  }
  func.func @transform_1(%arg0: i32) -> (i32, i32) {
    %c0_i32 = arith.constant 0 : i32
    %c0_i32_0 = arith.constant 0 : i32
    %c0_i32_1 = arith.constant 0 : i32
    return %c0_i32, %c0_i32_0 : i32, i32
  }
  func.func @transform_2(%arg0: i32) -> (i32, i32) {
    %c0_i32 = arith.constant 0 : i32
    %c0_i32_0 = arith.constant 0 : i32
    %c0_i32_1 = arith.constant 0 : i32
    return %c0_i32, %c0_i32_0 : i32, i32
  }
  func.func @transform_3(%arg0: i32) -> (i32, i32) {
    %c0_i32 = arith.constant 0 : i32
    %c0_i32_0 = arith.constant 0 : i32
    %c0_i32_1 = arith.constant 0 : i32
    return %c0_i32, %c0_i32_0 : i32, i32
  }
  func.func @transform_4(%arg0: i32) -> (i32, i32) {
    %c0_i32 = arith.constant 0 : i32
    %c0_i32_0 = arith.constant 0 : i32
    %c0_i32_1 = arith.constant 0 : i32
    return %c0_i32, %c0_i32_0 : i32, i32
  }
  func.func @transform_5(%arg0: i32) -> (i32, i32) {
    %c0_i32 = arith.constant 0 : i32
    %c0_i32_0 = arith.constant 0 : i32
    %c0_i32_1 = arith.constant 0 : i32
    return %c0_i32, %c0_i32_0 : i32, i32
  }
  func.func @transform_6(%arg0: i32) -> (i32, i32) {
    %c0_i32 = arith.constant 0 : i32
    %c0_i32_0 = arith.constant 0 : i32
    %c0_i32_1 = arith.constant 0 : i32
    return %c0_i32, %c0_i32_0 : i32, i32
  }
  func.func @transform_7(%arg0: i32) -> (i32, i32) {
    %c0_i32 = arith.constant 0 : i32
    %c0_i32_0 = arith.constant 0 : i32
    %c0_i32_1 = arith.constant 0 : i32
    return %c0_i32, %c0_i32_0 : i32, i32
  }
  func.func @transform_8(%arg0: i32) -> (i32, i32) {
    %c0_i32 = arith.constant 0 : i32
    %c0_i32_0 = arith.constant 0 : i32
    %c0_i32_1 = arith.constant 0 : i32
    return %c0_i32, %c0_i32_0 : i32, i32
  }
  func.func @transform_9(%arg0: i32) -> (i32, i32) {
    %c0_i32 = arith.constant 0 : i32
    %c0_i32_0 = arith.constant 0 : i32
    %c0_i32_1 = arith.constant 0 : i32
    return %c0_i32, %c0_i32_0 : i32, i32
  }
  func.func @transform_10(%arg0: i32) -> (i32, i32) {
    %c0_i32 = arith.constant 0 : i32
    %c0_i32_0 = arith.constant 0 : i32
    %c0_i32_1 = arith.constant 0 : i32
    return %c0_i32, %c0_i32_0 : i32, i32
  }
  func.func @transform_11(%arg0: i32) -> (i32, i32) {
    %c0_i32 = arith.constant 0 : i32
    %c0_i32_0 = arith.constant 0 : i32
    %c0_i32_1 = arith.constant 0 : i32
    return %c0_i32, %c0_i32_0 : i32, i32
  }
}

module attributes {stable_mosaic.version = 11 : i64} {
  func.func @_gemm_affine_act_kernel(%arg0: i32, %arg1: memref<24x16xbf16, #tpu.memory_space<vmem>>, %arg2: memref<16x256xbf16, #tpu.memory_space<vmem>>, %arg3: memref<1x256xf32, #tpu.memory_space<vmem>>, %arg4: memref<1x256xf32, #tpu.memory_space<vmem>>, %arg5: memref<24x256xbf16, #tpu.memory_space<vmem>>) attributes {dimension_semantics = [#tpu.dimension_semantics<parallel>], iteration_bounds = array<i64: 1>, scalar_prefetch = 0 : i64, scratch_operands = 0 : i64, tpu.core_type = #tpu.core_type<tc>, window_params = [{transform_indices = @transform_0, window_bounds = array<i64: 24, 16>}, {pipeline_mode = #tpu.pipeline_mode<synchronous>, transform_indices = @transform_1, window_bounds = array<i64: 16, 256>}, {pipeline_mode = #tpu.pipeline_mode<synchronous>, transform_indices = @transform_2, window_bounds = array<i64: 1, 256>}, {pipeline_mode = #tpu.pipeline_mode<synchronous>, transform_indices = @transform_3, window_bounds = array<i64: 1, 256>}, {transform_indices = @transform_4, window_bounds = array<i64: 24, 256>}]} {
    %c0 = arith.constant 0 : index
    %c0_0 = arith.constant 0 : index
    %0 = vector.load %arg1[%c0, %c0_0] : memref<24x16xbf16, #tpu.memory_space<vmem>>, vector<24x16xbf16>
    %c0_1 = arith.constant 0 : index
    %c0_2 = arith.constant 0 : index
    %1 = vector.load %arg2[%c0_1, %c0_2] : memref<16x256xbf16, #tpu.memory_space<vmem>>, vector<16x256xbf16>
    %cst = arith.constant dense<0.000000e+00> : vector<24x256xf32>
    %2 = tpu.matmul %0, %1, %cst {dimension_numbers = #tpu.dot_dimension_numbers<[1], [0], [0], [1], [0, 0, 1, 1], [], []>} : vector<24x16xbf16>, vector<16x256xbf16>, vector<24x256xf32> -> vector<24x256xf32>
    %c0_3 = arith.constant 0 : index
    %c0_4 = arith.constant 0 : index
    %3 = vector.load %arg3[%c0_3, %c0_4] : memref<1x256xf32, #tpu.memory_space<vmem>>, vector<1x256xf32>
    %4 = vector.broadcast %3 : vector<1x256xf32> to vector<24x256xf32>
    %5 = arith.mulf %2, %4 : vector<24x256xf32>
    %c0_5 = arith.constant 0 : index
    %c0_6 = arith.constant 0 : index
    %6 = vector.load %arg4[%c0_5, %c0_6] : memref<1x256xf32, #tpu.memory_space<vmem>>, vector<1x256xf32>
    %7 = vector.broadcast %6 : vector<1x256xf32> to vector<24x256xf32>
    %8 = arith.addf %5, %7 : vector<24x256xf32>
    %cst_7 = arith.constant 0.000000e+00 : f32
    %9 = vector.broadcast %cst_7 : f32 to vector<24x256xf32>
    %10 = arith.cmpf ogt, %8, %9 : vector<24x256xf32>
    %cst_8 = arith.constant 1.000000e-01 : f32
    %11 = vector.broadcast %cst_8 : f32 to vector<24x256xf32>
    %12 = arith.mulf %11, %8 : vector<24x256xf32>
    %13 = arith.select %10, %8, %12 : vector<24x256xi1>, vector<24x256xf32>
    %14 = arith.truncf %13 : vector<24x256xf32> to vector<24x256xbf16>
    %c0_9 = arith.constant 0 : index
    %c0_10 = arith.constant 0 : index
    %15 = vector.load %arg5[%c0_9, %c0_10] : memref<24x256xbf16, #tpu.memory_space<vmem>>, vector<24x256xbf16>
    tpu.vector_store %arg5[%c0_9, %c0_10], %14 {strides = array<i32>} : memref<24x256xbf16, #tpu.memory_space<vmem>>, vector<24x256xbf16>,
    return
  }
  func.func @transform_0(%arg0: i32) -> (i32, i32) {
    %c0_i32 = arith.constant 0 : i32
    %c0_i32_0 = arith.constant 0 : i32
    return %arg0, %c0_i32 : i32, i32
  }
  func.func @transform_1(%arg0: i32) -> (i32, i32) {
    %c0_i32 = arith.constant 0 : i32
    %c0_i32_0 = arith.constant 0 : i32
    %c0_i32_1 = arith.constant 0 : i32
    return %c0_i32, %c0_i32_0 : i32, i32
  }
  func.func @transform_2(%arg0: i32) -> (i32, i32) {
    %c0_i32 = arith.constant 0 : i32
    %c0_i32_0 = arith.constant 0 : i32
    %c0_i32_1 = arith.constant 0 : i32
    return %c0_i32, %c0_i32_0 : i32, i32
  }
  func.func @transform_3(%arg0: i32) -> (i32, i32) {
    %c0_i32 = arith.constant 0 : i32
    %c0_i32_0 = arith.constant 0 : i32
    %c0_i32_1 = arith.constant 0 : i32
    return %c0_i32, %c0_i32_0 : i32, i32
  }
  func.func @transform_4(%arg0: i32) -> (i32, i32) {
    %c0_i32 = arith.constant 0 : i32
    %c0_i32_0 = arith.constant 0 : i32
    return %arg0, %c0_i32 : i32, i32
  }
}

module attributes {stable_mosaic.version = 11 : i64} {
  func.func @_gemm_affine_act_kernel(%arg0: i32, %arg1: memref<56x256xbf16, #tpu.memory_space<vmem>>, %arg2: memref<256x256xbf16, #tpu.memory_space<vmem>>, %arg3: memref<1x256xf32, #tpu.memory_space<vmem>>, %arg4: memref<1x256xf32, #tpu.memory_space<vmem>>, %arg5: memref<56x256xbf16, #tpu.memory_space<vmem>>) attributes {dimension_semantics = [#tpu.dimension_semantics<parallel>], iteration_bounds = array<i64: 1>, scalar_prefetch = 0 : i64, scratch_operands = 0 : i64, tpu.core_type = #tpu.core_type<tc>, window_params = [{transform_indices = @transform_0, window_bounds = array<i64: 56, 256>}, {pipeline_mode = #tpu.pipeline_mode<synchronous>, transform_indices = @transform_1, window_bounds = array<i64: 256, 256>}, {pipeline_mode = #tpu.pipeline_mode<synchronous>, transform_indices = @transform_2, window_bounds = array<i64: 1, 256>}, {pipeline_mode = #tpu.pipeline_mode<synchronous>, transform_indices = @transform_3, window_bounds = array<i64: 1, 256>}, {transform_indices = @transform_4, window_bounds = array<i64: 56, 256>}]} {
    %c0 = arith.constant 0 : index
    %c0_0 = arith.constant 0 : index
    %0 = vector.load %arg1[%c0, %c0_0] : memref<56x256xbf16, #tpu.memory_space<vmem>>, vector<56x256xbf16>
    %c0_1 = arith.constant 0 : index
    %c0_2 = arith.constant 0 : index
    %1 = vector.load %arg2[%c0_1, %c0_2] : memref<256x256xbf16, #tpu.memory_space<vmem>>, vector<256x256xbf16>
    %cst = arith.constant dense<0.000000e+00> : vector<56x256xf32>
    %2 = tpu.matmul %0, %1, %cst {dimension_numbers = #tpu.dot_dimension_numbers<[1], [0], [0], [1], [0, 0, 1, 1], [], []>} : vector<56x256xbf16>, vector<256x256xbf16>, vector<56x256xf32> -> vector<56x256xf32>
    %c0_3 = arith.constant 0 : index
    %c0_4 = arith.constant 0 : index
    %3 = vector.load %arg3[%c0_3, %c0_4] : memref<1x256xf32, #tpu.memory_space<vmem>>, vector<1x256xf32>
    %4 = vector.broadcast %3 : vector<1x256xf32> to vector<56x256xf32>
    %5 = arith.mulf %2, %4 : vector<56x256xf32>
    %c0_5 = arith.constant 0 : index
    %c0_6 = arith.constant 0 : index
    %6 = vector.load %arg4[%c0_5, %c0_6] : memref<1x256xf32, #tpu.memory_space<vmem>>, vector<1x256xf32>
    %7 = vector.broadcast %6 : vector<1x256xf32> to vector<56x256xf32>
    %8 = arith.addf %5, %7 : vector<56x256xf32>
    %cst_7 = arith.constant 0.000000e+00 : f32
    %9 = vector.broadcast %cst_7 : f32 to vector<56x256xf32>
    %10 = arith.cmpf ogt, %8, %9 : vector<56x256xf32>
    %cst_8 = arith.constant 1.000000e-01 : f32
    %11 = vector.broadcast %cst_8 : f32 to vector<56x256xf32>
    %12 = arith.mulf %11, %8 : vector<56x256xf32>
    %13 = arith.select %10, %8, %12 : vector<56x256xi1>, vector<56x256xf32>
    %14 = arith.truncf %13 : vector<56x256xf32> to vector<56x256xbf16>
    %c0_9 = arith.constant 0 : index
    %c0_10 = arith.constant 0 : index
    %15 = vector.load %arg5[%c0_9, %c0_10] : memref<56x256xbf16, #tpu.memory_space<vmem>>, vector<56x256xbf16>
    tpu.vector_store %arg5[%c0_9, %c0_10], %14 {strides = array<i32>} : memref<56x256xbf16, #tpu.memory_space<vmem>>, vector<56x256xbf16>,
    return
  }
  func.func @transform_0(%arg0: i32) -> (i32, i32) {
    %c0_i32 = arith.constant 0 : i32
    %c0_i32_0 = arith.constant 0 : i32
    return %arg0, %c0_i32 : i32, i32
  }
  func.func @transform_1(%arg0: i32) -> (i32, i32) {
    %c0_i32 = arith.constant 0 : i32
    %c0_i32_0 = arith.constant 0 : i32
    %c0_i32_1 = arith.constant 0 : i32
    return %c0_i32, %c0_i32_0 : i32, i32
  }
  func.func @transform_2(%arg0: i32) -> (i32, i32) {
    %c0_i32 = arith.constant 0 : i32
    %c0_i32_0 = arith.constant 0 : i32
    %c0_i32_1 = arith.constant 0 : i32
    return %c0_i32, %c0_i32_0 : i32, i32
  }
  func.func @transform_3(%arg0: i32) -> (i32, i32) {
    %c0_i32 = arith.constant 0 : i32
    %c0_i32_0 = arith.constant 0 : i32
    %c0_i32_1 = arith.constant 0 : i32
    return %c0_i32, %c0_i32_0 : i32, i32
  }
  func.func @transform_4(%arg0: i32) -> (i32, i32) {
    %c0_i32 = arith.constant 0 : i32
    %c0_i32_0 = arith.constant 0 : i32
    return %arg0, %c0_i32 : i32, i32
  }
}

module attributes {stable_mosaic.version = 11 : i64} {
  func.func @_gemm_affine_act_kernel(%arg0: i32, %arg1: memref<168x256xbf16, #tpu.memory_space<vmem>>, %arg2: memref<256x128xbf16, #tpu.memory_space<vmem>>, %arg3: memref<1x128xf32, #tpu.memory_space<vmem>>, %arg4: memref<1x128xf32, #tpu.memory_space<vmem>>, %arg5: memref<168x128xbf16, #tpu.memory_space<vmem>>) attributes {dimension_semantics = [#tpu.dimension_semantics<parallel>], iteration_bounds = array<i64: 1>, scalar_prefetch = 0 : i64, scratch_operands = 0 : i64, tpu.core_type = #tpu.core_type<tc>, window_params = [{transform_indices = @transform_0, window_bounds = array<i64: 168, 256>}, {pipeline_mode = #tpu.pipeline_mode<synchronous>, transform_indices = @transform_1, window_bounds = array<i64: 256, 128>}, {pipeline_mode = #tpu.pipeline_mode<synchronous>, transform_indices = @transform_2, window_bounds = array<i64: 1, 128>}, {pipeline_mode = #tpu.pipeline_mode<synchronous>, transform_indices = @transform_3, window_bounds = array<i64: 1, 128>}, {transform_indices = @transform_4, window_bounds = array<i64: 168, 128>}]} {
    %c0 = arith.constant 0 : index
    %c0_0 = arith.constant 0 : index
    %0 = vector.load %arg1[%c0, %c0_0] : memref<168x256xbf16, #tpu.memory_space<vmem>>, vector<168x256xbf16>
    %c0_1 = arith.constant 0 : index
    %c0_2 = arith.constant 0 : index
    %1 = vector.load %arg2[%c0_1, %c0_2] : memref<256x128xbf16, #tpu.memory_space<vmem>>, vector<256x128xbf16>
    %cst = arith.constant dense<0.000000e+00> : vector<168x128xf32>
    %2 = tpu.matmul %0, %1, %cst {dimension_numbers = #tpu.dot_dimension_numbers<[1], [0], [0], [1], [0, 0, 1, 1], [], []>} : vector<168x256xbf16>, vector<256x128xbf16>, vector<168x128xf32> -> vector<168x128xf32>
    %c0_3 = arith.constant 0 : index
    %c0_4 = arith.constant 0 : index
    %3 = vector.load %arg3[%c0_3, %c0_4] : memref<1x128xf32, #tpu.memory_space<vmem>>, vector<1x128xf32>
    %4 = vector.broadcast %3 : vector<1x128xf32> to vector<168x128xf32>
    %5 = arith.mulf %2, %4 : vector<168x128xf32>
    %c0_5 = arith.constant 0 : index
    %c0_6 = arith.constant 0 : index
    %6 = vector.load %arg4[%c0_5, %c0_6] : memref<1x128xf32, #tpu.memory_space<vmem>>, vector<1x128xf32>
    %7 = vector.broadcast %6 : vector<1x128xf32> to vector<168x128xf32>
    %8 = arith.addf %5, %7 : vector<168x128xf32>
    %cst_7 = arith.constant 0.000000e+00 : f32
    %9 = vector.broadcast %cst_7 : f32 to vector<168x128xf32>
    %10 = arith.cmpf ogt, %8, %9 : vector<168x128xf32>
    %cst_8 = arith.constant 1.000000e-01 : f32
    %11 = vector.broadcast %cst_8 : f32 to vector<168x128xf32>
    %12 = arith.mulf %11, %8 : vector<168x128xf32>
    %13 = arith.select %10, %8, %12 : vector<168x128xi1>, vector<168x128xf32>
    %14 = arith.truncf %13 : vector<168x128xf32> to vector<168x128xbf16>
    %c0_9 = arith.constant 0 : index
    %c0_10 = arith.constant 0 : index
    %15 = vector.load %arg5[%c0_9, %c0_10] : memref<168x128xbf16, #tpu.memory_space<vmem>>, vector<168x128xbf16>
    tpu.vector_store %arg5[%c0_9, %c0_10], %14 {strides = array<i32>} : memref<168x128xbf16, #tpu.memory_space<vmem>>, vector<168x128xbf16>,
    return
  }
  func.func @transform_0(%arg0: i32) -> (i32, i32) {
    %c0_i32 = arith.constant 0 : i32
    %c0_i32_0 = arith.constant 0 : i32
    return %arg0, %c0_i32 : i32, i32
  }
  func.func @transform_1(%arg0: i32) -> (i32, i32) {
    %c0_i32 = arith.constant 0 : i32
    %c0_i32_0 = arith.constant 0 : i32
    %c0_i32_1 = arith.constant 0 : i32
    return %c0_i32, %c0_i32_0 : i32, i32
  }
  func.func @transform_2(%arg0: i32) -> (i32, i32) {
    %c0_i32 = arith.constant 0 : i32
    %c0_i32_0 = arith.constant 0 : i32
    %c0_i32_1 = arith.constant 0 : i32
    return %c0_i32, %c0_i32_0 : i32, i32
  }
  func.func @transform_3(%arg0: i32) -> (i32, i32) {
    %c0_i32 = arith.constant 0 : i32
    %c0_i32_0 = arith.constant 0 : i32
    %c0_i32_1 = arith.constant 0 : i32
    return %c0_i32, %c0_i32_0 : i32, i32
  }
  func.func @transform_4(%arg0: i32) -> (i32, i32) {
    %c0_i32 = arith.constant 0 : i32
    %c0_i32_0 = arith.constant 0 : i32
    return %arg0, %c0_i32 : i32, i32
  }
}

module attributes {stable_mosaic.version = 11 : i64} {
  func.func @_gemm_affine_act_kernel(%arg0: i32, %arg1: memref<256x128xbf16, #tpu.memory_space<vmem>>, %arg2: memref<128x12xbf16, #tpu.memory_space<vmem>>, %arg3: memref<1x12xf32, #tpu.memory_space<vmem>>, %arg4: memref<1x12xf32, #tpu.memory_space<vmem>>, %arg5: memref<256x12xf32, #tpu.memory_space<vmem>>) attributes {dimension_semantics = [#tpu.dimension_semantics<parallel>], iteration_bounds = array<i64: 2>, scalar_prefetch = 0 : i64, scratch_operands = 0 : i64, tpu.core_type = #tpu.core_type<tc>, window_params = [{transform_indices = @transform_0, window_bounds = array<i64: 256, 128>}, {pipeline_mode = #tpu.pipeline_mode<synchronous>, transform_indices = @transform_1, window_bounds = array<i64: 128, 12>}, {pipeline_mode = #tpu.pipeline_mode<synchronous>, transform_indices = @transform_2, window_bounds = array<i64: 1, 12>}, {pipeline_mode = #tpu.pipeline_mode<synchronous>, transform_indices = @transform_3, window_bounds = array<i64: 1, 12>}, {transform_indices = @transform_4, window_bounds = array<i64: 256, 12>}]} {
    %c0 = arith.constant 0 : index
    %c0_0 = arith.constant 0 : index
    %0 = vector.load %arg1[%c0, %c0_0] : memref<256x128xbf16, #tpu.memory_space<vmem>>, vector<256x128xbf16>
    %c0_1 = arith.constant 0 : index
    %c0_2 = arith.constant 0 : index
    %1 = vector.load %arg2[%c0_1, %c0_2] : memref<128x12xbf16, #tpu.memory_space<vmem>>, vector<128x12xbf16>
    %cst = arith.constant dense<0.000000e+00> : vector<256x12xf32>
    %2 = tpu.matmul %0, %1, %cst {dimension_numbers = #tpu.dot_dimension_numbers<[1], [0], [0], [1], [0, 0, 1, 1], [], []>} : vector<256x128xbf16>, vector<128x12xbf16>, vector<256x12xf32> -> vector<256x12xf32>
    %c0_3 = arith.constant 0 : index
    %c0_4 = arith.constant 0 : index
    %3 = vector.load %arg3[%c0_3, %c0_4] : memref<1x12xf32, #tpu.memory_space<vmem>>, vector<1x12xf32>
    %4 = vector.broadcast %3 : vector<1x12xf32> to vector<256x12xf32>
    %5 = arith.mulf %2, %4 : vector<256x12xf32>
    %c0_5 = arith.constant 0 : index
    %c0_6 = arith.constant 0 : index
    %6 = vector.load %arg4[%c0_5, %c0_6] : memref<1x12xf32, #tpu.memory_space<vmem>>, vector<1x12xf32>
    %7 = vector.broadcast %6 : vector<1x12xf32> to vector<256x12xf32>
    %8 = arith.addf %5, %7 : vector<256x12xf32>
    %9 = math.absf %8 : vector<256x12xf32>
    %cst_7 = arith.constant 0.000000e+00 : f32
    %10 = vector.broadcast %cst_7 : f32 to vector<256x12xf32>
    %11 = arith.subf %10, %9 : vector<256x12xf32>
    %12 = math.exp %11 : vector<256x12xf32>
    %cst_8 = arith.constant 0.000000e+00 : f32
    %13 = vector.broadcast %cst_8 : f32 to vector<256x12xf32>
    %14 = arith.cmpf oge, %8, %13 : vector<256x12xf32>
    %cst_9 = arith.constant 1.000000e+00 : f32
    %15 = vector.broadcast %cst_9 : f32 to vector<256x12xf32>
    %16 = arith.select %14, %15, %12 : vector<256x12xi1>, vector<256x12xf32>
    %cst_10 = arith.constant 1.000000e+00 : f32
    %17 = vector.broadcast %cst_10 : f32 to vector<256x12xf32>
    %18 = arith.addf %17, %12 : vector<256x12xf32>
    %19 = arith.divf %16, %18 : vector<256x12xf32>
    %c0_11 = arith.constant 0 : index
    %c0_12 = arith.constant 0 : index
    %20 = vector.load %arg5[%c0_11, %c0_12] : memref<256x12xf32, #tpu.memory_space<vmem>>, vector<256x12xf32>
    tpu.vector_store %arg5[%c0_11, %c0_12], %19 {strides = array<i32>} : memref<256x12xf32, #tpu.memory_space<vmem>>, vector<256x12xf32>,
    return
  }
  func.func @transform_0(%arg0: i32) -> (i32, i32) {
    %c0_i32 = arith.constant 0 : i32
    %c0_i32_0 = arith.constant 0 : i32
    return %arg0, %c0_i32 : i32, i32
  }
  func.func @transform_1(%arg0: i32) -> (i32, i32) {
    %c0_i32 = arith.constant 0 : i32
    %c0_i32_0 = arith.constant 0 : i32
    %c0_i32_1 = arith.constant 0 : i32
    return %c0_i32, %c0_i32_0 : i32, i32
  }
  func.func @transform_2(%arg0: i32) -> (i32, i32) {
    %c0_i32 = arith.constant 0 : i32
    %c0_i32_0 = arith.constant 0 : i32
    %c0_i32_1 = arith.constant 0 : i32
    return %c0_i32, %c0_i32_0 : i32, i32
  }
  func.func @transform_3(%arg0: i32) -> (i32, i32) {
    %c0_i32 = arith.constant 0 : i32
    %c0_i32_0 = arith.constant 0 : i32
    %c0_i32_1 = arith.constant 0 : i32
    return %c0_i32, %c0_i32_0 : i32, i32
  }
  func.func @transform_4(%arg0: i32) -> (i32, i32) {
    %c0_i32 = arith.constant 0 : i32
    %c0_i32_0 = arith.constant 0 : i32
    return %arg0, %c0_i32 : i32, i32
  }
}

</mosaic_0001>

<llo_original>
// kernel: vae_forward.9
$region0: #{vae_forward.9}
  #allocation0 [shape = 'u32[]', space=smem, size = 0x4, offset = 0x4, fixed_abs, tag = 'smem constant byte address 0x4 - core index']
  #allocation1 [shape = 'u32[144,128]{1,0:T(1,128)}', space=vmem, size = 0x12000, scoped, tag = 'internal scratch']
  %s0 = inlined_call_operand.vmem [shape: bf16[512,32], index: 0, kind: input, shape index: {}]
  %s1 = inlined_call_operand.vmem [shape: bf16[32,32], index: 1, kind: input, shape index: {}]
  %s2 = inlined_call_operand.vmem [shape: f32[1,32], index: 2, kind: input, shape index: {}]
  %s3 = inlined_call_operand.vmem [shape: f32[1,32], index: 3, kind: input, shape index: {}]
  %s4 = inlined_call_operand.vmem [shape: bf16[512,32], index: 4, kind: output, shape index: {}]
  %s5 = sld [smem:[#allocation0]]
  $region49: #{vae_forward.9} parent=0
    _
  %s7 = ssub.s32 1, %s5
  %s8 = scalar_select 0, %s7, %s5
  loop: start=0, step=1, limit=4
  $region2: #{vae_forward.9} parent=0 // loop_pre_header
    _
  $region3: #{vae_forward.9} parent=0 // loop_header
    %s10 = sphi 0, %s14
    %p11 = scmp.ge.s32.totalorder %s10, 4
    %s20 = sphi 0, %s22
    %s23 = sphi 0, %s20
    %s24 = sphi 0, %s23
    %s40 = sphi 0, %s24
    %s44 = sphi 0, %s44
    %s46 = sphi 0, %s44
    %s47 = sphi 0, %s46
    %s61 = sphi 0, %s47
    %s65 = sphi 0, %s65
    %s67 = sphi 0, %s65
    %s68 = sphi 0, %s67
    %s82 = sphi 0, %s68
    %s86 = sphi 0, %s86
    %s88 = sphi 0, %s86
    %s89 = sphi 0, %s88
    %s103 = sphi 0, %s89
    %s109 = sphi 0, %s111
    %s112 = sphi 0, %s109
    %s113 = sphi 0, %s112
    %s129 = sphi 0, %s113
  $region4: #{vae_forward.9} parent=0 // loop_header_branch
    %13 = sbr.rel (%p11) target = $region8
  $region5: #{vae_forward.9} parent=0 // loop_body
    %s15 = ssub.s32 %s10, 1
    %s16 = ssub.s32 %s10, 2
    %s17 = sadd.s32 %s10, 1
    %s18 = ssub.s32 %s10, %s17
    %p19 = scmp.eq.s32.totalorder %s18, 0
    %s21 = sadd.s32 %s20, 1
    %s22 = scalar_select %p19, %s20, %s21
    %p25 = pneg %p19
    %p26 = scmp.eq.s32.totalorder %s10, 1
    %p27 = por %p25, %p26
    %p28 = scmp.ne.s32.totalorder %s20, %s23
    %p29 = scmp.eq.s32.totalorder %s10, 0
    %p30 = por %p28, %p29
    %p31 = scmp.ne.s32.totalorder %s20, %s23
    %p32 = scmp.eq.s32.totalorder %s15, 1
    %p33 = por %p31, %p32
    %p34 = scmp.ne.s32.totalorder %s23, %s24
    %p35 = scmp.eq.s32.totalorder %s15, 0
    %p36 = por %p34, %p35
    %p37 = scmp.ne.s32.totalorder %s23, %s24
    %p38 = scmp.eq.s32.totalorder %s16, 1
    %p39 = por %p37, %p38
    %p41 = scmp.ne.s32.totalorder %s24, %s40
    %p42 = scmp.eq.s32.totalorder %s16, 0
    %p43 = por %p41, %p42
    %s45 = sadd.s32 %s44, 1
    %p48 = scmp.eq.s32.totalorder %s10, 1
    %p49 = scmp.ne.s32.totalorder %s44, %s46
    %p50 = scmp.eq.s32.totalorder %s10, 0
    %p51 = por %p49, %p50
    %p52 = scmp.ne.s32.totalorder %s44, %s46
    %p53 = scmp.eq.s32.totalorder %s15, 1
    %p54 = por %p52, %p53
    %p55 = scmp.ne.s32.totalorder %s46, %s47
    %p56 = scmp.eq.s32.totalorder %s15, 0
    %p57 = por %p55, %p56
    %p58 = scmp.ne.s32.totalorder %s46, %s47
    %p59 = scmp.eq.s32.totalorder %s16, 1
    %p60 = por %p58, %p59
    %p62 = scmp.ne.s32.totalorder %s47, %s61
    %p63 = scmp.eq.s32.totalorder %s16, 0
    %p64 = por %p62, %p63
    %s66 = sadd.s32 %s65, 1
    %p69 = scmp.eq.s32.totalorder %s10, 1
    %p70 = scmp.ne.s32.totalorder %s65, %s67
    %p71 = scmp.eq.s32.totalorder %s10, 0
    %p72 = por %p70, %p71
    %p73 = scmp.ne.s32.totalorder %s65, %s67
    %p74 = scmp.eq.s32.totalorder %s15, 1
    %p75 = por %p73, %p74
    %p76 = scmp.ne.s32.totalorder %s67, %s68
    %p77 = scmp.eq.s32.totalorder %s15, 0
    %p78 = por %p76, %p77
    %p79 = scmp.ne.s32.totalorder %s67, %s68
    %p80 = scmp.eq.s32.totalorder %s16, 1
    %p81 = por %p79, %p80
    %p83 = scmp.ne.s32.totalorder %s68, %s82
    %p84 = scmp.eq.s32.totalorder %s16, 0
    %p85 = por %p83, %p84
    %s87 = sadd.s32 %s86, 1
    %p90 = scmp.eq.s32.totalorder %s10, 1
    %p91 = scmp.ne.s32.totalorder %s86, %s88
    %p92 = scmp.eq.s32.totalorder %s10, 0
    %p93 = por %p91, %p92
    %p94 = scmp.ne.s32.totalorder %s86, %s88
    %p95 = scmp.eq.s32.totalorder %s15, 1
    %p96 = por %p94, %p95
    %p97 = scmp.ne.s32.totalorder %s88, %s89
    %p98 = scmp.eq.s32.totalorder %s15, 0
    %p99 = por %p97, %p98
    %p100 = scmp.ne.s32.totalorder %s88, %s89
    %p101 = scmp.eq.s32.totalorder %s16, 1
    %p102 = por %p100, %p101
    %p104 = scmp.ne.s32.totalorder %s89, %s103
    %p105 = scmp.eq.s32.totalorder %s16, 0
    %p106 = por %p104, %p105
    %s107 = ssub.s32 %s10, %s17
    %p108 = scmp.eq.s32.totalorder %s107, 0
    %s110 = sadd.s32 %s109, 1
    %s111 = scalar_select %p108, %s109, %s110
    %p114 = pneg %p108
    %p115 = scmp.eq.s32.totalorder %s10, 1
    %p116 = por %p114, %p115
    %p117 = scmp.ne.s32.totalorder %s109, %s112
    %p118 = scmp.eq.s32.totalorder %s10, 0
    %p119 = por %p117, %p118
    %p120 = scmp.ne.s32.totalorder %s109, %s112
    %p121 = scmp.eq.s32.totalorder %s15, 1
    %p122 = por %p120, %p121
    %p123 = scmp.ne.s32.totalorder %s112, %s113
    %p124 = scmp.eq.s32.totalorder %s15, 0
    %p125 = por %p123, %p124
    %p126 = scmp.ne.s32.totalorder %s112, %s113
    %p127 = scmp.eq.s32.totalorder %s16, 1
    %p128 = por %p126, %p127
    %p130 = scmp.ne.s32.totalorder %s113, %s129
    %p131 = scmp.eq.s32.totalorder %s16, 0
    %p132 = por %p130, %p131
    %p133 = scmp.le.s32.totalorder 1, %s10
    %p134 = scmp.lt.s32.totalorder %s10, 3
    %p135 = pnand %p133, %p134
    %p136 = pneg %p135
    // Predicated region
    $region9: #{vae_forward.9} parent=5 // pred_check
      _
    $region10: #{vae_forward.9} parent=5 // pred_check_branch
      %138 = sbr.rel (%p135) target = $region12
    $region11: #{vae_forward.9} parent=5 // pred_region
      %s139 = ssub.s32 %s10, 1
      // Predicated region
      $region13: #{vae_forward.9} parent=11 // pred_check
        %p140 = pneg %p57
      $region14: #{vae_forward.9} parent=11 // pred_check_branch
        %142 = sbr.rel (%p140) target = $region16
      $region15: #{vae_forward.9} parent=11 // pred_region
        _
      $region16: #{vae_forward.9} parent=11 // pred_fallthru
        _
      // Predicated region
      $region17: #{vae_forward.9} parent=11 // pred_check
        %p143 = pneg %p78
      $region18: #{vae_forward.9} parent=11 // pred_check_branch
        %145 = sbr.rel (%p143) target = $region20
      $region19: #{vae_forward.9} parent=11 // pred_region
        _
      $region20: #{vae_forward.9} parent=11 // pred_fallthru
        _
      // Predicated region
      $region21: #{vae_forward.9} parent=11 // pred_check
        %p146 = pneg %p99
      $region22: #{vae_forward.9} parent=11 // pred_check_branch
        %148 = sbr.rel (%p146) target = $region24
      $region23: #{vae_forward.9} parent=11 // pred_region
        _
      $region24: #{vae_forward.9} parent=11 // pred_fallthru
        _
    $region12: #{vae_forward.9} parent=5 // pred_fallthru
      _
    %p149 = scmp.lt.s32.totalorder %s10, 2
    // Predicated region
    $region25: #{vae_forward.9} parent=5 // pred_check
      %p150 = pneg %p149
    $region26: #{vae_forward.9} parent=5 // pred_check_branch
      %152 = sbr.rel (%p150) target = $region28
    $region27: #{vae_forward.9} parent=5 // pred_region
      // Predicated region
      $region29: #{vae_forward.9} parent=27 // pred_check
        %p153 = pneg %p30
      $region30: #{vae_forward.9} parent=27 // pred_check_branch
        %155 = sbr.rel (%p153) target = $region32
      $region31: #{vae_forward.9} parent=27 // pred_region
        %s156 = smul.u32 32, %s10
        %p157 = scmp.lt.s32.totalorder %s156, 63
        %s158 = scalar_select %p157, %s156, 63
        %s159 = smul.addr %s158, 4
        %s160 = scalar_lea.vmem %s0, %s159
        %s161 = smul.u32 32, %s10
      $region32: #{vae_forward.9} parent=27 // pred_fallthru
        _
    $region28: #{vae_forward.9} parent=5 // pred_fallthru
      _
    %p162 = scmp.le.s32.totalorder 1, %s10
    %p163 = scmp.lt.s32.totalorder %s10, 3
    %p164 = pnand %p162, %p163
    %p165 = pneg %p164
    // Predicated region
    $region33: #{vae_forward.9} parent=5 // pred_check
      _
    $region34: #{vae_forward.9} parent=5 // pred_check_branch
      %167 = sbr.rel (%p164) target = $region36
    $region35: #{vae_forward.9} parent=5 // pred_region
      %s168 = ssub.s32 %s10, 1
      %s169 = smul.u32 32, %s15
      %p170 = scmp.lt.s32.totalorder %s169, 63
      %s171 = scalar_select %p170, %s169, 63
      %s172 = smul.addr %s171, 4
      %s173 = scalar_lea.vmem %s0, %s172
      %p174 = pneg %p36
      %p175 = pneg %p33
      %p176 = pneg %p57
      %p177 = pneg %p54
      %p178 = pneg %p78
      %p179 = pneg %p75
      %p180 = pneg %p99
      %p181 = pneg %p96
      %p182 = pneg %p125
      %p183 = pneg %p122
      %s184 = smul.u32 32, %s15
      %p185 = scmp.lt.s32.totalorder %s184, 63
      %s186 = scalar_select %p185, %s184, 63
      %s187 = smul.addr %s186, 4
      %s188 = scalar_lea.vmem %s4, %s187
      %s189 = smul.u32 32, %s15
      %p190 = scmp.lt.s32.totalorder %s189, 63
      %s191 = scalar_select %p190, %s189, 63
      %s192 = smul.addr %s191, 4
      %s193 = scalar_lea.vmem %s0, %s192
      %s194 = smul.u32 32, %s15
      %s195 = smul.u32 32, %s15
      %p196 = scmp.lt.s32.totalorder %s195, 63
      %s197 = scalar_select %p196, %s195, 63
      %s198 = smul.addr %s197, 4
      %s199 = scalar_lea.vmem %s4, %s198
      %s200 = smul.u32 32, %s15
      %v202 = vld [vmem:[%s193] sm:$0xf]
      %v203 = vld [vmem:[%s193 + $0x4] sm:$0xf]
      %v204 = vld [vmem:[%s193 + $0x8] sm:$0xf]
      %v205 = vld [vmem:[%s193 + $0xc] sm:$0xf]
      %v206 = vld [vmem:[%s193 + $0x10] sm:$0xf]
      %v207 = vld [vmem:[%s193 + $0x14] sm:$0xf]
      %v208 = vld [vmem:[%s193 + $0x18] sm:$0xf]
      %v209 = vld [vmem:[%s193 + $0x1c] sm:$0xf]
      %v210 = vld [vmem:[%s193 + $0x20] sm:$0xf]
      %v211 = vld [vmem:[%s193 + $0x24] sm:$0xf]
      %v212 = vld [vmem:[%s193 + $0x28] sm:$0xf]
      %v213 = vld [vmem:[%s193 + $0x2c] sm:$0xf]
      %v214 = vld [vmem:[%s193 + $0x30] sm:$0xf]
      %v215 = vld [vmem:[%s193 + $0x34] sm:$0xf]
      %v216 = vld [vmem:[%s193 + $0x38] sm:$0xf]
      %v217 = vld [vmem:[%s193 + $0x3c] sm:$0xf]
      %v218 = vld [vmem:[%s193 + $0x40] sm:$0xf]
      %v219 = vld [vmem:[%s193 + $0x44] sm:$0xf]
      %v220 = vld [vmem:[%s193 + $0x48] sm:$0xf]
      %v221 = vld [vmem:[%s193 + $0x4c] sm:$0xf]
      %v222 = vld [vmem:[%s193 + $0x50] sm:$0xf]
      %v223 = vld [vmem:[%s193 + $0x54] sm:$0xf]
      %v224 = vld [vmem:[%s193 + $0x58] sm:$0xf]
      %v225 = vld [vmem:[%s193 + $0x5c] sm:$0xf]
      %v226 = vld [vmem:[%s193 + $0x60] sm:$0xf]
      %v227 = vld [vmem:[%s193 + $0x64] sm:$0xf]
      %v228 = vld [vmem:[%s193 + $0x68] sm:$0xf]
      %v229 = vld [vmem:[%s193 + $0x6c] sm:$0xf]
      %v230 = vld [vmem:[%s193 + $0x70] sm:$0xf]
      %v231 = vld [vmem:[%s193 + $0x74] sm:$0xf]
      %v232 = vld [vmem:[%s193 + $0x78] sm:$0xf]
      %v233 = vld [vmem:[%s193 + $0x7c] sm:$0xf]
      %v234 = vld [vmem:[%s1] sm:$0xf]
      %v235 = vld [vmem:[%s1 + $0x4] sm:$0xf]
      %v236 = vld [vmem:[%s1 + $0x8] sm:$0xf]
      %v237 = vld [vmem:[%s1 + $0xc] sm:$0xf]
      %v270 = vunpack.c.l.b16 %v202
      %v271 = vunpack.c.l.b16 %v203
      %v272 = vunpack.c.l.b16 %v204
      %v273 = vunpack.c.l.b16 %v205
      %v274 = vunpack.c.l.b16 %v206
      %v275 = vunpack.c.l.b16 %v207
      %v276 = vunpack.c.l.b16 %v208
      %v277 = vunpack.c.l.b16 %v209
      %v278 = vunpack.c.l.b16 %v210
      %v279 = vunpack.c.l.b16 %v211
      %v280 = vunpack.c.l.b16 %v212
      %v281 = vunpack.c.l.b16 %v213
      %v282 = vunpack.c.l.b16 %v214
      %v283 = vunpack.c.l.b16 %v215
      %v284 = vunpack.c.l.b16 %v216
      %v285 = vunpack.c.l.b16 %v217
      %v286 = vunpack.c.l.b16 %v218
      %v287 = vunpack.c.l.b16 %v219
      %v288 = vunpack.c.l.b16 %v220
      %v289 = vunpack.c.l.b16 %v221
      %v290 = vunpack.c.l.b16 %v222
      %v291 = vunpack.c.l.b16 %v223
      %v292 = vunpack.c.l.b16 %v224
      %v293 = vunpack.c.l.b16 %v225
      %v294 = vunpack.c.l.b16 %v226
      %v295 = vunpack.c.l.b16 %v227
      %v296 = vunpack.c.l.b16 %v228
      %v297 = vunpack.c.l.b16 %v229
      %v298 = vunpack.c.l.b16 %v230
      %v299 = vunpack.c.l.b16 %v231
      %v300 = vunpack.c.l.b16 %v232
      %v301 = vunpack.c.l.b16 %v233
      %v302 = vpack.c.b16 %v271, %v270
      %v303 = vpack.c.b16 %v273, %v272
      %v304 = vpack.c.b16 %v275, %v274
      %v305 = vpack.c.b16 %v277, %v276
      %v306 = vpack.c.b16 %v279, %v278
      %v307 = vpack.c.b16 %v281, %v280
      %v308 = vpack.c.b16 %v283, %v282
      %v309 = vpack.c.b16 %v285, %v284
      %v310 = vpack.c.b16 %v287, %v286
      %v311 = vpack.c.b16 %v289, %v288
      %v312 = vpack.c.b16 %v291, %v290
      %v313 = vpack.c.b16 %v293, %v292
      %v314 = vpack.c.b16 %v295, %v294
      %v315 = vpack.c.b16 %v297, %v296
      %v316 = vpack.c.b16 %v299, %v298
      %v317 = vpack.c.b16 %v301, %v300
      %v322 = vunpack.c.l.b16 %v234
      %v323 = vunpack.c.l.b16 %v235
      %v324 = vunpack.c.l.b16 %v236
      %v325 = vunpack.c.l.b16 %v237
      %v326 = vpack.c.b16 %v323, %v322
      %v327 = vpack.c.b16 %v325, %v324
      %vm330 = vcmask 261120
      %v332 = vsel %vm330, %v302, 0
      %v335 = vsel %vm330, %v303, 0
      %v338 = vsel %vm330, %v304, 0
      %v341 = vsel %vm330, %v305, 0
      %v344 = vsel %vm330, %v306, 0
      %v347 = vsel %vm330, %v307, 0
      %v350 = vsel %vm330, %v308, 0
      %v353 = vsel %vm330, %v309, 0
      %v356 = vsel %vm330, %v310, 0
      %v359 = vsel %vm330, %v311, 0
      %v362 = vsel %vm330, %v312, 0
      %v365 = vsel %vm330, %v313, 0
      %v368 = vsel %vm330, %v314, 0
      %v371 = vsel %vm330, %v315, 0
      %v374 = vsel %vm330, %v316, 0
      %v377 = vsel %vm330, %v317, 0
      %379 = vmatprep.subr.bf16.mxu0 0
      %380 = vmatpush1.bf16.msra.mxu0 %v326
      %381 = vmatprep.subr.bf16.mxu0 0
      %382 = vmatpush1.bf16.msra.mxu0 %v327
      %383 = vmatprep.subr.bf16.mxu0 0
      %384 = vmatpush1.bf16.msra.mxu0 0
      %385 = vmatprep.subr.bf16.mxu0 0
      %386 = vmatpush1.bf16.msra.mxu0 0
      %387 = vmatprep.subr.bf16.mxu0 0
      %388 = vmatpush1.bf16.msra.mxu0 0
      %389 = vmatprep.subr.bf16.mxu0 0
      %390 = vmatpush1.bf16.msra.mxu0 0
      %391 = vmatprep.subr.bf16.mxu0 0
      %392 = vmatpush1.bf16.msra.mxu0 0
      %393 = vmatprep.subr.bf16.mxu0 0
      %394 = vmatpush1.bf16.msra.mxu0 0
      %395 = vmatprep.subr.bf16.mxu0 0
      %396 = vmatpush1.bf16.msra.mxu0 0
      %397 = vmatprep.subr.bf16.mxu0 0
      %398 = vmatpush1.bf16.msra.mxu0 0
      %399 = vmatprep.subr.bf16.mxu0 0
      %400 = vmatpush1.bf16.msra.mxu0 0
      %401 = vmatprep.subr.bf16.mxu0 0
      %402 = vmatpush1.bf16.msra.mxu0 0
      %403 = vmatprep.subr.bf16.mxu0 0
      %404 = vmatpush1.bf16.msra.mxu0 0
      %405 = vmatprep.subr.bf16.mxu0 0
      %406 = vmatpush1.bf16.msra.mxu0 0
      %407 = vmatprep.subr.bf16.mxu0 0
      %408 = vmatpush1.bf16.msra.mxu0 0
      %409 = vmatprep.subr.bf16.mxu0 0
      %410 = vmatpush1.bf16.msra.mxu0 0
      %411 = vmatprep.mubr.bf16.mxu0 0
      %412 = vmatmul.mubr.bf16.gmra.mrb[0].mxu0 %v332
      %v413 = vpop.f32.mrb[0].mxu0
      %v414 = vadd.f32 0.0, %v413
      %v415 = vpop.f32.mrb[0].mxu0
      %v416 = vpop.f32.mrb[0].mxu0
      %v417 = vadd.f32 0.0, %v416
      %v418 = vpop.f32.mrb[0].mxu0
      %419 = vmatprep.mubr.bf16.mxu0 0
      %420 = vmatmul.mubr.bf16.gmra.mrb[0].mxu0 %v335
      %v421 = vpop.f32.mrb[0].mxu0
      %v422 = vadd.f32 0.0, %v421
      %v423 = vpop.f32.mrb[0].mxu0
      %v424 = vpop.f32.mrb[0].mxu0
      %v425 = vadd.f32 0.0, %v424
      %v426 = vpop.f32.mrb[0].mxu0
      %427 = vmatprep.mubr.bf16.mxu0 0
      %428 = vmatmul.mubr.bf16.gmra.mrb[0].mxu0 %v338
      %v429 = vpop.f32.mrb[0].mxu0
      %v430 = vadd.f32 0.0, %v429
      %v431 = vpop.f32.mrb[0].mxu0
      %v432 = vpop.f32.mrb[0].mxu0
      %v433 = vadd.f32 0.0, %v432
      %v434 = vpop.f32.mrb[0].mxu0
      %435 = vmatprep.mubr.bf16.mxu0 0
      %436 = vmatmul.mubr.bf16.gmra.mrb[0].mxu0 %v341
      %v437 = vpop.f32.mrb[0].mxu0
      %v438 = vadd.f32 0.0, %v437
      %v439 = vpop.f32.mrb[0].mxu0
      %v440 = vpop.f32.mrb[0].mxu0
      %v441 = vadd.f32 0.0, %v440
      %v442 = vpop.f32.mrb[0].mxu0
      %443 = vmatprep.mubr.bf16.mxu0 0
      %444 = vmatmul.mubr.bf16.gmra.mrb[0].mxu0 %v344
      %v445 = vpop.f32.mrb[0].mxu0
      %v446 = vadd.f32 0.0, %v445
      %v447 = vpop.f32.mrb[0].mxu0
      %v448 = vpop.f32.mrb[0].mxu0
      %v449 = vadd.f32 0.0, %v448
      %v450 = vpop.f32.mrb[0].mxu0
      %451 = vmatprep.mubr.bf16.mxu0 0
      %452 = vmatmul.mubr.bf16.gmra.mrb[0].mxu0 %v347
      %v453 = vpop.f32.mrb[0].mxu0
      %v454 = vadd.f32 0.0, %v453
      %v455 = vpop.f32.mrb[0].mxu0
      %v456 = vpop.f32.mrb[0].mxu0
      %v457 = vadd.f32 0.0, %v456
      %v458 = vpop.f32.mrb[0].mxu0
      %459 = vmatprep.mubr.bf16.mxu0 0
      %460 = vmatmul.mubr.bf16.gmra.mrb[0].mxu0 %v350
      %v461 = vpop.f32.mrb[0].mxu0
      %v462 = vadd.f32 0.0, %v461
      %v463 = vpop.f32.mrb[0].mxu0
      %v464 = vpop.f32.mrb[0].mxu0
      %v465 = vadd.f32 0.0, %v464
      %v466 = vpop.f32.mrb[0].mxu0
      %467 = vmatprep.mubr.bf16.mxu0 0
      %468 = vmatmul.mubr.bf16.gmra.mrb[0].mxu0 %v353
      %v469 = vpop.f32.mrb[0].mxu0
      %v470 = vadd.f32 0.0, %v469
      %v471 = vpop.f32.mrb[0].mxu0
      %v472 = vpop.f32.mrb[0].mxu0
      %v473 = vadd.f32 0.0, %v472
      %v474 = vpop.f32.mrb[0].mxu0
      %475 = vmatprep.mubr.bf16.mxu0 0
      %476 = vmatmul.mubr.bf16.gmra.mrb[0].mxu0 %v356
      %v477 = vpop.f32.mrb[0].mxu0
      %v478 = vadd.f32 0.0, %v477
      %v479 = vpop.f32.mrb[0].mxu0
      %v480 = vpop.f32.mrb[0].mxu0
      %v481 = vadd.f32 0.0, %v480
      %v482 = vpop.f32.mrb[0].mxu0
      %483 = vmatprep.mubr.bf16.mxu0 0
      %484 = vmatmul.mubr.bf16.gmra.mrb[0].mxu0 %v359
      %v485 = vpop.f32.mrb[0].mxu0
      %v486 = vadd.f32 0.0, %v485
      %v487 = vpop.f32.mrb[0].mxu0
      %v488 = vpop.f32.mrb[0].mxu0
      %v489 = vadd.f32 0.0, %v488
      %v490 = vpop.f32.mrb[0].mxu0
      %491 = vmatprep.mubr.bf16.mxu0 0
      %492 = vmatmul.mubr.bf16.gmra.mrb[0].mxu0 %v362
      %v493 = vpop.f32.mrb[0].mxu0
      %v494 = vadd.f32 0.0, %v493
      %v495 = vpop.f32.mrb[0].mxu0
      %v496 = vpop.f32.mrb[0].mxu0
      %v497 = vadd.f32 0.0, %v496
      %v498 = vpop.f32.mrb[0].mxu0
      %499 = vmatprep.mubr.bf16.mxu0 0
      %500 = vmatmul.mubr.bf16.gmra.mrb[0].mxu0 %v365
      %v501 = vpop.f32.mrb[0].mxu0
      %v502 = vadd.f32 0.0, %v501
      %v503 = vpop.f32.mrb[0].mxu0
      %v504 = vpop.f32.mrb[0].mxu0
      %v505 = vadd.f32 0.0, %v504
      %v506 = vpop.f32.mrb[0].mxu0
      %507 = vmatprep.mubr.bf16.mxu0 0
      %508 = vmatmul.mubr.bf16.gmra.mrb[0].mxu0 %v368
      %v509 = vpop.f32.mrb[0].mxu0
      %v510 = vadd.f32 0.0, %v509
      %v511 = vpop.f32.mrb[0].mxu0
      %v512 = vpop.f32.mrb[0].mxu0
      %v513 = vadd.f32 0.0, %v512
      %v514 = vpop.f32.mrb[0].mxu0
      %515 = vmatprep.mubr.bf16.mxu0 0
      %516 = vmatmul.mubr.bf16.gmra.mrb[0].mxu0 %v371
      %v517 = vpop.f32.mrb[0].mxu0
      %v518 = vadd.f32 0.0, %v517
      %v519 = vpop.f32.mrb[0].mxu0
      %v520 = vpop.f32.mrb[0].mxu0
      %v521 = vadd.f32 0.0, %v520
      %v522 = vpop.f32.mrb[0].mxu0
      %523 = vmatprep.mubr.bf16.mxu0 0
      %524 = vmatmul.mubr.bf16.gmra.mrb[0].mxu0 %v374
      %v525 = vpop.f32.mrb[0].mxu0
      %v526 = vadd.f32 0.0, %v525
      %v527 = vpop.f32.mrb[0].mxu0
      %v528 = vpop.f32.mrb[0].mxu0
      %v529 = vadd.f32 0.0, %v528
      %v530 = vpop.f32.mrb[0].mxu0
      %531 = vmatprep.mubr.bf16.mxu0 0
      %532 = vmatmul.mubr.bf16.gmra.mrb[0].mxu0 %v377
      %v533 = vpop.f32.mrb[0].mxu0
      %v534 = vadd.f32 0.0, %v533
      %v535 = vpop.f32.mrb[0].mxu0
      %v536 = vpop.f32.mrb[0].mxu0
      %v537 = vadd.f32 0.0, %v536
      %v538 = vpop.f32.mrb[0].mxu0
      %539 = vdwg.mxu0
      %v540 = vld [vmem:[%s2] sm:$0x1]
      %v542 = vlaneseq
      %v543 = vshrl.u32 %v542, 7
      %v544 = vsub.s32 0, %v543
      %v545 = vrot.slane %v540, %v544
      %v547 = vmul.f32 %v414, %v545
      %v548 = vmul.f32 %v417, %v545
      %v549 = vmul.f32 %v422, %v545
      %v550 = vmul.f32 %v425, %v545
      %v551 = vmul.f32 %v430, %v545
      %v552 = vmul.f32 %v433, %v545
      %v553 = vmul.f32 %v438, %v545
      %v554 = vmul.f32 %v441, %v545
      %v555 = vmul.f32 %v446, %v545
      %v556 = vmul.f32 %v449, %v545
      %v557 = vmul.f32 %v454, %v545
      %v558 = vmul.f32 %v457, %v545
      %v559 = vmul.f32 %v462, %v545
      %v560 = vmul.f32 %v465, %v545
      %v561 = vmul.f32 %v470, %v545
      %v562 = vmul.f32 %v473, %v545
      %v563 = vmul.f32 %v478, %v545
      %v564 = vmul.f32 %v481, %v545
      %v565 = vmul.f32 %v486, %v545
      %v566 = vmul.f32 %v489, %v545
      %v567 = vmul.f32 %v494, %v545
      %v568 = vmul.f32 %v497, %v545
      %v569 = vmul.f32 %v502, %v545
      %v570 = vmul.f32 %v505, %v545
      %v571 = vmul.f32 %v510, %v545
      %v572 = vmul.f32 %v513, %v545
      %v573 = vmul.f32 %v518, %v545
      %v574 = vmul.f32 %v521, %v545
      %v575 = vmul.f32 %v526, %v545
      %v576 = vmul.f32 %v529, %v545
      %v577 = vmul.f32 %v534, %v545
      %v578 = vmul.f32 %v537, %v545
      %v579 = vld [vmem:[%s3] sm:$0x1]
      %v581 = vlaneseq
      %v582 = vshrl.u32 %v581, 7
      %v583 = vsub.s32 0, %v582
      %v584 = vrot.slane %v579, %v583
      %v586 = vadd.f32 %v547, %v584
      %v587 = vadd.f32 %v548, %v584
      %v588 = vadd.f32 %v549, %v584
      %v589 = vadd.f32 %v550, %v584
      %v590 = vadd.f32 %v551, %v584
      %v591 = vadd.f32 %v552, %v584
      %v592 = vadd.f32 %v553, %v584
      %v593 = vadd.f32 %v554, %v584
      %v594 = vadd.f32 %v555, %v584
      %v595 = vadd.f32 %v556, %v584
      %v596 = vadd.f32 %v557, %v584
      %v597 = vadd.f32 %v558, %v584
      %v598 = vadd.f32 %v559, %v584
      %v599 = vadd.f32 %v560, %v584
      %v600 = vadd.f32 %v561, %v584
      %v601 = vadd.f32 %v562, %v584
      %v602 = vadd.f32 %v563, %v584
      %v603 = vadd.f32 %v564, %v584
      %v604 = vadd.f32 %v565, %v584
      %v605 = vadd.f32 %v566, %v584
      %v606 = vadd.f32 %v567, %v584
      %v607 = vadd.f32 %v568, %v584
      %v608 = vadd.f32 %v569, %v584
      %v609 = vadd.f32 %v570, %v584
      %v610 = vadd.f32 %v571, %v584
      %v611 = vadd.f32 %v572, %v584
      %v612 = vadd.f32 %v573, %v584
      %v613 = vadd.f32 %v574, %v584
      %v614 = vadd.f32 %v575, %v584
      %v615 = vadd.f32 %v576, %v584
      %v616 = vadd.f32 %v577, %v584
      %v617 = vadd.f32 %v578, %v584
      %vm618 = vcmp.gt.f32.partialorder %v586, 0.0
      %vm619 = vcmp.gt.f32.partialorder %v587, 0.0
      %vm620 = vcmp.gt.f32.partialorder %v588, 0.0
      %vm621 = vcmp.gt.f32.partialorder %v589, 0.0
      %vm622 = vcmp.gt.f32.partialorder %v590, 0.0
      %vm623 = vcmp.gt.f32.partialorder %v591, 0.0
      %vm624 = vcmp.gt.f32.partialorder %v592, 0.0
      %vm625 = vcmp.gt.f32.partialorder %v593, 0.0
      %vm626 = vcmp.gt.f32.partialorder %v594, 0.0
      %vm627 = vcmp.gt.f32.partialorder %v595, 0.0
      %vm628 = vcmp.gt.f32.partialorder %v596, 0.0
      %vm629 = vcmp.gt.f32.partialorder %v597, 0.0
      %vm630 = vcmp.gt.f32.partialorder %v598, 0.0
      %vm631 = vcmp.gt.f32.partialorder %v599, 0.0
      %vm632 = vcmp.gt.f32.partialorder %v600, 0.0
      %vm633 = vcmp.gt.f32.partialorder %v601, 0.0
      %vm634 = vcmp.gt.f32.partialorder %v602, 0.0
      %vm635 = vcmp.gt.f32.partialorder %v603, 0.0
      %vm636 = vcmp.gt.f32.partialorder %v604, 0.0
      %vm637 = vcmp.gt.f32.partialorder %v605, 0.0
      %vm638 = vcmp.gt.f32.partialorder %v606, 0.0
      %vm639 = vcmp.gt.f32.partialorder %v607, 0.0
      %vm640 = vcmp.gt.f32.partialorder %v608, 0.0
      %vm641 = vcmp.gt.f32.partialorder %v609, 0.0
      %vm642 = vcmp.gt.f32.partialorder %v610, 0.0
      %vm643 = vcmp.gt.f32.partialorder %v611, 0.0
      %vm644 = vcmp.gt.f32.partialorder %v612, 0.0
      %vm645 = vcmp.gt.f32.partialorder %v613, 0.0
      %vm646 = vcmp.gt.f32.partialorder %v614, 0.0
      %vm647 = vcmp.gt.f32.partialorder %v615, 0.0
      %vm648 = vcmp.gt.f32.partialorder %v616, 0.0
      %vm649 = vcmp.gt.f32.partialorder %v617, 0.0
      %v650 = vmul.f32 %v586, 0.1
      %v651 = vmul.f32 %v587, 0.1
      %v652 = vmul.f32 %v588, 0.1
      %v653 = vmul.f32 %v589, 0.1
      %v654 = vmul.f32 %v590, 0.1
      %v655 = vmul.f32 %v591, 0.1
      %v656 = vmul.f32 %v592, 0.1
      %v657 = vmul.f32 %v593, 0.1
      %v658 = vmul.f32 %v594, 0.1
      %v659 = vmul.f32 %v595, 0.1
      %v660 = vmul.f32 %v596, 0.1
      %v661 = vmul.f32 %v597, 0.1
      %v662 = vmul.f32 %v598, 0.1
      %v663 = vmul.f32 %v599, 0.1
      %v664 = vmul.f32 %v600, 0.1
      %v665 = vmul.f32 %v601, 0.1
      %v666 = vmul.f32 %v602, 0.1
      %v667 = vmul.f32 %v603, 0.1
      %v668 = vmul.f32 %v604, 0.1
      %v669 = vmul.f32 %v605, 0.1
      %v670 = vmul.f32 %v606, 0.1
      %v671 = vmul.f32 %v607, 0.1
      %v672 = vmul.f32 %v608, 0.1
      %v673 = vmul.f32 %v609, 0.1
      %v674 = vmul.f32 %v610, 0.1
      %v675 = vmul.f32 %v611, 0.1
      %v676 = vmul.f32 %v612, 0.1
      %v677 = vmul.f32 %v613, 0.1
      %v678 = vmul.f32 %v614, 0.1
      %v679 = vmul.f32 %v615, 0.1
      %v680 = vmul.f32 %v616, 0.1
      %v681 = vmul.f32 %v617, 0.1
      %v682 = vsel %vm618, %v586, %v650
      %v683 = vsel %vm619, %v587, %v651
      %v684 = vsel %vm620, %v588, %v652
      %v685 = vsel %vm621, %v589, %v653
      %v686 = vsel %vm622, %v590, %v654
      %v687 = vsel %vm623, %v591, %v655
      %v688 = vsel %vm624, %v592, %v656
      %v689 = vsel %vm625, %v593, %v657
      %v690 = vsel %vm626, %v594, %v658
      %v691 = vsel %vm627, %v595, %v659
      %v692 = vsel %vm628, %v596, %v660
      %v693 = vsel %vm629, %v597, %v661
      %v694 = vsel %vm630, %v598, %v662
      %v695 = vsel %vm631, %v599, %v663
      %v696 = vsel %vm632, %v600, %v664
      %v697 = vsel %vm633, %v601, %v665
      %v698 = vsel %vm634, %v602, %v666
      %v699 = vsel %vm635, %v603, %v667
      %v700 = vsel %vm636, %v604, %v668
      %v701 = vsel %vm637, %v605, %v669
      %v702 = vsel %vm638, %v606, %v670
      %v703 = vsel %vm639, %v607, %v671
      %v704 = vsel %vm640, %v608, %v672
      %v705 = vsel %vm641, %v609, %v673
      %v706 = vsel %vm642, %v610, %v674
      %v707 = vsel %vm643, %v611, %v675
      %v708 = vsel %vm644, %v612, %v676
      %v709 = vsel %vm645, %v613, %v677
      %v710 = vsel %vm646, %v614, %v678
      %v711 = vsel %vm647, %v615, %v679
      %v712 = vsel %vm648, %v616, %v680
      %v713 = vsel %vm649, %v617, %v681
      %v714 = vpack.c.bf16 %v683, %v682
      %v715 = vpack.c.bf16 %v685, %v684
      %v716 = vpack.c.bf16 %v687, %v686
      %v717 = vpack.c.bf16 %v689, %v688
      %v718 = vpack.c.bf16 %v691, %v690
      %v719 = vpack.c.bf16 %v693, %v692
      %v720 = vpack.c.bf16 %v695, %v694
      %v721 = vpack.c.bf16 %v697, %v696
      %v722 = vpack.c.bf16 %v699, %v698
      %v723 = vpack.c.bf16 %v701, %v700
      %v724 = vpack.c.bf16 %v703, %v702
      %v725 = vpack.c.bf16 %v705, %v704
      %v726 = vpack.c.bf16 %v707, %v706
      %v727 = vpack.c.bf16 %v709, %v708
      %v728 = vpack.c.bf16 %v711, %v710
      %v729 = vpack.c.bf16 %v713, %v712
      %v746 = vunpack.c.l.b16 %v714
      %v747 = vunpack.c.h.b16 %v714
      %v748 = vunpack.c.l.b16 %v715
      %v749 = vunpack.c.h.b16 %v715
      %v750 = vunpack.c.l.b16 %v716
      %v751 = vunpack.c.h.b16 %v716
      %v752 = vunpack.c.l.b16 %v717
      %v753 = vunpack.c.h.b16 %v717
      %v754 = vunpack.c.l.b16 %v718
      %v755 = vunpack.c.h.b16 %v718
      %v756 = vunpack.c.l.b16 %v719
      %v757 = vunpack.c.h.b16 %v719
      %v758 = vunpack.c.l.b16 %v720
      %v759 = vunpack.c.h.b16 %v720
      %v760 = vunpack.c.l.b16 %v721
      %v761 = vunpack.c.h.b16 %v721
      %v762 = vunpack.c.l.b16 %v722
      %v763 = vunpack.c.h.b16 %v722
      %v764 = vunpack.c.l.b16 %v723
      %v765 = vunpack.c.h.b16 %v723
      %v766 = vunpack.c.l.b16 %v724
      %v767 = vunpack.c.h.b16 %v724
      %v768 = vunpack.c.l.b16 %v725
      %v769 = vunpack.c.h.b16 %v725
      %v770 = vunpack.c.l.b16 %v726
      %v771 = vunpack.c.h.b16 %v726
      %v772 = vunpack.c.l.b16 %v727
      %v773 = vunpack.c.h.b16 %v727
      %v774 = vunpack.c.l.b16 %v728
      %v775 = vunpack.c.h.b16 %v728
      %v776 = vunpack.c.l.b16 %v729
      %v777 = vunpack.c.h.b16 %v729
      %v778 = vpack.c.b16 %v746, %v746
      %v779 = vpack.c.b16 %v747, %v747
      %v780 = vpack.c.b16 %v748, %v748
      %v781 = vpack.c.b16 %v749, %v749
      %v782 = vpack.c.b16 %v750, %v750
      %v783 = vpack.c.b16 %v751, %v751
      %v784 = vpack.c.b16 %v752, %v752
      %v785 = vpack.c.b16 %v753, %v753
      %v786 = vpack.c.b16 %v754, %v754
      %v787 = vpack.c.b16 %v755, %v755
      %v788 = vpack.c.b16 %v756, %v756
      %v789 = vpack.c.b16 %v757, %v757
      %v790 = vpack.c.b16 %v758, %v758
      %v791 = vpack.c.b16 %v759, %v759
      %v792 = vpack.c.b16 %v760, %v760
      %v793 = vpack.c.b16 %v761, %v761
      %v794 = vpack.c.b16 %v762, %v762
      %v795 = vpack.c.b16 %v763, %v763
      %v796 = vpack.c.b16 %v764, %v764
      %v797 = vpack.c.b16 %v765, %v765
      %v798 = vpack.c.b16 %v766, %v766
      %v799 = vpack.c.b16 %v767, %v767
      %v800 = vpack.c.b16 %v768, %v768
      %v801 = vpack.c.b16 %v769, %v769
      %v802 = vpack.c.b16 %v770, %v770
      %v803 = vpack.c.b16 %v771, %v771
      %v804 = vpack.c.b16 %v772, %v772
      %v805 = vpack.c.b16 %v773, %v773
      %v806 = vpack.c.b16 %v774, %v774
      %v807 = vpack.c.b16 %v775, %v775
      %v808 = vpack.c.b16 %v776, %v776
      %v809 = vpack.c.b16 %v777, %v777
      %vm842 = vcmask 257024
      %843 = vst.msk [vmem:[%s199] sm:$0xf] %vm842, %v778
      %844 = vst.msk [vmem:[%s199 + $0x4] sm:$0xf] %vm842, %v779
      %845 = vst.msk [vmem:[%s199 + $0x8] sm:$0xf] %vm842, %v780
      %846 = vst.msk [vmem:[%s199 + $0xc] sm:$0xf] %vm842, %v781
      %847 = vst.msk [vmem:[%s199 + $0x10] sm:$0xf] %vm842, %v782
      %848 = vst.msk [vmem:[%s199 + $0x14] sm:$0xf] %vm842, %v783
      %849 = vst.msk [vmem:[%s199 + $0x18] sm:$0xf] %vm842, %v784
      %850 = vst.msk [vmem:[%s199 + $0x1c] sm:$0xf] %vm842, %v785
      %851 = vst.msk [vmem:[%s199 + $0x20] sm:$0xf] %vm842, %v786
      %852 = vst.msk [vmem:[%s199 + $0x24] sm:$0xf] %vm842, %v787
      %853 = vst.msk [vmem:[%s199 + $0x28] sm:$0xf] %vm842, %v788
      %854 = vst.msk [vmem:[%s199 + $0x2c] sm:$0xf] %vm842, %v789
      %855 = vst.msk [vmem:[%s199 + $0x30] sm:$0xf] %vm842, %v790
      %856 = vst.msk [vmem:[%s199 + $0x34] sm:$0xf] %vm842, %v791
      %857 = vst.msk [vmem:[%s199 + $0x38] sm:$0xf] %vm842, %v792
      %858 = vst.msk [vmem:[%s199 + $0x3c] sm:$0xf] %vm842, %v793
      %859 = vst.msk [vmem:[%s199 + $0x40] sm:$0xf] %vm842, %v794
      %860 = vst.msk [vmem:[%s199 + $0x44] sm:$0xf] %vm842, %v795
      %861 = vst.msk [vmem:[%s199 + $0x48] sm:$0xf] %vm842, %v796
      %862 = vst.msk [vmem:[%s199 + $0x4c] sm:$0xf] %vm842, %v797
      %863 = vst.msk [vmem:[%s199 + $0x50] sm:$0xf] %vm842, %v798
      %864 = vst.msk [vmem:[%s199 + $0x54] sm:$0xf] %vm842, %v799
      %865 = vst.msk [vmem:[%s199 + $0x58] sm:$0xf] %vm842, %v800
      %866 = vst.msk [vmem:[%s199 + $0x5c] sm:$0xf] %vm842, %v801
      %867 = vst.msk [vmem:[%s199 + $0x60] sm:$0xf] %vm842, %v802
      %868 = vst.msk [vmem:[%s199 + $0x64] sm:$0xf] %vm842, %v803
      %869 = vst.msk [vmem:[%s199 + $0x68] sm:$0xf] %vm842, %v804
      %870 = vst.msk [vmem:[%s199 + $0x6c] sm:$0xf] %vm842, %v805
      %871 = vst.msk [vmem:[%s199 + $0x70] sm:$0xf] %vm842, %v806
      %872 = vst.msk [vmem:[%s199 + $0x74] sm:$0xf] %vm842, %v807
      %873 = vst.msk [vmem:[%s199 + $0x78] sm:$0xf] %vm842, %v808
      %874 = vst.msk [vmem:[%s199 + $0x7c] sm:$0xf] %vm842, %v809
      %s875 = smul.u32 32, %s15
      %p876 = scmp.lt.s32.totalorder %s875, 63
      %s877 = scalar_select %p876, %s875, 63
      %s878 = smul.addr %s877, 4
      %s879 = scalar_lea.vmem %s4, %s878
      // Predicated region
      $region37: #{vae_forward.9} parent=35 // pred_check
        %p880 = pneg %p122
      $region38: #{vae_forward.9} parent=35 // pred_check_branch
        %882 = sbr.rel (%p880) target = $region40
      $region39: #{vae_forward.9} parent=35 // pred_region
        %s883 = smul.u32 32, %s15
      $region40: #{vae_forward.9} parent=35 // pred_fallthru
        _
    $region36: #{vae_forward.9} parent=5 // pred_fallthru
      _
    %p884 = scmp.le.s32.totalorder 2, %s10
    // Predicated region
    $region41: #{vae_forward.9} parent=5 // pred_check
      %p885 = pneg %p884
    $region42: #{vae_forward.9} parent=5 // pred_check_branch
      %887 = sbr.rel (%p885) target = $region44
    $region43: #{vae_forward.9} parent=5 // pred_region
      %s888 = ssub.s32 %s10, 2
      // Predicated region
      $region45: #{vae_forward.9} parent=43 // pred_check
        %p889 = pneg %p128
      $region46: #{vae_forward.9} parent=43 // pred_check_branch
        %891 = sbr.rel (%p889) target = $region48
      $region47: #{vae_forward.9} parent=43 // pred_region
        %s892 = smul.u32 32, %s16
        %p893 = scmp.lt.s32.totalorder %s892, 63
        %s894 = scalar_select %p893, %s892, 63
        %s895 = smul.addr %s894, 4
        %s896 = scalar_lea.vmem %s4, %s895
      $region48: #{vae_forward.9} parent=43 // pred_fallthru
        _
    $region44: #{vae_forward.9} parent=5 // pred_fallthru
      _
  $region6: #{vae_forward.9} parent=0 // loop_footer
    %s14 = sadd.s32 1, %s10
  $region7: #{vae_forward.9} parent=0 // loop_footer_branch
    %9 = sbr.rel target = $region3
  $region8: #{vae_forward.9} parent=0 // loop_exit
    _

// kernel: vae_forward.10
$region0: #{vae_forward.10}
  #allocation0 [shape = 'u32[]', space=smem, size = 0x4, offset = 0x4, fixed_abs, tag = 'smem constant byte address 0x4 - core index']
  #allocation1 [shape = 'u32[144,128]{1,0:T(1,128)}', space=vmem, size = 0x12000, scoped, tag = 'internal scratch']
  %s0 = inlined_call_operand.vmem [shape: bf16[128,288], index: 0, kind: input, shape index: {}]
  %s1 = inlined_call_operand.vmem [shape: bf16[288,64], index: 1, kind: input, shape index: {}]
  %s2 = inlined_call_operand.vmem [shape: f32[1,64], index: 2, kind: input, shape index: {}]
  %s3 = inlined_call_operand.vmem [shape: f32[1,64], index: 3, kind: input, shape index: {}]
  %s4 = inlined_call_operand.vmem [shape: bf16[128,64], index: 4, kind: output, shape index: {}]
  %s5 = sld [smem:[#allocation0]]
  $region26: #{vae_forward.10} parent=0
    _
  %s7 = ssub.s32 1, %s5
  %s8 = scalar_select 0, %s7, %s5
  // Predicated region
  $region2: #{vae_forward.10} parent=0 // pred_check
    _
  $region3: #{vae_forward.10} parent=0 // pred_check_branch
    %10 = sbr.rel (0) target = $region5
  $region4: #{vae_forward.10} parent=0 // pred_region
    _
  $region5: #{vae_forward.10} parent=0 // pred_fallthru
    _
  // Predicated region
  $region6: #{vae_forward.10} parent=0 // pred_check
    _
  $region7: #{vae_forward.10} parent=0 // pred_check_branch
    %12 = sbr.rel (0) target = $region9
  $region8: #{vae_forward.10} parent=0 // pred_region
    _
  $region9: #{vae_forward.10} parent=0 // pred_fallthru
    _
  // Predicated region
  $region10: #{vae_forward.10} parent=0 // pred_check
    _
  $region11: #{vae_forward.10} parent=0 // pred_check_branch
    %14 = sbr.rel (0) target = $region13
  $region12: #{vae_forward.10} parent=0 // pred_region
    _
  $region13: #{vae_forward.10} parent=0 // pred_fallthru
    _
  // Predicated region
  $region14: #{vae_forward.10} parent=0 // pred_check
    _
  $region15: #{vae_forward.10} parent=0 // pred_check_branch
    %16 = sbr.rel (0) target = $region17
  $region16: #{vae_forward.10} parent=0 // pred_region
    _
  $region17: #{vae_forward.10} parent=0 // pred_fallthru
    _
  %v18 = vld [vmem:[%s0] sm:$0xff]
  %v19 = vld [vmem:[%s0 + $0x8] sm:$0xf]
  %v20 = vld [vmem:[%s0 + $0xc] sm:$0xff]
  %v21 = vld [vmem:[%s0 + $0x14] sm:$0xf]
  %v22 = vld [vmem:[%s0 + $0x18] sm:$0xff]
  %v23 = vld [vmem:[%s0 + $0x20] sm:$0xf]
  %v24 = vld [vmem:[%s0 + $0x24] sm:$0xff]
  %v25 = vld [vmem:[%s0 + $0x2c] sm:$0xf]
  %v26 = vld [vmem:[%s0 + $0x30] sm:$0xff]
  %v27 = vld [vmem:[%s0 + $0x38] sm:$0xf]
  %v28 = vld [vmem:[%s0 + $0x3c] sm:$0xff]
  %v29 = vld [vmem:[%s0 + $0x44] sm:$0xf]
  %v30 = vld [vmem:[%s0 + $0x48] sm:$0xff]
  %v31 = vld [vmem:[%s0 + $0x50] sm:$0xf]
  %v32 = vld [vmem:[%s0 + $0x54] sm:$0xff]
  %v33 = vld [vmem:[%s0 + $0x5c] sm:$0xf]
  %v34 = vld [vmem:[%s0 + $0x60] sm:$0xff]
  %v35 = vld [vmem:[%s0 + $0x68] sm:$0xf]
  %v36 = vld [vmem:[%s0 + $0x6c] sm:$0xff]
  %v37 = vld [vmem:[%s0 + $0x74] sm:$0xf]
  %v38 = vld [vmem:[%s0 + $0x78] sm:$0xff]
  %v39 = vld [vmem:[%s0 + $0x80] sm:$0xf]
  %v40 = vld [vmem:[%s0 + $0x84] sm:$0xff]
  %v41 = vld [vmem:[%s0 + $0x8c] sm:$0xf]
  %v42 = vld [vmem:[%s0 + $0x90] sm:$0xff]
  %v43 = vld [vmem:[%s0 + $0x98] sm:$0xf]
  %v44 = vld [vmem:[%s0 + $0x9c] sm:$0xff]
  %v45 = vld [vmem:[%s0 + $0xa4] sm:$0xf]
  %v46 = vld [vmem:[%s0 + $0xa8] sm:$0xff]
  %v47 = vld [vmem:[%s0 + $0xb0] sm:$0xf]
  %v48 = vld [vmem:[%s0 + $0xb4] sm:$0xff]
  %v49 = vld [vmem:[%s0 + $0xbc] sm:$0xf]
  %v50 = vld [vmem:[%s1] sm:$0xf]
  %v51 = vld [vmem:[%s1 + $0x4] sm:$0xf]
  %v52 = vld [vmem:[%s1 + $0x8] sm:$0xf]
  %v53 = vld [vmem:[%s1 + $0xc] sm:$0xf]
  %v54 = vld [vmem:[%s1 + $0x10] sm:$0xf]
  %v55 = vld [vmem:[%s1 + $0x14] sm:$0xf]
  %v56 = vld [vmem:[%s1 + $0x18] sm:$0xf]
  %v57 = vld [vmem:[%s1 + $0x1c] sm:$0xf]
  %v58 = vld [vmem:[%s1 + $0x20] sm:$0xf]
  %v59 = vld [vmem:[%s1 + $0x24] sm:$0xf]
  %v60 = vld [vmem:[%s1 + $0x28] sm:$0xf]
  %v61 = vld [vmem:[%s1 + $0x2c] sm:$0xf]
  %v62 = vld [vmem:[%s1 + $0x30] sm:$0xf]
  %v63 = vld [vmem:[%s1 + $0x34] sm:$0xf]
  %v64 = vld [vmem:[%s1 + $0x38] sm:$0xf]
  %v65 = vld [vmem:[%s1 + $0x3c] sm:$0xf]
  %v66 = vld [vmem:[%s1 + $0x40] sm:$0xf]
  %v67 = vld [vmem:[%s1 + $0x44] sm:$0xf]
  %v68 = vld [vmem:[%s1 + $0x48] sm:$0xf]
  %v69 = vld [vmem:[%s1 + $0x4c] sm:$0xf]
  %v70 = vld [vmem:[%s1 + $0x50] sm:$0xf]
  %v71 = vld [vmem:[%s1 + $0x54] sm:$0xf]
  %v72 = vld [vmem:[%s1 + $0x58] sm:$0xf]
  %v73 = vld [vmem:[%s1 + $0x5c] sm:$0xf]
  %v74 = vld [vmem:[%s1 + $0x60] sm:$0xf]
  %v75 = vld [vmem:[%s1 + $0x64] sm:$0xf]
  %v76 = vld [vmem:[%s1 + $0x68] sm:$0xf]
  %v77 = vld [vmem:[%s1 + $0x6c] sm:$0xf]
  %v78 = vld [vmem:[%s1 + $0x70] sm:$0xf]
  %v79 = vld [vmem:[%s1 + $0x74] sm:$0xf]
  %v80 = vld [vmem:[%s1 + $0x78] sm:$0xf]
  %v81 = vld [vmem:[%s1 + $0x7c] sm:$0xf]
  %v82 = vld [vmem:[%s1 + $0x80] sm:$0xf]
  %v83 = vld [vmem:[%s1 + $0x84] sm:$0xf]
  %v84 = vld [vmem:[%s1 + $0x88] sm:$0xf]
  %v85 = vld [vmem:[%s1 + $0x8c] sm:$0xf]
  %v118 = vunpack.c.l.b16 %v18
  %v119 = vunpack.c.h.b16 %v18
  %v120 = vunpack.c.l.b16 %v19
  %v121 = vunpack.c.l.b16 %v20
  %v122 = vunpack.c.h.b16 %v20
  %v123 = vunpack.c.l.b16 %v21
  %v124 = vunpack.c.l.b16 %v22
  %v125 = vunpack.c.h.b16 %v22
  %v126 = vunpack.c.l.b16 %v23
  %v127 = vunpack.c.l.b16 %v24
  %v128 = vunpack.c.h.b16 %v24
  %v129 = vunpack.c.l.b16 %v25
  %v130 = vunpack.c.l.b16 %v26
  %v131 = vunpack.c.h.b16 %v26
  %v132 = vunpack.c.l.b16 %v27
  %v133 = vunpack.c.l.b16 %v28
  %v134 = vunpack.c.h.b16 %v28
  %v135 = vunpack.c.l.b16 %v29
  %v136 = vunpack.c.l.b16 %v30
  %v137 = vunpack.c.h.b16 %v30
  %v138 = vunpack.c.l.b16 %v31
  %v139 = vunpack.c.l.b16 %v32
  %v140 = vunpack.c.h.b16 %v32
  %v141 = vunpack.c.l.b16 %v33
  %v142 = vunpack.c.l.b16 %v34
  %v143 = vunpack.c.h.b16 %v34
  %v144 = vunpack.c.l.b16 %v35
  %v145 = vunpack.c.l.b16 %v36
  %v146 = vunpack.c.h.b16 %v36
  %v147 = vunpack.c.l.b16 %v37
  %v148 = vunpack.c.l.b16 %v38
  %v149 = vunpack.c.h.b16 %v38
  %v150 = vunpack.c.l.b16 %v39
  %v151 = vunpack.c.l.b16 %v40
  %v152 = vunpack.c.h.b16 %v40
  %v153 = vunpack.c.l.b16 %v41
  %v154 = vunpack.c.l.b16 %v42
  %v155 = vunpack.c.h.b16 %v42
  %v156 = vunpack.c.l.b16 %v43
  %v157 = vunpack.c.l.b16 %v44
  %v158 = vunpack.c.h.b16 %v44
  %v159 = vunpack.c.l.b16 %v45
  %v160 = vunpack.c.l.b16 %v46
  %v161 = vunpack.c.h.b16 %v46
  %v162 = vunpack.c.l.b16 %v47
  %v163 = vunpack.c.l.b16 %v48
  %v164 = vunpack.c.h.b16 %v48
  %v165 = vunpack.c.l.b16 %v49
  %v166 = vpack.c.b16 %v121, %v118
  %v167 = vpack.c.b16 %v122, %v119
  %v168 = vpack.c.b16 %v123, %v120
  %v169 = vpack.c.b16 %v127, %v124
  %v170 = vpack.c.b16 %v128, %v125
  %v171 = vpack.c.b16 %v129, %v126
  %v172 = vpack.c.b16 %v133, %v130
  %v173 = vpack.c.b16 %v134, %v131
  %v174 = vpack.c.b16 %v135, %v132
  %v175 = vpack.c.b16 %v139, %v136
  %v176 = vpack.c.b16 %v140, %v137
  %v177 = vpack.c.b16 %v141, %v138
  %v178 = vpack.c.b16 %v145, %v142
  %v179 = vpack.c.b16 %v146, %v143
  %v180 = vpack.c.b16 %v147, %v144
  %v181 = vpack.c.b16 %v151, %v148
  %v182 = vpack.c.b16 %v152, %v149
  %v183 = vpack.c.b16 %v153, %v150
  %v184 = vpack.c.b16 %v157, %v154
  %v185 = vpack.c.b16 %v158, %v155
  %v186 = vpack.c.b16 %v159, %v156
  %v187 = vpack.c.b16 %v163, %v160
  %v188 = vpack.c.b16 %v164, %v161
  %v189 = vpack.c.b16 %v165, %v162
  %v242 = vunpack.c.l.b16 %v50
  %v243 = vunpack.c.l.b16 %v51
  %v244 = vunpack.c.l.b16 %v52
  %v245 = vunpack.c.l.b16 %v53
  %v246 = vunpack.c.l.b16 %v54
  %v247 = vunpack.c.l.b16 %v55
  %v248 = vunpack.c.l.b16 %v56
  %v249 = vunpack.c.l.b16 %v57
  %v250 = vunpack.c.l.b16 %v58
  %v251 = vunpack.c.l.b16 %v59
  %v252 = vunpack.c.l.b16 %v60
  %v253 = vunpack.c.l.b16 %v61
  %v254 = vunpack.c.l.b16 %v62
  %v255 = vunpack.c.l.b16 %v63
  %v256 = vunpack.c.l.b16 %v64
  %v257 = vunpack.c.l.b16 %v65
  %v258 = vunpack.c.l.b16 %v66
  %v259 = vunpack.c.l.b16 %v67
  %v260 = vunpack.c.l.b16 %v68
  %v261 = vunpack.c.l.b16 %v69
  %v262 = vunpack.c.l.b16 %v70
  %v263 = vunpack.c.l.b16 %v71
  %v264 = vunpack.c.l.b16 %v72
  %v265 = vunpack.c.l.b16 %v73
  %v266 = vunpack.c.l.b16 %v74
  %v267 = vunpack.c.l.b16 %v75
  %v268 = vunpack.c.l.b16 %v76
  %v269 = vunpack.c.l.b16 %v77
  %v270 = vunpack.c.l.b16 %v78
  %v271 = vunpack.c.l.b16 %v79
  %v272 = vunpack.c.l.b16 %v80
  %v273 = vunpack.c.l.b16 %v81
  %v274 = vunpack.c.l.b16 %v82
  %v275 = vunpack.c.l.b16 %v83
  %v276 = vunpack.c.l.b16 %v84
  %v277 = vunpack.c.l.b16 %v85
  %v278 = vpack.c.b16 %v243, %v242
  %v279 = vpack.c.b16 %v245, %v244
  %v280 = vpack.c.b16 %v247, %v246
  %v281 = vpack.c.b16 %v249, %v248
  %v282 = vpack.c.b16 %v251, %v250
  %v283 = vpack.c.b16 %v253, %v252
  %v284 = vpack.c.b16 %v255, %v254
  %v285 = vpack.c.b16 %v257, %v256
  %v286 = vpack.c.b16 %v259, %v258
  %v287 = vpack.c.b16 %v261, %v260
  %v288 = vpack.c.b16 %v263, %v262
  %v289 = vpack.c.b16 %v265, %v264
  %v290 = vpack.c.b16 %v267, %v266
  %v291 = vpack.c.b16 %v269, %v268
  %v292 = vpack.c.b16 %v271, %v270
  %v293 = vpack.c.b16 %v273, %v272
  %v294 = vpack.c.b16 %v275, %v274
  %v295 = vpack.c.b16 %v277, %v276
  %vm314 = vcmask 261120
  %v316 = vsel %vm314, %v168, 0
  %v319 = vsel %vm314, %v171, 0
  %v322 = vsel %vm314, %v174, 0
  %v325 = vsel %vm314, %v177, 0
  %v328 = vsel %vm314, %v180, 0
  %v331 = vsel %vm314, %v183, 0
  %v334 = vsel %vm314, %v186, 0
  %v337 = vsel %vm314, %v189, 0
  %339 = vmatprep.subr.bf16.mxu0 0
  %340 = vmatpush1.bf16.msra.mxu0 %v278
  %341 = vmatprep.subr.bf16.mxu0 0
  %342 = vmatpush1.bf16.msra.mxu0 %v279
  %343 = vmatprep.subr.bf16.mxu0 0
  %344 = vmatpush1.bf16.msra.mxu0 %v280
  %345 = vmatprep.subr.bf16.mxu0 0
  %346 = vmatpush1.bf16.msra.mxu0 %v281
  %347 = vmatprep.subr.bf16.mxu0 0
  %348 = vmatpush1.bf16.msra.mxu0 %v282
  %349 = vmatprep.subr.bf16.mxu0 0
  %350 = vmatpush1.bf16.msra.mxu0 %v283
  %351 = vmatprep.subr.bf16.mxu0 0
  %352 = vmatpush1.bf16.msra.mxu0 %v284
  %353 = vmatprep.subr.bf16.mxu0 0
  %354 = vmatpush1.bf16.msra.mxu0 %v285
  %355 = vmatprep.subr.bf16.mxu0 0
  %356 = vmatpush1.bf16.msra.mxu0 %v286
  %357 = vmatprep.subr.bf16.mxu0 0
  %358 = vmatpush1.bf16.msra.mxu0 %v287
  %359 = vmatprep.subr.bf16.mxu0 0
  %360 = vmatpush1.bf16.msra.mxu0 %v288
  %361 = vmatprep.subr.bf16.mxu0 0
  %362 = vmatpush1.bf16.msra.mxu0 %v289
  %363 = vmatprep.subr.bf16.mxu0 0
  %364 = vmatpush1.bf16.msra.mxu0 %v290
  %365 = vmatprep.subr.bf16.mxu0 0
  %366 = vmatpush1.bf16.msra.mxu0 %v291
  %367 = vmatprep.subr.bf16.mxu0 0
  %368 = vmatpush1.bf16.msra.mxu0 %v292
  %369 = vmatprep.subr.bf16.mxu0 0
  %370 = vmatpush1.bf16.msra.mxu0 %v293
  %371 = vmatprep.mubr.bf16.mxu0 %v167
  %372 = vmatmul.mubr.bf16.gmra.mrb[0].mxu0 %v166
  %v373 = vpop.f32.mrb[0].mxu0
  %v374 = vadd.f32 0.0, %v373
  %v375 = vpop.f32.mrb[0].mxu0
  %v376 = vpop.f32.mrb[0].mxu0
  %v377 = vadd.f32 0.0, %v376
  %v378 = vpop.f32.mrb[0].mxu0
  %379 = vmatprep.mubr.bf16.mxu0 %v170
  %380 = vmatmul.mubr.bf16.gmra.mrb[0].mxu0 %v169
  %v381 = vpop.f32.mrb[0].mxu0
  %v382 = vadd.f32 0.0, %v381
  %v383 = vpop.f32.mrb[0].mxu0
  %v384 = vpop.f32.mrb[0].mxu0
  %v385 = vadd.f32 0.0, %v384
  %v386 = vpop.f32.mrb[0].mxu0
  %387 = vmatprep.mubr.bf16.mxu0 %v173
  %388 = vmatmul.mubr.bf16.gmra.mrb[0].mxu0 %v172
  %v389 = vpop.f32.mrb[0].mxu0
  %v390 = vadd.f32 0.0, %v389
  %v391 = vpop.f32.mrb[0].mxu0
  %v392 = vpop.f32.mrb[0].mxu0
  %v393 = vadd.f32 0.0, %v392
  %v394 = vpop.f32.mrb[0].mxu0
  %395 = vmatprep.mubr.bf16.mxu0 %v176
  %396 = vmatmul.mubr.bf16.gmra.mrb[0].mxu0 %v175
  %v397 = vpop.f32.mrb[0].mxu0
  %v398 = vadd.f32 0.0, %v397
  %v399 = vpop.f32.mrb[0].mxu0
  %v400 = vpop.f32.mrb[0].mxu0
  %v401 = vadd.f32 0.0, %v400
  %v402 = vpop.f32.mrb[0].mxu0
  %403 = vmatprep.mubr.bf16.mxu0 %v179
  %404 = vmatmul.mubr.bf16.gmra.mrb[0].mxu0 %v178
  %v405 = vpop.f32.mrb[0].mxu0
  %v406 = vadd.f32 0.0, %v405
  %v407 = vpop.f32.mrb[0].mxu0
  %v408 = vpop.f32.mrb[0].mxu0
  %v409 = vadd.f32 0.0, %v408
  %v410 = vpop.f32.mrb[0].mxu0
  %411 = vmatprep.mubr.bf16.mxu0 %v182
  %412 = vmatmul.mubr.bf16.gmra.mrb[0].mxu0 %v181
  %v413 = vpop.f32.mrb[0].mxu0
  %v414 = vadd.f32 0.0, %v413
  %v415 = vpop.f32.mrb[0].mxu0
  %v416 = vpop.f32.mrb[0].mxu0
  %v417 = vadd.f32 0.0, %v416
  %v418 = vpop.f32.mrb[0].mxu0
  %419 = vmatprep.mubr.bf16.mxu0 %v185
  %420 = vmatmul.mubr.bf16.gmra.mrb[0].mxu0 %v184
  %v421 = vpop.f32.mrb[0].mxu0
  %v422 = vadd.f32 0.0, %v421
  %v423 = vpop.f32.mrb[0].mxu0
  %v424 = vpop.f32.mrb[0].mxu0
  %v425 = vadd.f32 0.0, %v424
  %v426 = vpop.f32.mrb[0].mxu0
  %427 = vmatprep.mubr.bf16.mxu0 %v188
  %428 = vmatmul.mubr.bf16.gmra.mrb[0].mxu0 %v187
  %v429 = vpop.f32.mrb[0].mxu0
  %v430 = vadd.f32 0.0, %v429
  %v431 = vpop.f32.mrb[0].mxu0
  %v432 = vpop.f32.mrb[0].mxu0
  %v433 = vadd.f32 0.0, %v432
  %v434 = vpop.f32.mrb[0].mxu0
  %435 = vdwg.mxu0
  %436 = vmatprep.subr.bf16.mxu0 0
  %437 = vmatpush1.bf16.msra.mxu0 %v294
  %438 = vmatprep.subr.bf16.mxu0 0
  %439 = vmatpush1.bf16.msra.mxu0 %v295
  %440 = vmatprep.subr.bf16.mxu0 0
  %441 = vmatpush1.bf16.msra.mxu0 0
  %442 = vmatprep.subr.bf16.mxu0 0
  %443 = vmatpush1.bf16.msra.mxu0 0
  %444 = vmatprep.subr.bf16.mxu0 0
  %445 = vmatpush1.bf16.msra.mxu0 0
  %446 = vmatprep.subr.bf16.mxu0 0
  %447 = vmatpush1.bf16.msra.mxu0 0
  %448 = vmatprep.subr.bf16.mxu0 0
  %449 = vmatpush1.bf16.msra.mxu0 0
  %450 = vmatprep.subr.bf16.mxu0 0
  %451 = vmatpush1.bf16.msra.mxu0 0
  %452 = vmatprep.subr.bf16.mxu0 0
  %453 = vmatpush1.bf16.msra.mxu0 0
  %454 = vmatprep.subr.bf16.mxu0 0
  %455 = vmatpush1.bf16.msra.mxu0 0
  %456 = vmatprep.subr.bf16.mxu0 0
  %457 = vmatpush1.bf16.msra.mxu0 0
  %458 = vmatprep.subr.bf16.mxu0 0
  %459 = vmatpush1.bf16.msra.mxu0 0
  %460 = vmatprep.subr.bf16.mxu0 0
  %461 = vmatpush1.bf16.msra.mxu0 0
  %462 = vmatprep.subr.bf16.mxu0 0
  %463 = vmatpush1.bf16.msra.mxu0 0
  %464 = vmatprep.subr.bf16.mxu0 0
  %465 = vmatpush1.bf16.msra.mxu0 0
  %466 = vmatprep.subr.bf16.mxu0 0
  %467 = vmatpush1.bf16.msra.mxu0 0
  %468 = vmatprep.mubr.bf16.mxu0 0
  %469 = vmatmul.mubr.bf16.gmra.mrb[0].mxu0 %v316
  %v470 = vpop.f32.mrb[0].mxu0
  %v471 = vadd.f32 %v374, %v470
  %v472 = vpop.f32.mrb[0].mxu0
  %v473 = vpop.f32.mrb[0].mxu0
  %v474 = vadd.f32 %v377, %v473
  %v475 = vpop.f32.mrb[0].mxu0
  %476 = vmatprep.mubr.bf16.mxu0 0
  %477 = vmatmul.mubr.bf16.gmra.mrb[0].mxu0 %v319
  %v478 = vpop.f32.mrb[0].mxu0
  %v479 = vadd.f32 %v382, %v478
  %v480 = vpop.f32.mrb[0].mxu0
  %v481 = vpop.f32.mrb[0].mxu0
  %v482 = vadd.f32 %v385, %v481
  %v483 = vpop.f32.mrb[0].mxu0
  %484 = vmatprep.mubr.bf16.mxu0 0
  %485 = vmatmul.mubr.bf16.gmra.mrb[0].mxu0 %v322
  %v486 = vpop.f32.mrb[0].mxu0
  %v487 = vadd.f32 %v390, %v486
  %v488 = vpop.f32.mrb[0].mxu0
  %v489 = vpop.f32.mrb[0].mxu0
  %v490 = vadd.f32 %v393, %v489
  %v491 = vpop.f32.mrb[0].mxu0
  %492 = vmatprep.mubr.bf16.mxu0 0
  %493 = vmatmul.mubr.bf16.gmra.mrb[0].mxu0 %v325
  %v494 = vpop.f32.mrb[0].mxu0
  %v495 = vadd.f32 %v398, %v494
  %v496 = vpop.f32.mrb[0].mxu0
  %v497 = vpop.f32.mrb[0].mxu0
  %v498 = vadd.f32 %v401, %v497
  %v499 = vpop.f32.mrb[0].mxu0
  %500 = vmatprep.mubr.bf16.mxu0 0
  %501 = vmatmul.mubr.bf16.gmra.mrb[0].mxu0 %v328
  %v502 = vpop.f32.mrb[0].mxu0
  %v503 = vadd.f32 %v406, %v502
  %v504 = vpop.f32.mrb[0].mxu0
  %v505 = vpop.f32.mrb[0].mxu0
  %v506 = vadd.f32 %v409, %v505
  %v507 = vpop.f32.mrb[0].mxu0
  %508 = vmatprep.mubr.bf16.mxu0 0
  %509 = vmatmul.mubr.bf16.gmra.mrb[0].mxu0 %v331
  %v510 = vpop.f32.mrb[0].mxu0
  %v511 = vadd.f32 %v414, %v510
  %v512 = vpop.f32.mrb[0].mxu0
  %v513 = vpop.f32.mrb[0].mxu0
  %v514 = vadd.f32 %v417, %v513
  %v515 = vpop.f32.mrb[0].mxu0
  %516 = vmatprep.mubr.bf16.mxu0 0
  %517 = vmatmul.mubr.bf16.gmra.mrb[0].mxu0 %v334
  %v518 = vpop.f32.mrb[0].mxu0
  %v519 = vadd.f32 %v422, %v518
  %v520 = vpop.f32.mrb[0].mxu0
  %v521 = vpop.f32.mrb[0].mxu0
  %v522 = vadd.f32 %v425, %v521
  %v523 = vpop.f32.mrb[0].mxu0
  %524 = vmatprep.mubr.bf16.mxu0 0
  %525 = vmatmul.mubr.bf16.gmra.mrb[0].mxu0 %v337
  %v526 = vpop.f32.mrb[0].mxu0
  %v527 = vadd.f32 %v430, %v526
  %v528 = vpop.f32.mrb[0].mxu0
  %v529 = vpop.f32.mrb[0].mxu0
  %v530 = vadd.f32 %v433, %v529
  %v531 = vpop.f32.mrb[0].mxu0
  %532 = vdwg.mxu0
  %v533 = vld [vmem:[%s2] sm:$0x1]
  %v535 = vlaneseq
  %v536 = vshrl.u32 %v535, 7
  %v537 = vsub.s32 0, %v536
  %v538 = vrot.slane %v533, %v537
  %v540 = vmul.f32 %v471, %v538
  %v541 = vmul.f32 %v474, %v538
  %v542 = vmul.f32 %v479, %v538
  %v543 = vmul.f32 %v482, %v538
  %v544 = vmul.f32 %v487, %v538
  %v545 = vmul.f32 %v490, %v538
  %v546 = vmul.f32 %v495, %v538
  %v547 = vmul.f32 %v498, %v538
  %v548 = vmul.f32 %v503, %v538
  %v549 = vmul.f32 %v506, %v538
  %v550 = vmul.f32 %v511, %v538
  %v551 = vmul.f32 %v514, %v538
  %v552 = vmul.f32 %v519, %v538
  %v553 = vmul.f32 %v522, %v538
  %v554 = vmul.f32 %v527, %v538
  %v555 = vmul.f32 %v530, %v538
  %v556 = vld [vmem:[%s3] sm:$0x1]
  %v558 = vlaneseq
  %v559 = vshrl.u32 %v558, 7
  %v560 = vsub.s32 0, %v559
  %v561 = vrot.slane %v556, %v560
  %v563 = vadd.f32 %v540, %v561
  %v564 = vadd.f32 %v541, %v561
  %v565 = vadd.f32 %v542, %v561
  %v566 = vadd.f32 %v543, %v561
  %v567 = vadd.f32 %v544, %v561
  %v568 = vadd.f32 %v545, %v561
  %v569 = vadd.f32 %v546, %v561
  %v570 = vadd.f32 %v547, %v561
  %v571 = vadd.f32 %v548, %v561
  %v572 = vadd.f32 %v549, %v561
  %v573 = vadd.f32 %v550, %v561
  %v574 = vadd.f32 %v551, %v561
  %v575 = vadd.f32 %v552, %v561
  %v576 = vadd.f32 %v553, %v561
  %v577 = vadd.f32 %v554, %v561
  %v578 = vadd.f32 %v555, %v561
  %vm579 = vcmp.gt.f32.partialorder %v563, 0.0
  %vm580 = vcmp.gt.f32.partialorder %v564, 0.0
  %vm581 = vcmp.gt.f32.partialorder %v565, 0.0
  %vm582 = vcmp.gt.f32.partialorder %v566, 0.0
  %vm583 = vcmp.gt.f32.partialorder %v567, 0.0
  %vm584 = vcmp.gt.f32.partialorder %v568, 0.0
  %vm585 = vcmp.gt.f32.partialorder %v569, 0.0
  %vm586 = vcmp.gt.f32.partialorder %v570, 0.0
  %vm587 = vcmp.gt.f32.partialorder %v571, 0.0
  %vm588 = vcmp.gt.f32.partialorder %v572, 0.0
  %vm589 = vcmp.gt.f32.partialorder %v573, 0.0
  %vm590 = vcmp.gt.f32.partialorder %v574, 0.0
  %vm591 = vcmp.gt.f32.partialorder %v575, 0.0
  %vm592 = vcmp.gt.f32.partialorder %v576, 0.0
  %vm593 = vcmp.gt.f32.partialorder %v577, 0.0
  %vm594 = vcmp.gt.f32.partialorder %v578, 0.0
  %v595 = vmul.f32 %v563, 0.1
  %v596 = vmul.f32 %v564, 0.1
  %v597 = vmul.f32 %v565, 0.1
  %v598 = vmul.f32 %v566, 0.1
  %v599 = vmul.f32 %v567, 0.1
  %v600 = vmul.f32 %v568, 0.1
  %v601 = vmul.f32 %v569, 0.1
  %v602 = vmul.f32 %v570, 0.1
  %v603 = vmul.f32 %v571, 0.1
  %v604 = vmul.f32 %v572, 0.1
  %v605 = vmul.f32 %v573, 0.1
  %v606 = vmul.f32 %v574, 0.1
  %v607 = vmul.f32 %v575, 0.1
  %v608 = vmul.f32 %v576, 0.1
  %v609 = vmul.f32 %v577, 0.1
  %v610 = vmul.f32 %v578, 0.1
  %v611 = vsel %vm579, %v563, %v595
  %v612 = vsel %vm580, %v564, %v596
  %v613 = vsel %vm581, %v565, %v597
  %v614 = vsel %vm582, %v566, %v598
  %v615 = vsel %vm583, %v567, %v599
  %v616 = vsel %vm584, %v568, %v600
  %v617 = vsel %vm585, %v569, %v601
  %v618 = vsel %vm586, %v570, %v602
  %v619 = vsel %vm587, %v571, %v603
  %v620 = vsel %vm588, %v572, %v604
  %v621 = vsel %vm589, %v573, %v605
  %v622 = vsel %vm590, %v574, %v606
  %v623 = vsel %vm591, %v575, %v607
  %v624 = vsel %vm592, %v576, %v608
  %v625 = vsel %vm593, %v577, %v609
  %v626 = vsel %vm594, %v578, %v610
  %v627 = vpack.c.bf16 %v612, %v611
  %v628 = vpack.c.bf16 %v614, %v613
  %v629 = vpack.c.bf16 %v616, %v615
  %v630 = vpack.c.bf16 %v618, %v617
  %v631 = vpack.c.bf16 %v620, %v619
  %v632 = vpack.c.bf16 %v622, %v621
  %v633 = vpack.c.bf16 %v624, %v623
  %v634 = vpack.c.bf16 %v626, %v625
  %v643 = vunpack.c.l.b16 %v627
  %v644 = vunpack.c.h.b16 %v627
  %v645 = vunpack.c.l.b16 %v628
  %v646 = vunpack.c.h.b16 %v628
  %v647 = vunpack.c.l.b16 %v629
  %v648 = vunpack.c.h.b16 %v629
  %v649 = vunpack.c.l.b16 %v630
  %v650 = vunpack.c.h.b16 %v630
  %v651 = vunpack.c.l.b16 %v631
  %v652 = vunpack.c.h.b16 %v631
  %v653 = vunpack.c.l.b16 %v632
  %v654 = vunpack.c.h.b16 %v632
  %v655 = vunpack.c.l.b16 %v633
  %v656 = vunpack.c.h.b16 %v633
  %v657 = vunpack.c.l.b16 %v634
  %v658 = vunpack.c.h.b16 %v634
  %v659 = vpack.c.b16 %v643, %v643
  %v660 = vpack.c.b16 %v644, %v644
  %v661 = vpack.c.b16 %v645, %v645
  %v662 = vpack.c.b16 %v646, %v646
  %v663 = vpack.c.b16 %v647, %v647
  %v664 = vpack.c.b16 %v648, %v648
  %v665 = vpack.c.b16 %v649, %v649
  %v666 = vpack.c.b16 %v650, %v650
  %v667 = vpack.c.b16 %v651, %v651
  %v668 = vpack.c.b16 %v652, %v652
  %v669 = vpack.c.b16 %v653, %v653
  %v670 = vpack.c.b16 %v654, %v654
  %v671 = vpack.c.b16 %v655, %v655
  %v672 = vpack.c.b16 %v656, %v656
  %v673 = vpack.c.b16 %v657, %v657
  %v674 = vpack.c.b16 %v658, %v658
  %vm691 = vcmask 519168
  %692 = vst.msk [vmem:[%s4] sm:$0xf] %vm691, %v659
  %693 = vst.msk [vmem:[%s4 + $0x4] sm:$0xf] %vm691, %v660
  %694 = vst.msk [vmem:[%s4 + $0x8] sm:$0xf] %vm691, %v661
  %695 = vst.msk [vmem:[%s4 + $0xc] sm:$0xf] %vm691, %v662
  %696 = vst.msk [vmem:[%s4 + $0x10] sm:$0xf] %vm691, %v663
  %697 = vst.msk [vmem:[%s4 + $0x14] sm:$0xf] %vm691, %v664
  %698 = vst.msk [vmem:[%s4 + $0x18] sm:$0xf] %vm691, %v665
  %699 = vst.msk [vmem:[%s4 + $0x1c] sm:$0xf] %vm691, %v666
  %700 = vst.msk [vmem:[%s4 + $0x20] sm:$0xf] %vm691, %v667
  %701 = vst.msk [vmem:[%s4 + $0x24] sm:$0xf] %vm691, %v668
  %702 = vst.msk [vmem:[%s4 + $0x28] sm:$0xf] %vm691, %v669
  %703 = vst.msk [vmem:[%s4 + $0x2c] sm:$0xf] %vm691, %v670
  %704 = vst.msk [vmem:[%s4 + $0x30] sm:$0xf] %vm691, %v671
  %705 = vst.msk [vmem:[%s4 + $0x34] sm:$0xf] %vm691, %v672
  %706 = vst.msk [vmem:[%s4 + $0x38] sm:$0xf] %vm691, %v673
  %707 = vst.msk [vmem:[%s4 + $0x3c] sm:$0xf] %vm691, %v674
  // Predicated region
  $region18: #{vae_forward.10} parent=0 // pred_check
    _
  $region19: #{vae_forward.10} parent=0 // pred_check_branch
    %709 = sbr.rel (0) target = $region21
  $region20: #{vae_forward.10} parent=0 // pred_region
    _
  $region21: #{vae_forward.10} parent=0 // pred_fallthru
    _
  // Predicated region
  $region22: #{vae_forward.10} parent=0 // pred_check
    _
  $region23: #{vae_forward.10} parent=0 // pred_check_branch
    %711 = sbr.rel (0) target = $region25
  $region24: #{vae_forward.10} parent=0 // pred_region
    _
  $region25: #{vae_forward.10} parent=0 // pred_fallthru
    _

// kernel: vae_forward.11
$region0: #{vae_forward.11}
  #allocation0 [shape = 'u32[]', space=smem, size = 0x4, offset = 0x4, fixed_abs, tag = 'smem constant byte address 0x4 - core index']
  #allocation1 [shape = 'u32[144,128]{1,0:T(1,128)}', space=vmem, size = 0x12000, scoped, tag = 'internal scratch']
  %s0 = inlined_call_operand.vmem [shape: bf16[32,576], index: 0, kind: input, shape index: {}]
  %s1 = inlined_call_operand.vmem [shape: bf16[576,64], index: 1, kind: input, shape index: {}]
  %s2 = inlined_call_operand.vmem [shape: f32[1,64], index: 2, kind: input, shape index: {}]
  %s3 = inlined_call_operand.vmem [shape: f32[1,64], index: 3, kind: input, shape index: {}]
  %s4 = inlined_call_operand.vmem [shape: bf16[32,64], index: 4, kind: output, shape index: {}]
  %s5 = sld [smem:[#allocation0]]
  $region26: #{vae_forward.11} parent=0
    _
  %s7 = ssub.s32 1, %s5
  %s8 = scalar_select 0, %s7, %s5
  // Predicated region
  $region2: #{vae_forward.11} parent=0 // pred_check
    _
  $region3: #{vae_forward.11} parent=0 // pred_check_branch
    %10 = sbr.rel (0) target = $region5
  $region4: #{vae_forward.11} parent=0 // pred_region
    _
  $region5: #{vae_forward.11} parent=0 // pred_fallthru
    _
  // Predicated region
  $region6: #{vae_forward.11} parent=0 // pred_check
    _
  $region7: #{vae_forward.11} parent=0 // pred_check_branch
    %12 = sbr.rel (0) target = $region9
  $region8: #{vae_forward.11} parent=0 // pred_region
    _
  $region9: #{vae_forward.11} parent=0 // pred_fallthru
    _
  // Predicated region
  $region10: #{vae_forward.11} parent=0 // pred_check
    _
  $region11: #{vae_forward.11} parent=0 // pred_check_branch
    %14 = sbr.rel (0) target = $region13
  $region12: #{vae_forward.11} parent=0 // pred_region
    _
  $region13: #{vae_forward.11} parent=0 // pred_fallthru
    _
  // Predicated region
  $region14: #{vae_forward.11} parent=0 // pred_check
    _
  $region15: #{vae_forward.11} parent=0 // pred_check_branch
    %16 = sbr.rel (0) target = $region17
  $region16: #{vae_forward.11} parent=0 // pred_region
    _
  $region17: #{vae_forward.11} parent=0 // pred_fallthru
    _
  %v18 = vld [vmem:[%s0] sm:$0xff]
  %v19 = vld [vmem:[%s0 + $0x8] sm:$0xff]
  %v20 = vld [vmem:[%s0 + $0x10] sm:$0xf]
  %v21 = vld [vmem:[%s0 + $0x14] sm:$0xff]
  %v22 = vld [vmem:[%s0 + $0x1c] sm:$0xff]
  %v23 = vld [vmem:[%s0 + $0x24] sm:$0xf]
  %v24 = vld [vmem:[%s0 + $0x28] sm:$0xff]
  %v25 = vld [vmem:[%s0 + $0x30] sm:$0xff]
  %v26 = vld [vmem:[%s0 + $0x38] sm:$0xf]
  %v27 = vld [vmem:[%s0 + $0x3c] sm:$0xff]
  %v28 = vld [vmem:[%s0 + $0x44] sm:$0xff]
  %v29 = vld [vmem:[%s0 + $0x4c] sm:$0xf]
  %v30 = vld [vmem:[%s1] sm:$0xf]
  %v31 = vld [vmem:[%s1 + $0x4] sm:$0xf]
  %v32 = vld [vmem:[%s1 + $0x8] sm:$0xf]
  %v33 = vld [vmem:[%s1 + $0xc] sm:$0xf]
  %v34 = vld [vmem:[%s1 + $0x10] sm:$0xf]
  %v35 = vld [vmem:[%s1 + $0x14] sm:$0xf]
  %v36 = vld [vmem:[%s1 + $0x18] sm:$0xf]
  %v37 = vld [vmem:[%s1 + $0x1c] sm:$0xf]
  %v38 = vld [vmem:[%s1 + $0x20] sm:$0xf]
  %v39 = vld [vmem:[%s1 + $0x24] sm:$0xf]
  %v40 = vld [vmem:[%s1 + $0x28] sm:$0xf]
  %v41 = vld [vmem:[%s1 + $0x2c] sm:$0xf]
  %v42 = vld [vmem:[%s1 + $0x30] sm:$0xf]
  %v43 = vld [vmem:[%s1 + $0x34] sm:$0xf]
  %v44 = vld [vmem:[%s1 + $0x38] sm:$0xf]
  %v45 = vld [vmem:[%s1 + $0x3c] sm:$0xf]
  %v46 = vld [vmem:[%s1 + $0x40] sm:$0xf]
  %v47 = vld [vmem:[%s1 + $0x44] sm:$0xf]
  %v48 = vld [vmem:[%s1 + $0x48] sm:$0xf]
  %v49 = vld [vmem:[%s1 + $0x4c] sm:$0xf]
  %v50 = vld [vmem:[%s1 + $0x50] sm:$0xf]
  %v51 = vld [vmem:[%s1 + $0x54] sm:$0xf]
  %v52 = vld [vmem:[%s1 + $0x58] sm:$0xf]
  %v53 = vld [vmem:[%s1 + $0x5c] sm:$0xf]
  %v54 = vld [vmem:[%s1 + $0x60] sm:$0xf]
  %v55 = vld [vmem:[%s1 + $0x64] sm:$0xf]
  %v56 = vld [vmem:[%s1 + $0x68] sm:$0xf]
  %v57 = vld [vmem:[%s1 + $0x6c] sm:$0xf]
  %v58 = vld [vmem:[%s1 + $0x70] sm:$0xf]
  %v59 = vld [vmem:[%s1 + $0x74] sm:$0xf]
  %v60 = vld [vmem:[%s1 + $0x78] sm:$0xf]
  %v61 = vld [vmem:[%s1 + $0x7c] sm:$0xf]
  %v62 = vld [vmem:[%s1 + $0x80] sm:$0xf]
  %v63 = vld [vmem:[%s1 + $0x84] sm:$0xf]
  %v64 = vld [vmem:[%s1 + $0x88] sm:$0xf]
  %v65 = vld [vmem:[%s1 + $0x8c] sm:$0xf]
  %v66 = vld [vmem:[%s1 + $0x90] sm:$0xf]
  %v67 = vld [vmem:[%s1 + $0x94] sm:$0xf]
  %v68 = vld [vmem:[%s1 + $0x98] sm:$0xf]
  %v69 = vld [vmem:[%s1 + $0x9c] sm:$0xf]
  %v70 = vld [vmem:[%s1 + $0xa0] sm:$0xf]
  %v71 = vld [vmem:[%s1 + $0xa4] sm:$0xf]
  %v72 = vld [vmem:[%s1 + $0xa8] sm:$0xf]
  %v73 = vld [vmem:[%s1 + $0xac] sm:$0xf]
  %v74 = vld [vmem:[%s1 + $0xb0] sm:$0xf]
  %v75 = vld [vmem:[%s1 + $0xb4] sm:$0xf]
  %v76 = vld [vmem:[%s1 + $0xb8] sm:$0xf]
  %v77 = vld [vmem:[%s1 + $0xbc] sm:$0xf]
  %v78 = vld [vmem:[%s1 + $0xc0] sm:$0xf]
  %v79 = vld [vmem:[%s1 + $0xc4] sm:$0xf]
  %v80 = vld [vmem:[%s1 + $0xc8] sm:$0xf]
  %v81 = vld [vmem:[%s1 + $0xcc] sm:$0xf]
  %v82 = vld [vmem:[%s1 + $0xd0] sm:$0xf]
  %v83 = vld [vmem:[%s1 + $0xd4] sm:$0xf]
  %v84 = vld [vmem:[%s1 + $0xd8] sm:$0xf]
  %v85 = vld [vmem:[%s1 + $0xdc] sm:$0xf]
  %v86 = vld [vmem:[%s1 + $0xe0] sm:$0xf]
  %v87 = vld [vmem:[%s1 + $0xe4] sm:$0xf]
  %v88 = vld [vmem:[%s1 + $0xe8] sm:$0xf]
  %v89 = vld [vmem:[%s1 + $0xec] sm:$0xf]
  %v90 = vld [vmem:[%s1 + $0xf0] sm:$0xf]
  %v91 = vld [vmem:[%s1 + $0xf4] sm:$0xf]
  %v92 = vld [vmem:[%s1 + $0xf8] sm:$0xf]
  %v93 = vld [vmem:[%s1 + $0xfc] sm:$0xf]
  %v94 = vld [vmem:[%s1 + $0x100] sm:$0xf]
  %v95 = vld [vmem:[%s1 + $0x104] sm:$0xf]
  %v96 = vld [vmem:[%s1 + $0x108] sm:$0xf]
  %v97 = vld [vmem:[%s1 + $0x10c] sm:$0xf]
  %v98 = vld [vmem:[%s1 + $0x110] sm:$0xf]
  %v99 = vld [vmem:[%s1 + $0x114] sm:$0xf]
  %v100 = vld [vmem:[%s1 + $0x118] sm:$0xf]
  %v101 = vld [vmem:[%s1 + $0x11c] sm:$0xf]
  %v114 = vunpack.c.l.b16 %v18
  %v115 = vunpack.c.h.b16 %v18
  %v116 = vunpack.c.l.b16 %v19
  %v117 = vunpack.c.h.b16 %v19
  %v118 = vunpack.c.l.b16 %v20
  %v119 = vunpack.c.l.b16 %v21
  %v120 = vunpack.c.h.b16 %v21
  %v121 = vunpack.c.l.b16 %v22
  %v122 = vunpack.c.h.b16 %v22
  %v123 = vunpack.c.l.b16 %v23
  %v124 = vunpack.c.l.b16 %v24
  %v125 = vunpack.c.h.b16 %v24
  %v126 = vunpack.c.l.b16 %v25
  %v127 = vunpack.c.h.b16 %v25
  %v128 = vunpack.c.l.b16 %v26
  %v129 = vunpack.c.l.b16 %v27
  %v130 = vunpack.c.h.b16 %v27
  %v131 = vunpack.c.l.b16 %v28
  %v132 = vunpack.c.h.b16 %v28
  %v133 = vunpack.c.l.b16 %v29
  %v134 = vpack.c.b16 %v119, %v114
  %v135 = vpack.c.b16 %v120, %v115
  %v136 = vpack.c.b16 %v121, %v116
  %v137 = vpack.c.b16 %v122, %v117
  %v138 = vpack.c.b16 %v123, %v118
  %v139 = vpack.c.b16 %v129, %v124
  %v140 = vpack.c.b16 %v130, %v125
  %v141 = vpack.c.b16 %v131, %v126
  %v142 = vpack.c.b16 %v132, %v127
  %v143 = vpack.c.b16 %v133, %v128
  %v224 = vunpack.c.l.b16 %v30
  %v225 = vunpack.c.l.b16 %v31
  %v226 = vunpack.c.l.b16 %v32
  %v227 = vunpack.c.l.b16 %v33
  %v228 = vunpack.c.l.b16 %v34
  %v229 = vunpack.c.l.b16 %v35
  %v230 = vunpack.c.l.b16 %v36
  %v231 = vunpack.c.l.b16 %v37
  %v232 = vunpack.c.l.b16 %v38
  %v233 = vunpack.c.l.b16 %v39
  %v234 = vunpack.c.l.b16 %v40
  %v235 = vunpack.c.l.b16 %v41
  %v236 = vunpack.c.l.b16 %v42
  %v237 = vunpack.c.l.b16 %v43
  %v238 = vunpack.c.l.b16 %v44
  %v239 = vunpack.c.l.b16 %v45
  %v240 = vunpack.c.l.b16 %v46
  %v241 = vunpack.c.l.b16 %v47
  %v242 = vunpack.c.l.b16 %v48
  %v243 = vunpack.c.l.b16 %v49
  %v244 = vunpack.c.l.b16 %v50
  %v245 = vunpack.c.l.b16 %v51
  %v246 = vunpack.c.l.b16 %v52
  %v247 = vunpack.c.l.b16 %v53
  %v248 = vunpack.c.l.b16 %v54
  %v249 = vunpack.c.l.b16 %v55
  %v250 = vunpack.c.l.b16 %v56
  %v251 = vunpack.c.l.b16 %v57
  %v252 = vunpack.c.l.b16 %v58
  %v253 = vunpack.c.l.b16 %v59
  %v254 = vunpack.c.l.b16 %v60
  %v255 = vunpack.c.l.b16 %v61
  %v256 = vunpack.c.l.b16 %v62
  %v257 = vunpack.c.l.b16 %v63
  %v258 = vunpack.c.l.b16 %v64
  %v259 = vunpack.c.l.b16 %v65
  %v260 = vunpack.c.l.b16 %v66
  %v261 = vunpack.c.l.b16 %v67
  %v262 = vunpack.c.l.b16 %v68
  %v263 = vunpack.c.l.b16 %v69
  %v264 = vunpack.c.l.b16 %v70
  %v265 = vunpack.c.l.b16 %v71
  %v266 = vunpack.c.l.b16 %v72
  %v267 = vunpack.c.l.b16 %v73
  %v268 = vunpack.c.l.b16 %v74
  %v269 = vunpack.c.l.b16 %v75
  %v270 = vunpack.c.l.b16 %v76
  %v271 = vunpack.c.l.b16 %v77
  %v272 = vunpack.c.l.b16 %v78
  %v273 = vunpack.c.l.b16 %v79
  %v274 = vunpack.c.l.b16 %v80
  %v275 = vunpack.c.l.b16 %v81
  %v276 = vunpack.c.l.b16 %v82
  %v277 = vunpack.c.l.b16 %v83
  %v278 = vunpack.c.l.b16 %v84
  %v279 = vunpack.c.l.b16 %v85
  %v280 = vunpack.c.l.b16 %v86
  %v281 = vunpack.c.l.b16 %v87
  %v282 = vunpack.c.l.b16 %v88
  %v283 = vunpack.c.l.b16 %v89
  %v284 = vunpack.c.l.b16 %v90
  %v285 = vunpack.c.l.b16 %v91
  %v286 = vunpack.c.l.b16 %v92
  %v287 = vunpack.c.l.b16 %v93
  %v288 = vunpack.c.l.b16 %v94
  %v289 = vunpack.c.l.b16 %v95
  %v290 = vunpack.c.l.b16 %v96
  %v291 = vunpack.c.l.b16 %v97
  %v292 = vunpack.c.l.b16 %v98
  %v293 = vunpack.c.l.b16 %v99
  %v294 = vunpack.c.l.b16 %v100
  %v295 = vunpack.c.l.b16 %v101
  %v296 = vpack.c.b16 %v225, %v224
  %v297 = vpack.c.b16 %v227, %v226
  %v298 = vpack.c.b16 %v229, %v228
  %v299 = vpack.c.b16 %v231, %v230
  %v300 = vpack.c.b16 %v233, %v232
  %v301 = vpack.c.b16 %v235, %v234
  %v302 = vpack.c.b16 %v237, %v236
  %v303 = vpack.c.b16 %v239, %v238
  %v304 = vpack.c.b16 %v241, %v240
  %v305 = vpack.c.b16 %v243, %v242
  %v306 = vpack.c.b16 %v245, %v244
  %v307 = vpack.c.b16 %v247, %v246
  %v308 = vpack.c.b16 %v249, %v248
  %v309 = vpack.c.b16 %v251, %v250
  %v310 = vpack.c.b16 %v253, %v252
  %v311 = vpack.c.b16 %v255, %v254
  %v312 = vpack.c.b16 %v257, %v256
  %v313 = vpack.c.b16 %v259, %v258
  %v314 = vpack.c.b16 %v261, %v260
  %v315 = vpack.c.b16 %v263, %v262
  %v316 = vpack.c.b16 %v265, %v264
  %v317 = vpack.c.b16 %v267, %v266
  %v318 = vpack.c.b16 %v269, %v268
  %v319 = vpack.c.b16 %v271, %v270
  %v320 = vpack.c.b16 %v273, %v272
  %v321 = vpack.c.b16 %v275, %v274
  %v322 = vpack.c.b16 %v277, %v276
  %v323 = vpack.c.b16 %v279, %v278
  %v324 = vpack.c.b16 %v281, %v280
  %v325 = vpack.c.b16 %v283, %v282
  %v326 = vpack.c.b16 %v285, %v284
  %v327 = vpack.c.b16 %v287, %v286
  %v328 = vpack.c.b16 %v289, %v288
  %v329 = vpack.c.b16 %v291, %v290
  %v330 = vpack.c.b16 %v293, %v292
  %v331 = vpack.c.b16 %v295, %v294
  %vm368 = vcmask 523264
  %v370 = vsel %vm368, %v138, 0
  %v373 = vsel %vm368, %v143, 0
  %375 = vmatprep.subr.bf16.mxu0 0
  %376 = vmatpush1.bf16.msra.mxu0 %v296
  %377 = vmatprep.subr.bf16.mxu0 0
  %378 = vmatpush1.bf16.msra.mxu0 %v297
  %379 = vmatprep.subr.bf16.mxu0 0
  %380 = vmatpush1.bf16.msra.mxu0 %v298
  %381 = vmatprep.subr.bf16.mxu0 0
  %382 = vmatpush1.bf16.msra.mxu0 %v299
  %383 = vmatprep.subr.bf16.mxu0 0
  %384 = vmatpush1.bf16.msra.mxu0 %v300
  %385 = vmatprep.subr.bf16.mxu0 0
  %386 = vmatpush1.bf16.msra.mxu0 %v301
  %387 = vmatprep.subr.bf16.mxu0 0
  %388 = vmatpush1.bf16.msra.mxu0 %v302
  %389 = vmatprep.subr.bf16.mxu0 0
  %390 = vmatpush1.bf16.msra.mxu0 %v303
  %391 = vmatprep.subr.bf16.mxu0 0
  %392 = vmatpush1.bf16.msra.mxu0 %v304
  %393 = vmatprep.subr.bf16.mxu0 0
  %394 = vmatpush1.bf16.msra.mxu0 %v305
  %395 = vmatprep.subr.bf16.mxu0 0
  %396 = vmatpush1.bf16.msra.mxu0 %v306
  %397 = vmatprep.subr.bf16.mxu0 0
  %398 = vmatpush1.bf16.msra.mxu0 %v307
  %399 = vmatprep.subr.bf16.mxu0 0
  %400 = vmatpush1.bf16.msra.mxu0 %v308
  %401 = vmatprep.subr.bf16.mxu0 0
  %402 = vmatpush1.bf16.msra.mxu0 %v309
  %403 = vmatprep.subr.bf16.mxu0 0
  %404 = vmatpush1.bf16.msra.mxu0 %v310
  %405 = vmatprep.subr.bf16.mxu0 0
  %406 = vmatpush1.bf16.msra.mxu0 %v311
  %407 = vmatprep.mubr.bf16.mxu0 %v135
  %408 = vmatmul.mubr.bf16.gmra.mrb[0].mxu0 %v134
  %v409 = vpop.f32.mrb[0].mxu0
  %v410 = vadd.f32 0.0, %v409
  %v411 = vpop.f32.mrb[0].mxu0
  %v412 = vpop.f32.mrb[0].mxu0
  %v413 = vadd.f32 0.0, %v412
  %v414 = vpop.f32.mrb[0].mxu0
  %415 = vmatprep.mubr.bf16.mxu0 %v140
  %416 = vmatmul.mubr.bf16.gmra.mrb[0].mxu0 %v139
  %v417 = vpop.f32.mrb[0].mxu0
  %v418 = vadd.f32 0.0, %v417
  %v419 = vpop.f32.mrb[0].mxu0
  %v420 = vpop.f32.mrb[0].mxu0
  %v421 = vadd.f32 0.0, %v420
  %v422 = vpop.f32.mrb[0].mxu0
  %423 = vdwg.mxu0
  %424 = vmatprep.subr.bf16.mxu0 0
  %425 = vmatpush1.bf16.msra.mxu0 %v312
  %426 = vmatprep.subr.bf16.mxu0 0
  %427 = vmatpush1.bf16.msra.mxu0 %v313
  %428 = vmatprep.subr.bf16.mxu0 0
  %429 = vmatpush1.bf16.msra.mxu0 %v314
  %430 = vmatprep.subr.bf16.mxu0 0
  %431 = vmatpush1.bf16.msra.mxu0 %v315
  %432 = vmatprep.subr.bf16.mxu0 0
  %433 = vmatpush1.bf16.msra.mxu0 %v316
  %434 = vmatprep.subr.bf16.mxu0 0
  %435 = vmatpush1.bf16.msra.mxu0 %v317
  %436 = vmatprep.subr.bf16.mxu0 0
  %437 = vmatpush1.bf16.msra.mxu0 %v318
  %438 = vmatprep.subr.bf16.mxu0 0
  %439 = vmatpush1.bf16.msra.mxu0 %v319
  %440 = vmatprep.subr.bf16.mxu0 0
  %441 = vmatpush1.bf16.msra.mxu0 %v320
  %442 = vmatprep.subr.bf16.mxu0 0
  %443 = vmatpush1.bf16.msra.mxu0 %v321
  %444 = vmatprep.subr.bf16.mxu0 0
  %445 = vmatpush1.bf16.msra.mxu0 %v322
  %446 = vmatprep.subr.bf16.mxu0 0
  %447 = vmatpush1.bf16.msra.mxu0 %v323
  %448 = vmatprep.subr.bf16.mxu0 0
  %449 = vmatpush1.bf16.msra.mxu0 %v324
  %450 = vmatprep.subr.bf16.mxu0 0
  %451 = vmatpush1.bf16.msra.mxu0 %v325
  %452 = vmatprep.subr.bf16.mxu0 0
  %453 = vmatpush1.bf16.msra.mxu0 %v326
  %454 = vmatprep.subr.bf16.mxu0 0
  %455 = vmatpush1.bf16.msra.mxu0 %v327
  %456 = vmatprep.mubr.bf16.mxu0 %v137
  %457 = vmatmul.mubr.bf16.gmra.mrb[0].mxu0 %v136
  %v458 = vpop.f32.mrb[0].mxu0
  %v459 = vadd.f32 %v410, %v458
  %v460 = vpop.f32.mrb[0].mxu0
  %v461 = vpop.f32.mrb[0].mxu0
  %v462 = vadd.f32 %v413, %v461
  %v463 = vpop.f32.mrb[0].mxu0
  %464 = vmatprep.mubr.bf16.mxu0 %v142
  %465 = vmatmul.mubr.bf16.gmra.mrb[0].mxu0 %v141
  %v466 = vpop.f32.mrb[0].mxu0
  %v467 = vadd.f32 %v418, %v466
  %v468 = vpop.f32.mrb[0].mxu0
  %v469 = vpop.f32.mrb[0].mxu0
  %v470 = vadd.f32 %v421, %v469
  %v471 = vpop.f32.mrb[0].mxu0
  %472 = vdwg.mxu0
  %473 = vmatprep.subr.bf16.mxu0 0
  %474 = vmatpush1.bf16.msra.mxu0 %v328
  %475 = vmatprep.subr.bf16.mxu0 0
  %476 = vmatpush1.bf16.msra.mxu0 %v329
  %477 = vmatprep.subr.bf16.mxu0 0
  %478 = vmatpush1.bf16.msra.mxu0 %v330
  %479 = vmatprep.subr.bf16.mxu0 0
  %480 = vmatpush1.bf16.msra.mxu0 %v331
  %481 = vmatprep.subr.bf16.mxu0 0
  %482 = vmatpush1.bf16.msra.mxu0 0
  %483 = vmatprep.subr.bf16.mxu0 0
  %484 = vmatpush1.bf16.msra.mxu0 0
  %485 = vmatprep.subr.bf16.mxu0 0
  %486 = vmatpush1.bf16.msra.mxu0 0
  %487 = vmatprep.subr.bf16.mxu0 0
  %488 = vmatpush1.bf16.msra.mxu0 0
  %489 = vmatprep.subr.bf16.mxu0 0
  %490 = vmatpush1.bf16.msra.mxu0 0
  %491 = vmatprep.subr.bf16.mxu0 0
  %492 = vmatpush1.bf16.msra.mxu0 0
  %493 = vmatprep.subr.bf16.mxu0 0
  %494 = vmatpush1.bf16.msra.mxu0 0
  %495 = vmatprep.subr.bf16.mxu0 0
  %496 = vmatpush1.bf16.msra.mxu0 0
  %497 = vmatprep.subr.bf16.mxu0 0
  %498 = vmatpush1.bf16.msra.mxu0 0
  %499 = vmatprep.subr.bf16.mxu0 0
  %500 = vmatpush1.bf16.msra.mxu0 0
  %501 = vmatprep.subr.bf16.mxu0 0
  %502 = vmatpush1.bf16.msra.mxu0 0
  %503 = vmatprep.subr.bf16.mxu0 0
  %504 = vmatpush1.bf16.msra.mxu0 0
  %505 = vmatprep.mubr.bf16.mxu0 0
  %506 = vmatmul.mubr.bf16.gmra.mrb[0].mxu0 %v370
  %v507 = vpop.f32.mrb[0].mxu0
  %v508 = vadd.f32 %v459, %v507
  %v509 = vpop.f32.mrb[0].mxu0
  %v510 = vpop.f32.mrb[0].mxu0
  %v511 = vadd.f32 %v462, %v510
  %v512 = vpop.f32.mrb[0].mxu0
  %513 = vmatprep.mubr.bf16.mxu0 0
  %514 = vmatmul.mubr.bf16.gmra.mrb[0].mxu0 %v373
  %v515 = vpop.f32.mrb[0].mxu0
  %v516 = vadd.f32 %v467, %v515
  %v517 = vpop.f32.mrb[0].mxu0
  %v518 = vpop.f32.mrb[0].mxu0
  %v519 = vadd.f32 %v470, %v518
  %v520 = vpop.f32.mrb[0].mxu0
  %521 = vdwg.mxu0
  %v522 = vld [vmem:[%s2] sm:$0x1]
  %v524 = vlaneseq
  %v525 = vshrl.u32 %v524, 7
  %v526 = vsub.s32 0, %v525
  %v527 = vrot.slane %v522, %v526
  %v529 = vmul.f32 %v508, %v527
  %v530 = vmul.f32 %v511, %v527
  %v531 = vmul.f32 %v516, %v527
  %v532 = vmul.f32 %v519, %v527
  %v533 = vld [vmem:[%s3] sm:$0x1]
  %v535 = vlaneseq
  %v536 = vshrl.u32 %v535, 7
  %v537 = vsub.s32 0, %v536
  %v538 = vrot.slane %v533, %v537
  %v540 = vadd.f32 %v529, %v538
  %v541 = vadd.f32 %v530, %v538
  %v542 = vadd.f32 %v531, %v538
  %v543 = vadd.f32 %v532, %v538
  %vm544 = vcmp.gt.f32.partialorder %v540, 0.0
  %vm545 = vcmp.gt.f32.partialorder %v541, 0.0
  %vm546 = vcmp.gt.f32.partialorder %v542, 0.0
  %vm547 = vcmp.gt.f32.partialorder %v543, 0.0
  %v548 = vmul.f32 %v540, 0.1
  %v549 = vmul.f32 %v541, 0.1
  %v550 = vmul.f32 %v542, 0.1
  %v551 = vmul.f32 %v543, 0.1
  %v552 = vsel %vm544, %v540, %v548
  %v553 = vsel %vm545, %v541, %v549
  %v554 = vsel %vm546, %v542, %v550
  %v555 = vsel %vm547, %v543, %v551
  %v556 = vpack.c.bf16 %v553, %v552
  %v557 = vpack.c.bf16 %v555, %v554
  %v560 = vunpack.c.l.b16 %v556
  %v561 = vunpack.c.h.b16 %v556
  %v562 = vunpack.c.l.b16 %v557
  %v563 = vunpack.c.h.b16 %v557
  %v564 = vpack.c.b16 %v560, %v560
  %v565 = vpack.c.b16 %v561, %v561
  %v566 = vpack.c.b16 %v562, %v562
  %v567 = vpack.c.b16 %v563, %v563
  %vm572 = vcmask 519168
  %573 = vst.msk [vmem:[%s4] sm:$0xf] %vm572, %v564
  %574 = vst.msk [vmem:[%s4 + $0x4] sm:$0xf] %vm572, %v565
  %575 = vst.msk [vmem:[%s4 + $0x8] sm:$0xf] %vm572, %v566
  %576 = vst.msk [vmem:[%s4 + $0xc] sm:$0xf] %vm572, %v567
  // Predicated region
  $region18: #{vae_forward.11} parent=0 // pred_check
    _
  $region19: #{vae_forward.11} parent=0 // pred_check_branch
    %578 = sbr.rel (0) target = $region21
  $region20: #{vae_forward.11} parent=0 // pred_region
    _
  $region21: #{vae_forward.11} parent=0 // pred_fallthru
    _
  // Predicated region
  $region22: #{vae_forward.11} parent=0 // pred_check
    _
  $region23: #{vae_forward.11} parent=0 // pred_check_branch
    %580 = sbr.rel (0) target = $region25
  $region24: #{vae_forward.11} parent=0 // pred_region
    _
  $region25: #{vae_forward.11} parent=0 // pred_fallthru
    _

// kernel: vae_forward.12
$region0: #{vae_forward.12}
  #allocation0 [shape = 'u32[]', space=smem, size = 0x4, offset = 0x4, fixed_abs, tag = 'smem constant byte address 0x4 - core index']
  #allocation1 [shape = 'u32[144,128]{1,0:T(1,128)}', space=vmem, size = 0x12000, scoped, tag = 'internal scratch']
  %s0 = inlined_call_operand.vmem [shape: bf16[8,576], index: 0, kind: input, shape index: {}]
  %s1 = inlined_call_operand.vmem [shape: bf16[576,64], index: 1, kind: input, shape index: {}]
  %s2 = inlined_call_operand.vmem [shape: f32[1,64], index: 2, kind: input, shape index: {}]
  %s3 = inlined_call_operand.vmem [shape: f32[1,64], index: 3, kind: input, shape index: {}]
  %s4 = inlined_call_operand.vmem [shape: bf16[8,64], index: 4, kind: output, shape index: {}]
  %s5 = sld [smem:[#allocation0]]
  $region26: #{vae_forward.12} parent=0
    _
  %s7 = ssub.s32 1, %s5
  %s8 = scalar_select 0, %s7, %s5
  // Predicated region
  $region2: #{vae_forward.12} parent=0 // pred_check
    _
  $region3: #{vae_forward.12} parent=0 // pred_check_branch
    %10 = sbr.rel (0) target = $region5
  $region4: #{vae_forward.12} parent=0 // pred_region
    _
  $region5: #{vae_forward.12} parent=0 // pred_fallthru
    _
  // Predicated region
  $region6: #{vae_forward.12} parent=0 // pred_check
    _
  $region7: #{vae_forward.12} parent=0 // pred_check_branch
    %12 = sbr.rel (0) target = $region9
  $region8: #{vae_forward.12} parent=0 // pred_region
    _
  $region9: #{vae_forward.12} parent=0 // pred_fallthru
    _
  // Predicated region
  $region10: #{vae_forward.12} parent=0 // pred_check
    _
  $region11: #{vae_forward.12} parent=0 // pred_check_branch
    %14 = sbr.rel (0) target = $region13
  $region12: #{vae_forward.12} parent=0 // pred_region
    _
  $region13: #{vae_forward.12} parent=0 // pred_fallthru
    _
  // Predicated region
  $region14: #{vae_forward.12} parent=0 // pred_check
    _
  $region15: #{vae_forward.12} parent=0 // pred_check_branch
    %16 = sbr.rel (0) target = $region17
  $region16: #{vae_forward.12} parent=0 // pred_region
    _
  $region17: #{vae_forward.12} parent=0 // pred_fallthru
    _
  %v18 = vld [vmem:[%s0] sm:$0xff]
  %v19 = vld [vmem:[%s0 + $0x8] sm:$0xff]
  %v20 = vld [vmem:[%s0 + $0x10] sm:$0xf]
  %v21 = vld [vmem:[%s1] sm:$0xf]
  %v22 = vld [vmem:[%s1 + $0x4] sm:$0xf]
  %v23 = vld [vmem:[%s1 + $0x8] sm:$0xf]
  %v24 = vld [vmem:[%s1 + $0xc] sm:$0xf]
  %v25 = vld [vmem:[%s1 + $0x10] sm:$0xf]
  %v26 = vld [vmem:[%s1 + $0x14] sm:$0xf]
  %v27 = vld [vmem:[%s1 + $0x18] sm:$0xf]
  %v28 = vld [vmem:[%s1 + $0x1c] sm:$0xf]
  %v29 = vld [vmem:[%s1 + $0x20] sm:$0xf]
  %v30 = vld [vmem:[%s1 + $0x24] sm:$0xf]
  %v31 = vld [vmem:[%s1 + $0x28] sm:$0xf]
  %v32 = vld [vmem:[%s1 + $0x2c] sm:$0xf]
  %v33 = vld [vmem:[%s1 + $0x30] sm:$0xf]
  %v34 = vld [vmem:[%s1 + $0x34] sm:$0xf]
  %v35 = vld [vmem:[%s1 + $0x38] sm:$0xf]
  %v36 = vld [vmem:[%s1 + $0x3c] sm:$0xf]
  %v37 = vld [vmem:[%s1 + $0x40] sm:$0xf]
  %v38 = vld [vmem:[%s1 + $0x44] sm:$0xf]
  %v39 = vld [vmem:[%s1 + $0x48] sm:$0xf]
  %v40 = vld [vmem:[%s1 + $0x4c] sm:$0xf]
  %v41 = vld [vmem:[%s1 + $0x50] sm:$0xf]
  %v42 = vld [vmem:[%s1 + $0x54] sm:$0xf]
  %v43 = vld [vmem:[%s1 + $0x58] sm:$0xf]
  %v44 = vld [vmem:[%s1 + $0x5c] sm:$0xf]
  %v45 = vld [vmem:[%s1 + $0x60] sm:$0xf]
  %v46 = vld [vmem:[%s1 + $0x64] sm:$0xf]
  %v47 = vld [vmem:[%s1 + $0x68] sm:$0xf]
  %v48 = vld [vmem:[%s1 + $0x6c] sm:$0xf]
  %v49 = vld [vmem:[%s1 + $0x70] sm:$0xf]
  %v50 = vld [vmem:[%s1 + $0x74] sm:$0xf]
  %v51 = vld [vmem:[%s1 + $0x78] sm:$0xf]
  %v52 = vld [vmem:[%s1 + $0x7c] sm:$0xf]
  %v53 = vld [vmem:[%s1 + $0x80] sm:$0xf]
  %v54 = vld [vmem:[%s1 + $0x84] sm:$0xf]
  %v55 = vld [vmem:[%s1 + $0x88] sm:$0xf]
  %v56 = vld [vmem:[%s1 + $0x8c] sm:$0xf]
  %v57 = vld [vmem:[%s1 + $0x90] sm:$0xf]
  %v58 = vld [vmem:[%s1 + $0x94] sm:$0xf]
  %v59 = vld [vmem:[%s1 + $0x98] sm:$0xf]
  %v60 = vld [vmem:[%s1 + $0x9c] sm:$0xf]
  %v61 = vld [vmem:[%s1 + $0xa0] sm:$0xf]
  %v62 = vld [vmem:[%s1 + $0xa4] sm:$0xf]
  %v63 = vld [vmem:[%s1 + $0xa8] sm:$0xf]
  %v64 = vld [vmem:[%s1 + $0xac] sm:$0xf]
  %v65 = vld [vmem:[%s1 + $0xb0] sm:$0xf]
  %v66 = vld [vmem:[%s1 + $0xb4] sm:$0xf]
  %v67 = vld [vmem:[%s1 + $0xb8] sm:$0xf]
  %v68 = vld [vmem:[%s1 + $0xbc] sm:$0xf]
  %v69 = vld [vmem:[%s1 + $0xc0] sm:$0xf]
  %v70 = vld [vmem:[%s1 + $0xc4] sm:$0xf]
  %v71 = vld [vmem:[%s1 + $0xc8] sm:$0xf]
  %v72 = vld [vmem:[%s1 + $0xcc] sm:$0xf]
  %v73 = vld [vmem:[%s1 + $0xd0] sm:$0xf]
  %v74 = vld [vmem:[%s1 + $0xd4] sm:$0xf]
  %v75 = vld [vmem:[%s1 + $0xd8] sm:$0xf]
  %v76 = vld [vmem:[%s1 + $0xdc] sm:$0xf]
  %v77 = vld [vmem:[%s1 + $0xe0] sm:$0xf]
  %v78 = vld [vmem:[%s1 + $0xe4] sm:$0xf]
  %v79 = vld [vmem:[%s1 + $0xe8] sm:$0xf]
  %v80 = vld [vmem:[%s1 + $0xec] sm:$0xf]
  %v81 = vld [vmem:[%s1 + $0xf0] sm:$0xf]
  %v82 = vld [vmem:[%s1 + $0xf4] sm:$0xf]
  %v83 = vld [vmem:[%s1 + $0xf8] sm:$0xf]
  %v84 = vld [vmem:[%s1 + $0xfc] sm:$0xf]
  %v85 = vld [vmem:[%s1 + $0x100] sm:$0xf]
  %v86 = vld [vmem:[%s1 + $0x104] sm:$0xf]
  %v87 = vld [vmem:[%s1 + $0x108] sm:$0xf]
  %v88 = vld [vmem:[%s1 + $0x10c] sm:$0xf]
  %v89 = vld [vmem:[%s1 + $0x110] sm:$0xf]
  %v90 = vld [vmem:[%s1 + $0x114] sm:$0xf]
  %v91 = vld [vmem:[%s1 + $0x118] sm:$0xf]
  %v92 = vld [vmem:[%s1 + $0x11c] sm:$0xf]
  %v96 = vunpack.c.l.b16 %v18
  %v97 = vunpack.c.h.b16 %v18
  %v98 = vunpack.c.l.b16 %v19
  %v99 = vunpack.c.h.b16 %v19
  %v100 = vunpack.c.l.b16 %v20
  %v101 = vpack.c.b16 %v96, %v96
  %v102 = vpack.c.b16 %v97, %v97
  %v103 = vpack.c.b16 %v98, %v98
  %v104 = vpack.c.b16 %v99, %v99
  %v105 = vpack.c.b16 %v100, %v100
  %v182 = vunpack.c.l.b16 %v21
  %v183 = vunpack.c.l.b16 %v22
  %v184 = vunpack.c.l.b16 %v23
  %v185 = vunpack.c.l.b16 %v24
  %v186 = vunpack.c.l.b16 %v25
  %v187 = vunpack.c.l.b16 %v26
  %v188 = vunpack.c.l.b16 %v27
  %v189 = vunpack.c.l.b16 %v28
  %v190 = vunpack.c.l.b16 %v29
  %v191 = vunpack.c.l.b16 %v30
  %v192 = vunpack.c.l.b16 %v31
  %v193 = vunpack.c.l.b16 %v32
  %v194 = vunpack.c.l.b16 %v33
  %v195 = vunpack.c.l.b16 %v34
  %v196 = vunpack.c.l.b16 %v35
  %v197 = vunpack.c.l.b16 %v36
  %v198 = vunpack.c.l.b16 %v37
  %v199 = vunpack.c.l.b16 %v38
  %v200 = vunpack.c.l.b16 %v39
  %v201 = vunpack.c.l.b16 %v40
  %v202 = vunpack.c.l.b16 %v41
  %v203 = vunpack.c.l.b16 %v42
  %v204 = vunpack.c.l.b16 %v43
  %v205 = vunpack.c.l.b16 %v44
  %v206 = vunpack.c.l.b16 %v45
  %v207 = vunpack.c.l.b16 %v46
  %v208 = vunpack.c.l.b16 %v47
  %v209 = vunpack.c.l.b16 %v48
  %v210 = vunpack.c.l.b16 %v49
  %v211 = vunpack.c.l.b16 %v50
  %v212 = vunpack.c.l.b16 %v51
  %v213 = vunpack.c.l.b16 %v52
  %v214 = vunpack.c.l.b16 %v53
  %v215 = vunpack.c.l.b16 %v54
  %v216 = vunpack.c.l.b16 %v55
  %v217 = vunpack.c.l.b16 %v56
  %v218 = vunpack.c.l.b16 %v57
  %v219 = vunpack.c.l.b16 %v58
  %v220 = vunpack.c.l.b16 %v59
  %v221 = vunpack.c.l.b16 %v60
  %v222 = vunpack.c.l.b16 %v61
  %v223 = vunpack.c.l.b16 %v62
  %v224 = vunpack.c.l.b16 %v63
  %v225 = vunpack.c.l.b16 %v64
  %v226 = vunpack.c.l.b16 %v65
  %v227 = vunpack.c.l.b16 %v66
  %v228 = vunpack.c.l.b16 %v67
  %v229 = vunpack.c.l.b16 %v68
  %v230 = vunpack.c.l.b16 %v69
  %v231 = vunpack.c.l.b16 %v70
  %v232 = vunpack.c.l.b16 %v71
  %v233 = vunpack.c.l.b16 %v72
  %v234 = vunpack.c.l.b16 %v73
  %v235 = vunpack.c.l.b16 %v74
  %v236 = vunpack.c.l.b16 %v75
  %v237 = vunpack.c.l.b16 %v76
  %v238 = vunpack.c.l.b16 %v77
  %v239 = vunpack.c.l.b16 %v78
  %v240 = vunpack.c.l.b16 %v79
  %v241 = vunpack.c.l.b16 %v80
  %v242 = vunpack.c.l.b16 %v81
  %v243 = vunpack.c.l.b16 %v82
  %v244 = vunpack.c.l.b16 %v83
  %v245 = vunpack.c.l.b16 %v84
  %v246 = vunpack.c.l.b16 %v85
  %v247 = vunpack.c.l.b16 %v86
  %v248 = vunpack.c.l.b16 %v87
  %v249 = vunpack.c.l.b16 %v88
  %v250 = vunpack.c.l.b16 %v89
  %v251 = vunpack.c.l.b16 %v90
  %v252 = vunpack.c.l.b16 %v91
  %v253 = vunpack.c.l.b16 %v92
  %v254 = vpack.c.b16 %v183, %v182
  %v255 = vpack.c.b16 %v185, %v184
  %v256 = vpack.c.b16 %v187, %v186
  %v257 = vpack.c.b16 %v189, %v188
  %v258 = vpack.c.b16 %v191, %v190
  %v259 = vpack.c.b16 %v193, %v192
  %v260 = vpack.c.b16 %v195, %v194
  %v261 = vpack.c.b16 %v197, %v196
  %v262 = vpack.c.b16 %v199, %v198
  %v263 = vpack.c.b16 %v201, %v200
  %v264 = vpack.c.b16 %v203, %v202
  %v265 = vpack.c.b16 %v205, %v204
  %v266 = vpack.c.b16 %v207, %v206
  %v267 = vpack.c.b16 %v209, %v208
  %v268 = vpack.c.b16 %v211, %v210
  %v269 = vpack.c.b16 %v213, %v212
  %v270 = vpack.c.b16 %v215, %v214
  %v271 = vpack.c.b16 %v217, %v216
  %v272 = vpack.c.b16 %v219, %v218
  %v273 = vpack.c.b16 %v221, %v220
  %v274 = vpack.c.b16 %v223, %v222
  %v275 = vpack.c.b16 %v225, %v224
  %v276 = vpack.c.b16 %v227, %v226
  %v277 = vpack.c.b16 %v229, %v228
  %v278 = vpack.c.b16 %v231, %v230
  %v279 = vpack.c.b16 %v233, %v232
  %v280 = vpack.c.b16 %v235, %v234
  %v281 = vpack.c.b16 %v237, %v236
  %v282 = vpack.c.b16 %v239, %v238
  %v283 = vpack.c.b16 %v241, %v240
  %v284 = vpack.c.b16 %v243, %v242
  %v285 = vpack.c.b16 %v245, %v244
  %v286 = vpack.c.b16 %v247, %v246
  %v287 = vpack.c.b16 %v249, %v248
  %v288 = vpack.c.b16 %v251, %v250
  %v289 = vpack.c.b16 %v253, %v252
  %vm326 = vcmask 523264
  %v328 = vsel %vm326, %v105, 0
  %330 = vmatprep.subr.bf16.mxu0 0
  %331 = vmatpush1.bf16.msra.mxu0 %v254
  %332 = vmatprep.subr.bf16.mxu0 0
  %333 = vmatpush1.bf16.msra.mxu0 %v255
  %334 = vmatprep.subr.bf16.mxu0 0
  %335 = vmatpush1.bf16.msra.mxu0 %v256
  %336 = vmatprep.subr.bf16.mxu0 0
  %337 = vmatpush1.bf16.msra.mxu0 %v257
  %338 = vmatprep.subr.bf16.mxu0 0
  %339 = vmatpush1.bf16.msra.mxu0 %v258
  %340 = vmatprep.subr.bf16.mxu0 0
  %341 = vmatpush1.bf16.msra.mxu0 %v259
  %342 = vmatprep.subr.bf16.mxu0 0
  %343 = vmatpush1.bf16.msra.mxu0 %v260
  %344 = vmatprep.subr.bf16.mxu0 0
  %345 = vmatpush1.bf16.msra.mxu0 %v261
  %346 = vmatprep.subr.bf16.mxu0 0
  %347 = vmatpush1.bf16.msra.mxu0 %v262
  %348 = vmatprep.subr.bf16.mxu0 0
  %349 = vmatpush1.bf16.msra.mxu0 %v263
  %350 = vmatprep.subr.bf16.mxu0 0
  %351 = vmatpush1.bf16.msra.mxu0 %v264
  %352 = vmatprep.subr.bf16.mxu0 0
  %353 = vmatpush1.bf16.msra.mxu0 %v265
  %354 = vmatprep.subr.bf16.mxu0 0
  %355 = vmatpush1.bf16.msra.mxu0 %v266
  %356 = vmatprep.subr.bf16.mxu0 0
  %357 = vmatpush1.bf16.msra.mxu0 %v267
  %358 = vmatprep.subr.bf16.mxu0 0
  %359 = vmatpush1.bf16.msra.mxu0 %v268
  %360 = vmatprep.subr.bf16.mxu0 0
  %361 = vmatpush1.bf16.msra.mxu0 %v269
  %362 = vmatprep.mubr.bf16.mxu0 %v102
  %363 = vmatmul.mubr.bf16.gmra.mrb[0].mxu0 %v101
  %v364 = vpop.f32.mrb[0].mxu0
  %v365 = vadd.f32 0.0, %v364
  %v366 = vpop.f32.mrb[0].mxu0
  %v367 = vpop.f32.mrb[0].mxu0
  %v368 = vpop.f32.mrb[0].mxu0
  %369 = vdwg.mxu0
  %370 = vmatprep.subr.bf16.mxu0 0
  %371 = vmatpush1.bf16.msra.mxu0 %v270
  %372 = vmatprep.subr.bf16.mxu0 0
  %373 = vmatpush1.bf16.msra.mxu0 %v271
  %374 = vmatprep.subr.bf16.mxu0 0
  %375 = vmatpush1.bf16.msra.mxu0 %v272
  %376 = vmatprep.subr.bf16.mxu0 0
  %377 = vmatpush1.bf16.msra.mxu0 %v273
  %378 = vmatprep.subr.bf16.mxu0 0
  %379 = vmatpush1.bf16.msra.mxu0 %v274
  %380 = vmatprep.subr.bf16.mxu0 0
  %381 = vmatpush1.bf16.msra.mxu0 %v275
  %382 = vmatprep.subr.bf16.mxu0 0
  %383 = vmatpush1.bf16.msra.mxu0 %v276
  %384 = vmatprep.subr.bf16.mxu0 0
  %385 = vmatpush1.bf16.msra.mxu0 %v277
  %386 = vmatprep.subr.bf16.mxu0 0
  %387 = vmatpush1.bf16.msra.mxu0 %v278
  %388 = vmatprep.subr.bf16.mxu0 0
  %389 = vmatpush1.bf16.msra.mxu0 %v279
  %390 = vmatprep.subr.bf16.mxu0 0
  %391 = vmatpush1.bf16.msra.mxu0 %v280
  %392 = vmatprep.subr.bf16.mxu0 0
  %393 = vmatpush1.bf16.msra.mxu0 %v281
  %394 = vmatprep.subr.bf16.mxu0 0
  %395 = vmatpush1.bf16.msra.mxu0 %v282
  %396 = vmatprep.subr.bf16.mxu0 0
  %397 = vmatpush1.bf16.msra.mxu0 %v283
  %398 = vmatprep.subr.bf16.mxu0 0
  %399 = vmatpush1.bf16.msra.mxu0 %v284
  %400 = vmatprep.subr.bf16.mxu0 0
  %401 = vmatpush1.bf16.msra.mxu0 %v285
  %402 = vmatprep.mubr.bf16.mxu0 %v104
  %403 = vmatmul.mubr.bf16.gmra.mrb[0].mxu0 %v103
  %v404 = vpop.f32.mrb[0].mxu0
  %v405 = vadd.f32 %v365, %v404
  %v406 = vpop.f32.mrb[0].mxu0
  %v407 = vpop.f32.mrb[0].mxu0
  %v408 = vpop.f32.mrb[0].mxu0
  %409 = vdwg.mxu0
  %410 = vmatprep.subr.bf16.mxu0 0
  %411 = vmatpush1.bf16.msra.mxu0 %v286
  %412 = vmatprep.subr.bf16.mxu0 0
  %413 = vmatpush1.bf16.msra.mxu0 %v287
  %414 = vmatprep.subr.bf16.mxu0 0
  %415 = vmatpush1.bf16.msra.mxu0 %v288
  %416 = vmatprep.subr.bf16.mxu0 0
  %417 = vmatpush1.bf16.msra.mxu0 %v289
  %418 = vmatprep.subr.bf16.mxu0 0
  %419 = vmatpush1.bf16.msra.mxu0 0
  %420 = vmatprep.subr.bf16.mxu0 0
  %421 = vmatpush1.bf16.msra.mxu0 0
  %422 = vmatprep.subr.bf16.mxu0 0
  %423 = vmatpush1.bf16.msra.mxu0 0
  %424 = vmatprep.subr.bf16.mxu0 0
  %425 = vmatpush1.bf16.msra.mxu0 0
  %426 = vmatprep.subr.bf16.mxu0 0
  %427 = vmatpush1.bf16.msra.mxu0 0
  %428 = vmatprep.subr.bf16.mxu0 0
  %429 = vmatpush1.bf16.msra.mxu0 0
  %430 = vmatprep.subr.bf16.mxu0 0
  %431 = vmatpush1.bf16.msra.mxu0 0
  %432 = vmatprep.subr.bf16.mxu0 0
  %433 = vmatpush1.bf16.msra.mxu0 0
  %434 = vmatprep.subr.bf16.mxu0 0
  %435 = vmatpush1.bf16.msra.mxu0 0
  %436 = vmatprep.subr.bf16.mxu0 0
  %437 = vmatpush1.bf16.msra.mxu0 0
  %438 = vmatprep.subr.bf16.mxu0 0
  %439 = vmatpush1.bf16.msra.mxu0 0
  %440 = vmatprep.subr.bf16.mxu0 0
  %441 = vmatpush1.bf16.msra.mxu0 0
  %442 = vmatprep.mubr.bf16.mxu0 0
  %443 = vmatmul.mubr.bf16.gmra.mrb[0].mxu0 %v328
  %v444 = vpop.f32.mrb[0].mxu0
  %v445 = vadd.f32 %v405, %v444
  %v446 = vpop.f32.mrb[0].mxu0
  %v447 = vpop.f32.mrb[0].mxu0
  %v448 = vpop.f32.mrb[0].mxu0
  %449 = vdwg.mxu0
  %v450 = vld [vmem:[%s2] sm:$0x1]
  %v452 = vlaneseq
  %v453 = vshrl.u32 %v452, 7
  %v454 = vsub.s32 0, %v453
  %v455 = vrot.slane %v450, %v454
  %v457 = vmul.f32 %v445, %v455
  %v458 = vld [vmem:[%s3] sm:$0x1]
  %v460 = vlaneseq
  %v461 = vshrl.u32 %v460, 7
  %v462 = vsub.s32 0, %v461
  %v463 = vrot.slane %v458, %v462
  %v465 = vadd.f32 %v457, %v463
  %vm466 = vcmp.gt.f32.partialorder %v465, 0.0
  %v467 = vmul.f32 %v465, 0.1
  %v468 = vsel %vm466, %v465, %v467
  %v469 = vpack.c.bf16 %v468, %v468
  %vm470 = vcmask 519168
  %471 = vst.msk [vmem:[%s4] sm:$0xf] %vm470, %v469
  // Predicated region
  $region18: #{vae_forward.12} parent=0 // pred_check
    _
  $region19: #{vae_forward.12} parent=0 // pred_check_branch
    %473 = sbr.rel (0) target = $region21
  $region20: #{vae_forward.12} parent=0 // pred_region
    _
  $region21: #{vae_forward.12} parent=0 // pred_fallthru
    _
  // Predicated region
  $region22: #{vae_forward.12} parent=0 // pred_check
    _
  $region23: #{vae_forward.12} parent=0 // pred_check_branch
    %475 = sbr.rel (0) target = $region25
  $region24: #{vae_forward.12} parent=0 // pred_region
    _
  $region25: #{vae_forward.12} parent=0 // pred_fallthru
    _

// kernel: vae_forward.13
$region0: #{vae_forward.13}
  #allocation0 [shape = 'u32[]', space=smem, size = 0x4, offset = 0x4, fixed_abs, tag = 'smem constant byte address 0x4 - core index']
  #allocation1 [shape = 'u32[144,128]{1,0:T(1,128)}', space=vmem, size = 0x12000, scoped, tag = 'internal scratch']
  %s0 = inlined_call_operand.vmem [shape: bf16[8,256], index: 0, kind: input, shape index: {}]
  %s1 = inlined_call_operand.vmem [shape: f32[256,16], index: 1, kind: input, shape index: {}]
  %s2 = inlined_call_operand.vmem [shape: f32[1,16], index: 2, kind: input, shape index: {}]
  %s3 = inlined_call_operand.vmem [shape: f32[256,16], index: 3, kind: input, shape index: {}]
  %s4 = inlined_call_operand.vmem [shape: f32[1,16], index: 4, kind: input, shape index: {}]
  %s5 = inlined_call_operand.vmem [shape: f32[8,16], index: 5, kind: input, shape index: {}]
  %s6 = inlined_call_operand.vmem [shape: f32[16,256], index: 6, kind: input, shape index: {}]
  %s7 = inlined_call_operand.vmem [shape: f32[1,256], index: 7, kind: input, shape index: {}]
  %s8 = inlined_call_operand.vmem [shape: f32[8,16], index: 8, kind: output, shape index: {0}]
  %s9 = inlined_call_operand.vmem [shape: f32[8,16], index: 9, kind: output, shape index: {1}]
  %s10 = inlined_call_operand.vmem [shape: f32[8,16], index: 10, kind: output, shape index: {2}]
  %s11 = inlined_call_operand.vmem [shape: bf16[8,256], index: 11, kind: output, shape index: {3}]
  %12 = xla_tuple %s8, %s9, %s10, %s11
  %s13 = sld [smem:[#allocation0]]
  $region66: #{vae_forward.13} parent=0
    _
  %s15 = ssub.s32 1, %s13
  %s16 = scalar_select 0, %s15, %s13
  // Predicated region
  $region2: #{vae_forward.13} parent=0 // pred_check
    _
  $region3: #{vae_forward.13} parent=0 // pred_check_branch
    %18 = sbr.rel (0) target = $region5
  $region4: #{vae_forward.13} parent=0 // pred_region
    _
  $region5: #{vae_forward.13} parent=0 // pred_fallthru
    _
  // Predicated region
  $region6: #{vae_forward.13} parent=0 // pred_check
    _
  $region7: #{vae_forward.13} parent=0 // pred_check_branch
    %20 = sbr.rel (0) target = $region9
  $region8: #{vae_forward.13} parent=0 // pred_region
    _
  $region9: #{vae_forward.13} parent=0 // pred_fallthru
    _
  // Predicated region
  $region10: #{vae_forward.13} parent=0 // pred_check
    _
  $region11: #{vae_forward.13} parent=0 // pred_check_branch
    %22 = sbr.rel (0) target = $region13
  $region12: #{vae_forward.13} parent=0 // pred_region
    _
  $region13: #{vae_forward.13} parent=0 // pred_fallthru
    _
  // Predicated region
  $region14: #{vae_forward.13} parent=0 // pred_check
    _
  $region15: #{vae_forward.13} parent=0 // pred_check_branch
    %24 = sbr.rel (0) target = $region17
  $region16: #{vae_forward.13} parent=0 // pred_region
    _
  $region17: #{vae_forward.13} parent=0 // pred_fallthru
    _
  // Predicated region
  $region18: #{vae_forward.13} parent=0 // pred_check
    _
  $region19: #{vae_forward.13} parent=0 // pred_check_branch
    %26 = sbr.rel (0) target = $region21
  $region20: #{vae_forward.13} parent=0 // pred_region
    _
  $region21: #{vae_forward.13} parent=0 // pred_fallthru
    _
  // Predicated region
  $region22: #{vae_forward.13} parent=0 // pred_check
    _
  $region23: #{vae_forward.13} parent=0 // pred_check_branch
    %28 = sbr.rel (0) target = $region25
  $region24: #{vae_forward.13} parent=0 // pred_region
    _
  $region25: #{vae_forward.13} parent=0 // pred_fallthru
    _
  // Predicated region
  $region26: #{vae_forward.13} parent=0 // pred_check
    _
  $region27: #{vae_forward.13} parent=0 // pred_check_branch
    %30 = sbr.rel (0) target = $region29
  $region28: #{vae_forward.13} parent=0 // pred_region
    _
  $region29: #{vae_forward.13} parent=0 // pred_fallthru
    _
  // Predicated region
  $region30: #{vae_forward.13} parent=0 // pred_check
    _
  $region31: #{vae_forward.13} parent=0 // pred_check_branch
    %32 = sbr.rel (0) target = $region33
  $region32: #{vae_forward.13} parent=0 // pred_region
    _
  $region33: #{vae_forward.13} parent=0 // pred_fallthru
    _
  %v33 = vld [vmem:[%s0] sm:$0xff]
  %v34 = vunpack.c.l.bf16 %v33
  %v35 = vunpack.c.h.bf16 %v33
  %v36 = vld [vmem:[%s1] sm:$0xff]
  %v37 = vld [vmem:[%s1 + $0x8] sm:$0xff]
  %v38 = vld [vmem:[%s1 + $0x10] sm:$0xff]
  %v39 = vld [vmem:[%s1 + $0x18] sm:$0xff]
  %v40 = vld [vmem:[%s1 + $0x20] sm:$0xff]
  %v41 = vld [vmem:[%s1 + $0x28] sm:$0xff]
  %v42 = vld [vmem:[%s1 + $0x30] sm:$0xff]
  %v43 = vld [vmem:[%s1 + $0x38] sm:$0xff]
  %v44 = vld [vmem:[%s1 + $0x40] sm:$0xff]
  %v45 = vld [vmem:[%s1 + $0x48] sm:$0xff]
  %v46 = vld [vmem:[%s1 + $0x50] sm:$0xff]
  %v47 = vld [vmem:[%s1 + $0x58] sm:$0xff]
  %v48 = vld [vmem:[%s1 + $0x60] sm:$0xff]
  %v49 = vld [vmem:[%s1 + $0x68] sm:$0xff]
  %v50 = vld [vmem:[%s1 + $0x70] sm:$0xff]
  %v51 = vld [vmem:[%s1 + $0x78] sm:$0xff]
  %v52 = vld [vmem:[%s1 + $0x80] sm:$0xff]
  %v53 = vld [vmem:[%s1 + $0x88] sm:$0xff]
  %v54 = vld [vmem:[%s1 + $0x90] sm:$0xff]
  %v55 = vld [vmem:[%s1 + $0x98] sm:$0xff]
  %v56 = vld [vmem:[%s1 + $0xa0] sm:$0xff]
  %v57 = vld [vmem:[%s1 + $0xa8] sm:$0xff]
  %v58 = vld [vmem:[%s1 + $0xb0] sm:$0xff]
  %v59 = vld [vmem:[%s1 + $0xb8] sm:$0xff]
  %v60 = vld [vmem:[%s1 + $0xc0] sm:$0xff]
  %v61 = vld [vmem:[%s1 + $0xc8] sm:$0xff]
  %v62 = vld [vmem:[%s1 + $0xd0] sm:$0xff]
  %v63 = vld [vmem:[%s1 + $0xd8] sm:$0xff]
  %v64 = vld [vmem:[%s1 + $0xe0] sm:$0xff]
  %v65 = vld [vmem:[%s1 + $0xe8] sm:$0xff]
  %v66 = vld [vmem:[%s1 + $0xf0] sm:$0xff]
  %v67 = vld [vmem:[%s1 + $0xf8] sm:$0xff]
  %v68 = vld [vmem:[%s2] sm:$0x1]
  %v70 = vlaneseq
  %v71 = vshrl.u32 %v70, 7
  %v72 = vsub.s32 0, %v71
  %v73 = vrot.slane %v68, %v72
  %75 = vmatprep.subr.mxu0 0.0
  %76 = vmatpush1.msra.mxu0 %v36
  %77 = vmatprep.subr.mxu0 0.0
  %78 = vmatpush1.msra.mxu0 %v37
  %79 = vmatprep.subr.mxu0 0.0
  %80 = vmatpush1.msra.mxu0 %v38
  %81 = vmatprep.subr.mxu0 0.0
  %82 = vmatpush1.msra.mxu0 %v39
  %83 = vmatprep.subr.mxu0 0.0
  %84 = vmatpush1.msra.mxu0 %v40
  %85 = vmatprep.subr.mxu0 0.0
  %86 = vmatpush1.msra.mxu0 %v41
  %87 = vmatprep.subr.mxu0 0.0
  %88 = vmatpush1.msra.mxu0 %v42
  %89 = vmatprep.subr.mxu0 0.0
  %90 = vmatpush1.msra.mxu0 %v43
  %91 = vmatprep.subr.mxu0 0.0
  %92 = vmatpush1.msra.mxu0 %v44
  %93 = vmatprep.subr.mxu0 0.0
  %94 = vmatpush1.msra.mxu0 %v45
  %95 = vmatprep.subr.mxu0 0.0
  %96 = vmatpush1.msra.mxu0 %v46
  %97 = vmatprep.subr.mxu0 0.0
  %98 = vmatpush1.msra.mxu0 %v47
  %99 = vmatprep.subr.mxu0 0.0
  %100 = vmatpush1.msra.mxu0 %v48
  %101 = vmatprep.subr.mxu0 0.0
  %102 = vmatpush1.msra.mxu0 %v49
  %103 = vmatprep.subr.mxu0 0.0
  %104 = vmatpush1.msra.mxu0 %v50
  %105 = vmatprep.subr.mxu0 0.0
  %106 = vmatpush1.msra.mxu0 %v51
  %107 = vmatprep.subr.mxu0 0.0
  %108 = vmatpush1.msra.mxu0 %v52
  %109 = vmatprep.subr.mxu0 0.0
  %110 = vmatpush1.msra.mxu0 %v53
  %111 = vmatprep.subr.mxu0 0.0
  %112 = vmatpush1.msra.mxu0 %v54
  %113 = vmatprep.subr.mxu0 0.0
  %114 = vmatpush1.msra.mxu0 %v55
  %115 = vmatprep.subr.mxu0 0.0
  %116 = vmatpush1.msra.mxu0 %v56
  %117 = vmatprep.subr.mxu0 0.0
  %118 = vmatpush1.msra.mxu0 %v57
  %119 = vmatprep.subr.mxu0 0.0
  %120 = vmatpush1.msra.mxu0 %v58
  %121 = vmatprep.subr.mxu0 0.0
  %122 = vmatpush1.msra.mxu0 %v59
  %123 = vmatprep.subr.mxu0 0.0
  %124 = vmatpush1.msra.mxu0 %v60
  %125 = vmatprep.subr.mxu0 0.0
  %126 = vmatpush1.msra.mxu0 %v61
  %127 = vmatprep.subr.mxu0 0.0
  %128 = vmatpush1.msra.mxu0 %v62
  %129 = vmatprep.subr.mxu0 0.0
  %130 = vmatpush1.msra.mxu0 %v63
  %131 = vmatprep.subr.mxu0 0.0
  %132 = vmatpush1.msra.mxu0 %v64
  %133 = vmatprep.subr.mxu0 0.0
  %134 = vmatpush1.msra.mxu0 %v65
  %135 = vmatprep.subr.mxu0 0.0
  %136 = vmatpush1.msra.mxu0 %v66
  %137 = vmatprep.subr.mxu0 0.0
  %138 = vmatpush1.msra.mxu0 %v67
  %139 = vmatprep.mubr.f32.mxu0 %v35
  %140 = vmatmul.mubr.f32.gmra.mrb[0].mxu0 %v34
  %v141 = vpop.f32.mrb[0].mxu0
  %v142 = vadd.f32 %v73, %v141
  %v143 = vpop.f32.mrb[0].mxu0
  %144 = vdwg.mxu0
  %v145 = vld [vmem:[%s3] sm:$0xff]
  %v146 = vld [vmem:[%s3 + $0x8] sm:$0xff]
  %v147 = vld [vmem:[%s3 + $0x10] sm:$0xff]
  %v148 = vld [vmem:[%s3 + $0x18] sm:$0xff]
  %v149 = vld [vmem:[%s3 + $0x20] sm:$0xff]
  %v150 = vld [vmem:[%s3 + $0x28] sm:$0xff]
  %v151 = vld [vmem:[%s3 + $0x30] sm:$0xff]
  %v152 = vld [vmem:[%s3 + $0x38] sm:$0xff]
  %v153 = vld [vmem:[%s3 + $0x40] sm:$0xff]
  %v154 = vld [vmem:[%s3 + $0x48] sm:$0xff]
  %v155 = vld [vmem:[%s3 + $0x50] sm:$0xff]
  %v156 = vld [vmem:[%s3 + $0x58] sm:$0xff]
  %v157 = vld [vmem:[%s3 + $0x60] sm:$0xff]
  %v158 = vld [vmem:[%s3 + $0x68] sm:$0xff]
  %v159 = vld [vmem:[%s3 + $0x70] sm:$0xff]
  %v160 = vld [vmem:[%s3 + $0x78] sm:$0xff]
  %v161 = vld [vmem:[%s3 + $0x80] sm:$0xff]
  %v162 = vld [vmem:[%s3 + $0x88] sm:$0xff]
  %v163 = vld [vmem:[%s3 + $0x90] sm:$0xff]
  %v164 = vld [vmem:[%s3 + $0x98] sm:$0xff]
  %v165 = vld [vmem:[%s3 + $0xa0] sm:$0xff]
  %v166 = vld [vmem:[%s3 + $0xa8] sm:$0xff]
  %v167 = vld [vmem:[%s3 + $0xb0] sm:$0xff]
  %v168 = vld [vmem:[%s3 + $0xb8] sm:$0xff]
  %v169 = vld [vmem:[%s3 + $0xc0] sm:$0xff]
  %v170 = vld [vmem:[%s3 + $0xc8] sm:$0xff]
  %v171 = vld [vmem:[%s3 + $0xd0] sm:$0xff]
  %v172 = vld [vmem:[%s3 + $0xd8] sm:$0xff]
  %v173 = vld [vmem:[%s3 + $0xe0] sm:$0xff]
  %v174 = vld [vmem:[%s3 + $0xe8] sm:$0xff]
  %v175 = vld [vmem:[%s3 + $0xf0] sm:$0xff]
  %v176 = vld [vmem:[%s3 + $0xf8] sm:$0xff]
  %v177 = vld [vmem:[%s4] sm:$0x1]
  %v179 = vlaneseq
  %v180 = vshrl.u32 %v179, 7
  %v181 = vsub.s32 0, %v180
  %v182 = vrot.slane %v177, %v181
  %184 = vmatprep.subr.mxu0 0.0
  %185 = vmatpush1.msra.mxu0 %v145
  %186 = vmatprep.subr.mxu0 0.0
  %187 = vmatpush1.msra.mxu0 %v146
  %188 = vmatprep.subr.mxu0 0.0
  %189 = vmatpush1.msra.mxu0 %v147
  %190 = vmatprep.subr.mxu0 0.0
  %191 = vmatpush1.msra.mxu0 %v148
  %192 = vmatprep.subr.mxu0 0.0
  %193 = vmatpush1.msra.mxu0 %v149
  %194 = vmatprep.subr.mxu0 0.0
  %195 = vmatpush1.msra.mxu0 %v150
  %196 = vmatprep.subr.mxu0 0.0
  %197 = vmatpush1.msra.mxu0 %v151
  %198 = vmatprep.subr.mxu0 0.0
  %199 = vmatpush1.msra.mxu0 %v152
  %200 = vmatprep.subr.mxu0 0.0
  %201 = vmatpush1.msra.mxu0 %v153
  %202 = vmatprep.subr.mxu0 0.0
  %203 = vmatpush1.msra.mxu0 %v154
  %204 = vmatprep.subr.mxu0 0.0
  %205 = vmatpush1.msra.mxu0 %v155
  %206 = vmatprep.subr.mxu0 0.0
  %207 = vmatpush1.msra.mxu0 %v156
  %208 = vmatprep.subr.mxu0 0.0
  %209 = vmatpush1.msra.mxu0 %v157
  %210 = vmatprep.subr.mxu0 0.0
  %211 = vmatpush1.msra.mxu0 %v158
  %212 = vmatprep.subr.mxu0 0.0
  %213 = vmatpush1.msra.mxu0 %v159
  %214 = vmatprep.subr.mxu0 0.0
  %215 = vmatpush1.msra.mxu0 %v160
  %216 = vmatprep.subr.mxu0 0.0
  %217 = vmatpush1.msra.mxu0 %v161
  %218 = vmatprep.subr.mxu0 0.0
  %219 = vmatpush1.msra.mxu0 %v162
  %220 = vmatprep.subr.mxu0 0.0
  %221 = vmatpush1.msra.mxu0 %v163
  %222 = vmatprep.subr.mxu0 0.0
  %223 = vmatpush1.msra.mxu0 %v164
  %224 = vmatprep.subr.mxu0 0.0
  %225 = vmatpush1.msra.mxu0 %v165
  %226 = vmatprep.subr.mxu0 0.0
  %227 = vmatpush1.msra.mxu0 %v166
  %228 = vmatprep.subr.mxu0 0.0
  %229 = vmatpush1.msra.mxu0 %v167
  %230 = vmatprep.subr.mxu0 0.0
  %231 = vmatpush1.msra.mxu0 %v168
  %232 = vmatprep.subr.mxu0 0.0
  %233 = vmatpush1.msra.mxu0 %v169
  %234 = vmatprep.subr.mxu0 0.0
  %235 = vmatpush1.msra.mxu0 %v170
  %236 = vmatprep.subr.mxu0 0.0
  %237 = vmatpush1.msra.mxu0 %v171
  %238 = vmatprep.subr.mxu0 0.0
  %239 = vmatpush1.msra.mxu0 %v172
  %240 = vmatprep.subr.mxu0 0.0
  %241 = vmatpush1.msra.mxu0 %v173
  %242 = vmatprep.subr.mxu0 0.0
  %243 = vmatpush1.msra.mxu0 %v174
  %244 = vmatprep.subr.mxu0 0.0
  %245 = vmatpush1.msra.mxu0 %v175
  %246 = vmatprep.subr.mxu0 0.0
  %247 = vmatpush1.msra.mxu0 %v176
  %248 = vmatprep.mubr.f32.mxu0 %v35
  %249 = vmatmul.mubr.f32.gmra.mrb[0].mxu0 %v34
  %v250 = vpop.f32.mrb[0].mxu0
  %v251 = vadd.f32 %v182, %v250
  %v252 = vpop.f32.mrb[0].mxu0
  %253 = vdwg.mxu0
  %v254 = vld [vmem:[%s5] sm:$0xff]
  %v255 = vmul.f32 %v251, 0.5
  %v256 = vmul.f32 %v255, 1.442695
  %v257 = vpow.pop %v256
  %v258 = vmul.f32 %v254, %v257
  %v259 = vadd.f32 %v142, %v258
  %vm260 = vcmask 130048
  %261 = vst.msk [vmem:[%s9] sm:$0xff] %vm260, %v142
  %262 = vst.msk [vmem:[%s10] sm:$0xff] %vm260, %v251
  %263 = vst.msk [vmem:[%s8] sm:$0xff] %vm260, %v259
  %v264 = vld [vmem:[%s6] sm:$0xff]
  %v265 = vld [vmem:[%s6 + $0x8] sm:$0xff]
  %v266 = vld [vmem:[%s6 + $0x10] sm:$0xff]
  %v267 = vld [vmem:[%s6 + $0x18] sm:$0xff]
  %v268 = vld [vmem:[%s7] sm:$0x3]
  %v270 = vlaneseq
  %v271 = vshrl.u32 %v270, 7
  %v272 = vsub.s32 0, %v271
  %v273 = vrot.slane %v268, %v272
  %v274 = vlaneseq
  %v275 = vshrl.u32 %v274, 7
  %v276 = vsub.s32 1, %v275
  %v277 = vrot.slane %v268, %v276
  %v281 = vsel %vm260, %v259, 0
  %283 = vmatprep.subr.mxu0 %v265
  %284 = vmatpush1.msra.mxu0 %v264
  %285 = vmatprep.subr.mxu0 %v267
  %286 = vmatpush1.msra.mxu0 %v266
  %287 = vmatprep.subr.mxu0 0.0
  %288 = vmatpush1.msra.mxu0 0.0
  %289 = vmatprep.subr.mxu0 0.0
  %290 = vmatpush1.msra.mxu0 0.0
  %291 = vmatprep.subr.mxu0 0.0
  %292 = vmatpush1.msra.mxu0 0.0
  %293 = vmatprep.subr.mxu0 0.0
  %294 = vmatpush1.msra.mxu0 0.0
  %295 = vmatprep.subr.mxu0 0.0
  %296 = vmatpush1.msra.mxu0 0.0
  %297 = vmatprep.subr.mxu0 0.0
  %298 = vmatpush1.msra.mxu0 0.0
  %299 = vmatprep.subr.mxu0 0.0
  %300 = vmatpush1.msra.mxu0 0.0
  %301 = vmatprep.subr.mxu0 0.0
  %302 = vmatpush1.msra.mxu0 0.0
  %303 = vmatprep.subr.mxu0 0.0
  %304 = vmatpush1.msra.mxu0 0.0
  %305 = vmatprep.subr.mxu0 0.0
  %306 = vmatpush1.msra.mxu0 0.0
  %307 = vmatprep.subr.mxu0 0.0
  %308 = vmatpush1.msra.mxu0 0.0
  %309 = vmatprep.subr.mxu0 0.0
  %310 = vmatpush1.msra.mxu0 0.0
  %311 = vmatprep.subr.mxu0 0.0
  %312 = vmatpush1.msra.mxu0 0.0
  %313 = vmatprep.subr.mxu0 0.0
  %314 = vmatpush1.msra.mxu0 0.0
  %315 = vmatprep.subr.mxu0 0.0
  %316 = vmatpush1.msra.mxu0 0.0
  %317 = vmatprep.subr.mxu0 0.0
  %318 = vmatpush1.msra.mxu0 0.0
  %319 = vmatprep.subr.mxu0 0.0
  %320 = vmatpush1.msra.mxu0 0.0
  %321 = vmatprep.subr.mxu0 0.0
  %322 = vmatpush1.msra.mxu0 0.0
  %323 = vmatprep.subr.mxu0 0.0
  %324 = vmatpush1.msra.mxu0 0.0
  %325 = vmatprep.subr.mxu0 0.0
  %326 = vmatpush1.msra.mxu0 0.0
  %327 = vmatprep.subr.mxu0 0.0
  %328 = vmatpush1.msra.mxu0 0.0
  %329 = vmatprep.subr.mxu0 0.0
  %330 = vmatpush1.msra.mxu0 0.0
  %331 = vmatprep.subr.mxu0 0.0
  %332 = vmatpush1.msra.mxu0 0.0
  %333 = vmatprep.subr.mxu0 0.0
  %334 = vmatpush1.msra.mxu0 0.0
  %335 = vmatprep.subr.mxu0 0.0
  %336 = vmatpush1.msra.mxu0 0.0
  %337 = vmatprep.subr.mxu0 0.0
  %338 = vmatpush1.msra.mxu0 0.0
  %339 = vmatprep.subr.mxu0 0.0
  %340 = vmatpush1.msra.mxu0 0.0
  %341 = vmatprep.subr.mxu0 0.0
  %342 = vmatpush1.msra.mxu0 0.0
  %343 = vmatprep.subr.mxu0 0.0
  %344 = vmatpush1.msra.mxu0 0.0
  %345 = vmatprep.subr.mxu0 0.0
  %346 = vmatpush1.msra.mxu0 0.0
  %347 = vmatprep.mubr.f32.mxu0 0.0
  %348 = vmatmul.mubr.f32.gmra.mrb[0].mxu0 %v281
  %v349 = vpop.f32.mrb[0].mxu0
  %v350 = vadd.f32 %v273, %v349
  %v351 = vpop.f32.mrb[0].mxu0
  %v352 = vadd.f32 %v277, %v351
  %353 = vdwg.mxu0
  %v354 = vpack.c.bf16 %v350, %v350
  %v355 = vpack.c.bf16 %v352, %v352
  %v358 = vunpack.c.l.b16 %v354
  %v359 = vunpack.c.l.b16 %v355
  %v360 = vpack.c.b16 %v359, %v358
  %362 = vst [vmem:[%s11] sm:$0xff] %v360
  // Predicated region
  $region34: #{vae_forward.13} parent=0 // pred_check
    _
  $region35: #{vae_forward.13} parent=0 // pred_check_branch
    %364 = sbr.rel (0) target = $region37
  $region36: #{vae_forward.13} parent=0 // pred_region
    _
  $region37: #{vae_forward.13} parent=0 // pred_fallthru
    _
  // Predicated region
  $region38: #{vae_forward.13} parent=0 // pred_check
    _
  $region39: #{vae_forward.13} parent=0 // pred_check_branch
    %366 = sbr.rel (0) target = $region41
  $region40: #{vae_forward.13} parent=0 // pred_region
    _
  $region41: #{vae_forward.13} parent=0 // pred_fallthru
    _
  // Predicated region
  $region42: #{vae_forward.13} parent=0 // pred_check
    _
  $region43: #{vae_forward.13} parent=0 // pred_check_branch
    %368 = sbr.rel (0) target = $region45
  $region44: #{vae_forward.13} parent=0 // pred_region
    _
  $region45: #{vae_forward.13} parent=0 // pred_fallthru
    _
  // Predicated region
  $region46: #{vae_forward.13} parent=0 // pred_check
    _
  $region47: #{vae_forward.13} parent=0 // pred_check_branch
    %370 = sbr.rel (0) target = $region49
  $region48: #{vae_forward.13} parent=0 // pred_region
    _
  $region49: #{vae_forward.13} parent=0 // pred_fallthru
    _
  // Predicated region
  $region50: #{vae_forward.13} parent=0 // pred_check
    _
  $region51: #{vae_forward.13} parent=0 // pred_check_branch
    %372 = sbr.rel (0) target = $region53
  $region52: #{vae_forward.13} parent=0 // pred_region
    _
  $region53: #{vae_forward.13} parent=0 // pred_fallthru
    _
  // Predicated region
  $region54: #{vae_forward.13} parent=0 // pred_check
    _
  $region55: #{vae_forward.13} parent=0 // pred_check_branch
    %374 = sbr.rel (0) target = $region57
  $region56: #{vae_forward.13} parent=0 // pred_region
    _
  $region57: #{vae_forward.13} parent=0 // pred_fallthru
    _
  // Predicated region
  $region58: #{vae_forward.13} parent=0 // pred_check
    _
  $region59: #{vae_forward.13} parent=0 // pred_check_branch
    %376 = sbr.rel (0) target = $region61
  $region60: #{vae_forward.13} parent=0 // pred_region
    _
  $region61: #{vae_forward.13} parent=0 // pred_fallthru
    _
  // Predicated region
  $region62: #{vae_forward.13} parent=0 // pred_check
    _
  $region63: #{vae_forward.13} parent=0 // pred_check_branch
    %378 = sbr.rel (0) target = $region65
  $region64: #{vae_forward.13} parent=0 // pred_region
    _
  $region65: #{vae_forward.13} parent=0 // pred_fallthru
    _

// kernel: vae_forward.14
$region0: #{vae_forward.14}
  #allocation0 [shape = 'u32[]', space=smem, size = 0x4, offset = 0x4, fixed_abs, tag = 'smem constant byte address 0x4 - core index']
  #allocation1 [shape = 'u32[144,128]{1,0:T(1,128)}', space=vmem, size = 0x12000, scoped, tag = 'internal scratch']
  %s0 = inlined_call_operand.vmem [shape: bf16[24,16], index: 0, kind: input, shape index: {}]
  %s1 = inlined_call_operand.vmem [shape: bf16[16,256], index: 1, kind: input, shape index: {}]
  %s2 = inlined_call_operand.vmem [shape: f32[1,256], index: 2, kind: input, shape index: {}]
  %s3 = inlined_call_operand.vmem [shape: f32[1,256], index: 3, kind: input, shape index: {}]
  %s4 = inlined_call_operand.vmem [shape: bf16[24,256], index: 4, kind: output, shape index: {}]
  %s5 = sld [smem:[#allocation0]]
  $region26: #{vae_forward.14} parent=0
    _
  %s7 = ssub.s32 1, %s5
  %s8 = scalar_select 0, %s7, %s5
  // Predicated region
  $region2: #{vae_forward.14} parent=0 // pred_check
    _
  $region3: #{vae_forward.14} parent=0 // pred_check_branch
    %10 = sbr.rel (0) target = $region5
  $region4: #{vae_forward.14} parent=0 // pred_region
    _
  $region5: #{vae_forward.14} parent=0 // pred_fallthru
    _
  // Predicated region
  $region6: #{vae_forward.14} parent=0 // pred_check
    _
  $region7: #{vae_forward.14} parent=0 // pred_check_branch
    %12 = sbr.rel (0) target = $region9
  $region8: #{vae_forward.14} parent=0 // pred_region
    _
  $region9: #{vae_forward.14} parent=0 // pred_fallthru
    _
  // Predicated region
  $region10: #{vae_forward.14} parent=0 // pred_check
    _
  $region11: #{vae_forward.14} parent=0 // pred_check_branch
    %14 = sbr.rel (0) target = $region13
  $region12: #{vae_forward.14} parent=0 // pred_region
    _
  $region13: #{vae_forward.14} parent=0 // pred_fallthru
    _
  // Predicated region
  $region14: #{vae_forward.14} parent=0 // pred_check
    _
  $region15: #{vae_forward.14} parent=0 // pred_check_branch
    %16 = sbr.rel (0) target = $region17
  $region16: #{vae_forward.14} parent=0 // pred_region
    _
  $region17: #{vae_forward.14} parent=0 // pred_fallthru
    _
  %v18 = vld [vmem:[%s0] sm:$0xf]
  %v19 = vld [vmem:[%s0 + $0x4] sm:$0xf]
  %v20 = vld [vmem:[%s0 + $0x8] sm:$0xf]
  %v21 = vld [vmem:[%s1] sm:$0xff]
  %v22 = vld [vmem:[%s1 + $0x8] sm:$0xff]
  %v26 = vunpack.c.l.b16 %v18
  %v27 = vunpack.c.l.b16 %v19
  %v28 = vunpack.c.l.b16 %v20
  %v29 = vpack.c.b16 %v27, %v26
  %v30 = vpack.c.b16 %v28, %v28
  %v33 = vunpack.c.l.b16 %v21
  %v34 = vunpack.c.h.b16 %v21
  %v35 = vunpack.c.l.b16 %v22
  %v36 = vunpack.c.h.b16 %v22
  %v37 = vpack.c.b16 %v35, %v33
  %v38 = vpack.c.b16 %v36, %v34
  %vm41 = vcmask 130048
  %v43 = vsel %vm41, %v29, 0
  %v46 = vsel %vm41, %v30, 0
  %48 = vmatprep.subr.bf16.mxu0 %v38
  %49 = vmatpush1.bf16.msra.mxu0 %v37
  %50 = vmatprep.subr.bf16.mxu0 0
  %51 = vmatpush1.bf16.msra.mxu0 0
  %52 = vmatprep.subr.bf16.mxu0 0
  %53 = vmatpush1.bf16.msra.mxu0 0
  %54 = vmatprep.subr.bf16.mxu0 0
  %55 = vmatpush1.bf16.msra.mxu0 0
  %56 = vmatprep.subr.bf16.mxu0 0
  %57 = vmatpush1.bf16.msra.mxu0 0
  %58 = vmatprep.subr.bf16.mxu0 0
  %59 = vmatpush1.bf16.msra.mxu0 0
  %60 = vmatprep.subr.bf16.mxu0 0
  %61 = vmatpush1.bf16.msra.mxu0 0
  %62 = vmatprep.subr.bf16.mxu0 0
  %63 = vmatpush1.bf16.msra.mxu0 0
  %64 = vmatprep.subr.bf16.mxu0 0
  %65 = vmatpush1.bf16.msra.mxu0 0
  %66 = vmatprep.subr.bf16.mxu0 0
  %67 = vmatpush1.bf16.msra.mxu0 0
  %68 = vmatprep.subr.bf16.mxu0 0
  %69 = vmatpush1.bf16.msra.mxu0 0
  %70 = vmatprep.subr.bf16.mxu0 0
  %71 = vmatpush1.bf16.msra.mxu0 0
  %72 = vmatprep.subr.bf16.mxu0 0
  %73 = vmatpush1.bf16.msra.mxu0 0
  %74 = vmatprep.subr.bf16.mxu0 0
  %75 = vmatpush1.bf16.msra.mxu0 0
  %76 = vmatprep.subr.bf16.mxu0 0
  %77 = vmatpush1.bf16.msra.mxu0 0
  %78 = vmatprep.subr.bf16.mxu0 0
  %79 = vmatpush1.bf16.msra.mxu0 0
  %80 = vmatprep.mubr.bf16.mxu0 0
  %81 = vmatmul.mubr.bf16.gmra.mrb[0].mxu0 %v43
  %v82 = vpop.f32.mrb[0].mxu0
  %v83 = vadd.f32 0.0, %v82
  %v84 = vpop.f32.mrb[0].mxu0
  %v85 = vadd.f32 0.0, %v84
  %v86 = vpop.f32.mrb[0].mxu0
  %v87 = vadd.f32 0.0, %v86
  %v88 = vpop.f32.mrb[0].mxu0
  %v89 = vadd.f32 0.0, %v88
  %90 = vmatprep.mubr.bf16.mxu0 0
  %91 = vmatmul.mubr.bf16.gmra.mrb[0].mxu0 %v46
  %v92 = vpop.f32.mrb[0].mxu0
  %v93 = vadd.f32 0.0, %v92
  %v94 = vpop.f32.mrb[0].mxu0
  %v95 = vadd.f32 0.0, %v94
  %v96 = vpop.f32.mrb[0].mxu0
  %v97 = vpop.f32.mrb[0].mxu0
  %98 = vdwg.mxu0
  %v99 = vld [vmem:[%s2] sm:$0x3]
  %v101 = vlaneseq
  %v102 = vshrl.u32 %v101, 7
  %v103 = vsub.s32 0, %v102
  %v104 = vrot.slane %v99, %v103
  %v105 = vlaneseq
  %v106 = vshrl.u32 %v105, 7
  %v107 = vsub.s32 1, %v106
  %v108 = vrot.slane %v99, %v107
  %v111 = vmul.f32 %v83, %v104
  %v112 = vmul.f32 %v85, %v108
  %v113 = vmul.f32 %v87, %v104
  %v114 = vmul.f32 %v89, %v108
  %v115 = vmul.f32 %v93, %v104
  %v116 = vmul.f32 %v95, %v108
  %v117 = vld [vmem:[%s3] sm:$0x3]
  %v119 = vlaneseq
  %v120 = vshrl.u32 %v119, 7
  %v121 = vsub.s32 0, %v120
  %v122 = vrot.slane %v117, %v121
  %v123 = vlaneseq
  %v124 = vshrl.u32 %v123, 7
  %v125 = vsub.s32 1, %v124
  %v126 = vrot.slane %v117, %v125
  %v129 = vadd.f32 %v111, %v122
  %v130 = vadd.f32 %v112, %v126
  %v131 = vadd.f32 %v113, %v122
  %v132 = vadd.f32 %v114, %v126
  %v133 = vadd.f32 %v115, %v122
  %v134 = vadd.f32 %v116, %v126
  %vm135 = vcmp.gt.f32.partialorder %v129, 0.0
  %vm136 = vcmp.gt.f32.partialorder %v130, 0.0
  %vm137 = vcmp.gt.f32.partialorder %v131, 0.0
  %vm138 = vcmp.gt.f32.partialorder %v132, 0.0
  %vm139 = vcmp.gt.f32.partialorder %v133, 0.0
  %vm140 = vcmp.gt.f32.partialorder %v134, 0.0
  %v141 = vmul.f32 %v129, 0.1
  %v142 = vmul.f32 %v130, 0.1
  %v143 = vmul.f32 %v131, 0.1
  %v144 = vmul.f32 %v132, 0.1
  %v145 = vmul.f32 %v133, 0.1
  %v146 = vmul.f32 %v134, 0.1
  %v147 = vsel %vm135, %v129, %v141
  %v148 = vsel %vm136, %v130, %v142
  %v149 = vsel %vm137, %v131, %v143
  %v150 = vsel %vm138, %v132, %v144
  %v151 = vsel %vm139, %v133, %v145
  %v152 = vsel %vm140, %v134, %v146
  %v153 = vpack.c.bf16 %v149, %v147
  %v154 = vpack.c.bf16 %v150, %v148
  %v155 = vpack.c.bf16 %v151, %v151
  %v156 = vpack.c.bf16 %v152, %v152
  %v161 = vunpack.c.l.b16 %v153
  %v162 = vunpack.c.l.b16 %v154
  %v163 = vunpack.c.h.b16 %v153
  %v164 = vunpack.c.h.b16 %v154
  %v165 = vunpack.c.l.b16 %v155
  %v166 = vunpack.c.l.b16 %v156
  %v167 = vpack.c.b16 %v162, %v161
  %v168 = vpack.c.b16 %v164, %v163
  %v169 = vpack.c.b16 %v166, %v165
  %173 = vst [vmem:[%s4] sm:$0xff] %v167
  %174 = vst [vmem:[%s4 + $0x8] sm:$0xff] %v168
  %175 = vst [vmem:[%s4 + $0x10] sm:$0xff] %v169
  // Predicated region
  $region18: #{vae_forward.14} parent=0 // pred_check
    _
  $region19: #{vae_forward.14} parent=0 // pred_check_branch
    %177 = sbr.rel (0) target = $region21
  $region20: #{vae_forward.14} parent=0 // pred_region
    _
  $region21: #{vae_forward.14} parent=0 // pred_fallthru
    _
  // Predicated region
  $region22: #{vae_forward.14} parent=0 // pred_check
    _
  $region23: #{vae_forward.14} parent=0 // pred_check_branch
    %179 = sbr.rel (0) target = $region25
  $region24: #{vae_forward.14} parent=0 // pred_region
    _
  $region25: #{vae_forward.14} parent=0 // pred_fallthru
    _

// kernel: vae_forward.15
$region0: #{vae_forward.15}
  #allocation0 [shape = 'u32[]', space=smem, size = 0x4, offset = 0x4, fixed_abs, tag = 'smem constant byte address 0x4 - core index']
  #allocation1 [shape = 'u32[144,128]{1,0:T(1,128)}', space=vmem, size = 0x12000, scoped, tag = 'internal scratch']
  %s0 = inlined_call_operand.vmem [shape: bf16[56,256], index: 0, kind: input, shape index: {}]
  %s1 = inlined_call_operand.vmem [shape: bf16[256,256], index: 1, kind: input, shape index: {}]
  %s2 = inlined_call_operand.vmem [shape: f32[1,256], index: 2, kind: input, shape index: {}]
  %s3 = inlined_call_operand.vmem [shape: f32[1,256], index: 3, kind: input, shape index: {}]
  %s4 = inlined_call_operand.vmem [shape: bf16[56,256], index: 4, kind: output, shape index: {}]
  %s5 = sld [smem:[#allocation0]]
  $region26: #{vae_forward.15} parent=0
    _
  %s7 = ssub.s32 1, %s5
  %s8 = scalar_select 0, %s7, %s5
  // Predicated region
  $region2: #{vae_forward.15} parent=0 // pred_check
    _
  $region3: #{vae_forward.15} parent=0 // pred_check_branch
    %10 = sbr.rel (0) target = $region5
  $region4: #{vae_forward.15} parent=0 // pred_region
    _
  $region5: #{vae_forward.15} parent=0 // pred_fallthru
    _
  // Predicated region
  $region6: #{vae_forward.15} parent=0 // pred_check
    _
  $region7: #{vae_forward.15} parent=0 // pred_check_branch
    %12 = sbr.rel (0) target = $region9
  $region8: #{vae_forward.15} parent=0 // pred_region
    _
  $region9: #{vae_forward.15} parent=0 // pred_fallthru
    _
  // Predicated region
  $region10: #{vae_forward.15} parent=0 // pred_check
    _
  $region11: #{vae_forward.15} parent=0 // pred_check_branch
    %14 = sbr.rel (0) target = $region13
  $region12: #{vae_forward.15} parent=0 // pred_region
    _
  $region13: #{vae_forward.15} parent=0 // pred_fallthru
    _
  // Predicated region
  $region14: #{vae_forward.15} parent=0 // pred_check
    _
  $region15: #{vae_forward.15} parent=0 // pred_check_branch
    %16 = sbr.rel (0) target = $region17
  $region16: #{vae_forward.15} parent=0 // pred_region
    _
  $region17: #{vae_forward.15} parent=0 // pred_fallthru
    _
  %v17 = vld [vmem:[%s0] sm:$0xff]
  %v18 = vld [vmem:[%s0 + $0x8] sm:$0xff]
  %v19 = vld [vmem:[%s0 + $0x10] sm:$0xff]
  %v20 = vld [vmem:[%s0 + $0x18] sm:$0xff]
  %v21 = vld [vmem:[%s0 + $0x20] sm:$0xff]
  %v22 = vld [vmem:[%s0 + $0x28] sm:$0xff]
  %v23 = vld [vmem:[%s0 + $0x30] sm:$0xff]
  %v24 = vld [vmem:[%s1] sm:$0xff]
  %v25 = vld [vmem:[%s1 + $0x8] sm:$0xff]
  %v26 = vld [vmem:[%s1 + $0x10] sm:$0xff]
  %v27 = vld [vmem:[%s1 + $0x18] sm:$0xff]
  %v28 = vld [vmem:[%s1 + $0x20] sm:$0xff]
  %v29 = vld [vmem:[%s1 + $0x28] sm:$0xff]
  %v30 = vld [vmem:[%s1 + $0x30] sm:$0xff]
  %v31 = vld [vmem:[%s1 + $0x38] sm:$0xff]
  %v32 = vld [vmem:[%s1 + $0x40] sm:$0xff]
  %v33 = vld [vmem:[%s1 + $0x48] sm:$0xff]
  %v34 = vld [vmem:[%s1 + $0x50] sm:$0xff]
  %v35 = vld [vmem:[%s1 + $0x58] sm:$0xff]
  %v36 = vld [vmem:[%s1 + $0x60] sm:$0xff]
  %v37 = vld [vmem:[%s1 + $0x68] sm:$0xff]
  %v38 = vld [vmem:[%s1 + $0x70] sm:$0xff]
  %v39 = vld [vmem:[%s1 + $0x78] sm:$0xff]
  %v40 = vld [vmem:[%s1 + $0x80] sm:$0xff]
  %v41 = vld [vmem:[%s1 + $0x88] sm:$0xff]
  %v42 = vld [vmem:[%s1 + $0x90] sm:$0xff]
  %v43 = vld [vmem:[%s1 + $0x98] sm:$0xff]
  %v44 = vld [vmem:[%s1 + $0xa0] sm:$0xff]
  %v45 = vld [vmem:[%s1 + $0xa8] sm:$0xff]
  %v46 = vld [vmem:[%s1 + $0xb0] sm:$0xff]
  %v47 = vld [vmem:[%s1 + $0xb8] sm:$0xff]
  %v48 = vld [vmem:[%s1 + $0xc0] sm:$0xff]
  %v49 = vld [vmem:[%s1 + $0xc8] sm:$0xff]
  %v50 = vld [vmem:[%s1 + $0xd0] sm:$0xff]
  %v51 = vld [vmem:[%s1 + $0xd8] sm:$0xff]
  %v52 = vld [vmem:[%s1 + $0xe0] sm:$0xff]
  %v53 = vld [vmem:[%s1 + $0xe8] sm:$0xff]
  %v54 = vld [vmem:[%s1 + $0xf0] sm:$0xff]
  %v55 = vld [vmem:[%s1 + $0xf8] sm:$0xff]
  %v63 = vunpack.c.l.b16 %v17
  %v64 = vunpack.c.h.b16 %v17
  %v65 = vunpack.c.l.b16 %v18
  %v66 = vunpack.c.h.b16 %v18
  %v67 = vunpack.c.l.b16 %v19
  %v68 = vunpack.c.h.b16 %v19
  %v69 = vunpack.c.l.b16 %v20
  %v70 = vunpack.c.h.b16 %v20
  %v71 = vunpack.c.l.b16 %v21
  %v72 = vunpack.c.h.b16 %v21
  %v73 = vunpack.c.l.b16 %v22
  %v74 = vunpack.c.h.b16 %v22
  %v75 = vunpack.c.l.b16 %v23
  %v76 = vunpack.c.h.b16 %v23
  %v77 = vpack.c.b16 %v65, %v63
  %v78 = vpack.c.b16 %v66, %v64
  %v79 = vpack.c.b16 %v69, %v67
  %v80 = vpack.c.b16 %v70, %v68
  %v81 = vpack.c.b16 %v73, %v71
  %v82 = vpack.c.b16 %v74, %v72
  %v83 = vpack.c.b16 %v75, %v75
  %v84 = vpack.c.b16 %v76, %v76
  %v125 = vunpack.c.l.b16 %v24
  %v126 = vunpack.c.h.b16 %v24
  %v127 = vunpack.c.l.b16 %v25
  %v128 = vunpack.c.h.b16 %v25
  %v129 = vunpack.c.l.b16 %v26
  %v130 = vunpack.c.h.b16 %v26
  %v131 = vunpack.c.l.b16 %v27
  %v132 = vunpack.c.h.b16 %v27
  %v133 = vunpack.c.l.b16 %v28
  %v134 = vunpack.c.h.b16 %v28
  %v135 = vunpack.c.l.b16 %v29
  %v136 = vunpack.c.h.b16 %v29
  %v137 = vunpack.c.l.b16 %v30
  %v138 = vunpack.c.h.b16 %v30
  %v139 = vunpack.c.l.b16 %v31
  %v140 = vunpack.c.h.b16 %v31
  %v141 = vunpack.c.l.b16 %v32
  %v142 = vunpack.c.h.b16 %v32
  %v143 = vunpack.c.l.b16 %v33
  %v144 = vunpack.c.h.b16 %v33
  %v145 = vunpack.c.l.b16 %v34
  %v146 = vunpack.c.h.b16 %v34
  %v147 = vunpack.c.l.b16 %v35
  %v148 = vunpack.c.h.b16 %v35
  %v149 = vunpack.c.l.b16 %v36
  %v150 = vunpack.c.h.b16 %v36
  %v151 = vunpack.c.l.b16 %v37
  %v152 = vunpack.c.h.b16 %v37
  %v153 = vunpack.c.l.b16 %v38
  %v154 = vunpack.c.h.b16 %v38
  %v155 = vunpack.c.l.b16 %v39
  %v156 = vunpack.c.h.b16 %v39
  %v157 = vunpack.c.l.b16 %v40
  %v158 = vunpack.c.h.b16 %v40
  %v159 = vunpack.c.l.b16 %v41
  %v160 = vunpack.c.h.b16 %v41
  %v161 = vunpack.c.l.b16 %v42
  %v162 = vunpack.c.h.b16 %v42
  %v163 = vunpack.c.l.b16 %v43
  %v164 = vunpack.c.h.b16 %v43
  %v165 = vunpack.c.l.b16 %v44
  %v166 = vunpack.c.h.b16 %v44
  %v167 = vunpack.c.l.b16 %v45
  %v168 = vunpack.c.h.b16 %v45
  %v169 = vunpack.c.l.b16 %v46
  %v170 = vunpack.c.h.b16 %v46
  %v171 = vunpack.c.l.b16 %v47
  %v172 = vunpack.c.h.b16 %v47
  %v173 = vunpack.c.l.b16 %v48
  %v174 = vunpack.c.h.b16 %v48
  %v175 = vunpack.c.l.b16 %v49
  %v176 = vunpack.c.h.b16 %v49
  %v177 = vunpack.c.l.b16 %v50
  %v178 = vunpack.c.h.b16 %v50
  %v179 = vunpack.c.l.b16 %v51
  %v180 = vunpack.c.h.b16 %v51
  %v181 = vunpack.c.l.b16 %v52
  %v182 = vunpack.c.h.b16 %v52
  %v183 = vunpack.c.l.b16 %v53
  %v184 = vunpack.c.h.b16 %v53
  %v185 = vunpack.c.l.b16 %v54
  %v186 = vunpack.c.h.b16 %v54
  %v187 = vunpack.c.l.b16 %v55
  %v188 = vunpack.c.h.b16 %v55
  %v189 = vpack.c.b16 %v127, %v125
  %v190 = vpack.c.b16 %v128, %v126
  %v191 = vpack.c.b16 %v131, %v129
  %v192 = vpack.c.b16 %v132, %v130
  %v193 = vpack.c.b16 %v135, %v133
  %v194 = vpack.c.b16 %v136, %v134
  %v195 = vpack.c.b16 %v139, %v137
  %v196 = vpack.c.b16 %v140, %v138
  %v197 = vpack.c.b16 %v143, %v141
  %v198 = vpack.c.b16 %v144, %v142
  %v199 = vpack.c.b16 %v147, %v145
  %v200 = vpack.c.b16 %v148, %v146
  %v201 = vpack.c.b16 %v151, %v149
  %v202 = vpack.c.b16 %v152, %v150
  %v203 = vpack.c.b16 %v155, %v153
  %v204 = vpack.c.b16 %v156, %v154
  %v205 = vpack.c.b16 %v159, %v157
  %v206 = vpack.c.b16 %v160, %v158
  %v207 = vpack.c.b16 %v163, %v161
  %v208 = vpack.c.b16 %v164, %v162
  %v209 = vpack.c.b16 %v167, %v165
  %v210 = vpack.c.b16 %v168, %v166
  %v211 = vpack.c.b16 %v171, %v169
  %v212 = vpack.c.b16 %v172, %v170
  %v213 = vpack.c.b16 %v175, %v173
  %v214 = vpack.c.b16 %v176, %v174
  %v215 = vpack.c.b16 %v179, %v177
  %v216 = vpack.c.b16 %v180, %v178
  %v217 = vpack.c.b16 %v183, %v181
  %v218 = vpack.c.b16 %v184, %v182
  %v219 = vpack.c.b16 %v187, %v185
  %v220 = vpack.c.b16 %v188, %v186
  %253 = vmatprep.subr.bf16.mxu0 %v190
  %254 = vmatpush1.bf16.msra.mxu0 %v189
  %255 = vmatprep.subr.bf16.mxu0 %v192
  %256 = vmatpush1.bf16.msra.mxu0 %v191
  %257 = vmatprep.subr.bf16.mxu0 %v194
  %258 = vmatpush1.bf16.msra.mxu0 %v193
  %259 = vmatprep.subr.bf16.mxu0 %v196
  %260 = vmatpush1.bf16.msra.mxu0 %v195
  %261 = vmatprep.subr.bf16.mxu0 %v198
  %262 = vmatpush1.bf16.msra.mxu0 %v197
  %263 = vmatprep.subr.bf16.mxu0 %v200
  %264 = vmatpush1.bf16.msra.mxu0 %v199
  %265 = vmatprep.subr.bf16.mxu0 %v202
  %266 = vmatpush1.bf16.msra.mxu0 %v201
  %267 = vmatprep.subr.bf16.mxu0 %v204
  %268 = vmatpush1.bf16.msra.mxu0 %v203
  %269 = vmatprep.subr.bf16.mxu0 %v206
  %270 = vmatpush1.bf16.msra.mxu0 %v205
  %271 = vmatprep.subr.bf16.mxu0 %v208
  %272 = vmatpush1.bf16.msra.mxu0 %v207
  %273 = vmatprep.subr.bf16.mxu0 %v210
  %274 = vmatpush1.bf16.msra.mxu0 %v209
  %275 = vmatprep.subr.bf16.mxu0 %v212
  %276 = vmatpush1.bf16.msra.mxu0 %v211
  %277 = vmatprep.subr.bf16.mxu0 %v214
  %278 = vmatpush1.bf16.msra.mxu0 %v213
  %279 = vmatprep.subr.bf16.mxu0 %v216
  %280 = vmatpush1.bf16.msra.mxu0 %v215
  %281 = vmatprep.subr.bf16.mxu0 %v218
  %282 = vmatpush1.bf16.msra.mxu0 %v217
  %283 = vmatprep.subr.bf16.mxu0 %v220
  %284 = vmatpush1.bf16.msra.mxu0 %v219
  %285 = vmatprep.mubr.bf16.mxu0 %v78
  %286 = vmatmul.mubr.bf16.gmra.mrb[0].mxu0 %v77
  %v287 = vpop.f32.mrb[0].mxu0
  %v288 = vadd.f32 0.0, %v287
  %v289 = vpop.f32.mrb[0].mxu0
  %v290 = vadd.f32 0.0, %v289
  %v291 = vpop.f32.mrb[0].mxu0
  %v292 = vadd.f32 0.0, %v291
  %v293 = vpop.f32.mrb[0].mxu0
  %v294 = vadd.f32 0.0, %v293
  %295 = vmatprep.mubr.bf16.mxu0 %v80
  %296 = vmatmul.mubr.bf16.gmra.mrb[0].mxu0 %v79
  %v297 = vpop.f32.mrb[0].mxu0
  %v298 = vadd.f32 0.0, %v297
  %v299 = vpop.f32.mrb[0].mxu0
  %v300 = vadd.f32 0.0, %v299
  %v301 = vpop.f32.mrb[0].mxu0
  %v302 = vadd.f32 0.0, %v301
  %v303 = vpop.f32.mrb[0].mxu0
  %v304 = vadd.f32 0.0, %v303
  %305 = vmatprep.mubr.bf16.mxu0 %v82
  %306 = vmatmul.mubr.bf16.gmra.mrb[0].mxu0 %v81
  %v307 = vpop.f32.mrb[0].mxu0
  %v308 = vadd.f32 0.0, %v307
  %v309 = vpop.f32.mrb[0].mxu0
  %v310 = vadd.f32 0.0, %v309
  %v311 = vpop.f32.mrb[0].mxu0
  %v312 = vadd.f32 0.0, %v311
  %v313 = vpop.f32.mrb[0].mxu0
  %v314 = vadd.f32 0.0, %v313
  %315 = vmatprep.mubr.bf16.mxu0 %v84
  %316 = vmatmul.mubr.bf16.gmra.mrb[0].mxu0 %v83
  %v317 = vpop.f32.mrb[0].mxu0
  %v318 = vadd.f32 0.0, %v317
  %v319 = vpop.f32.mrb[0].mxu0
  %v320 = vadd.f32 0.0, %v319
  %v321 = vpop.f32.mrb[0].mxu0
  %v322 = vpop.f32.mrb[0].mxu0
  %323 = vdwg.mxu0
  %v324 = vld [vmem:[%s2] sm:$0x3]
  %v326 = vlaneseq
  %v327 = vshrl.u32 %v326, 7
  %v328 = vsub.s32 0, %v327
  %v329 = vrot.slane %v324, %v328
  %v330 = vlaneseq
  %v331 = vshrl.u32 %v330, 7
  %v332 = vsub.s32 1, %v331
  %v333 = vrot.slane %v324, %v332
  %v336 = vmul.f32 %v288, %v329
  %v337 = vmul.f32 %v290, %v333
  %v338 = vmul.f32 %v292, %v329
  %v339 = vmul.f32 %v294, %v333
  %v340 = vmul.f32 %v298, %v329
  %v341 = vmul.f32 %v300, %v333
  %v342 = vmul.f32 %v302, %v329
  %v343 = vmul.f32 %v304, %v333
  %v344 = vmul.f32 %v308, %v329
  %v345 = vmul.f32 %v310, %v333
  %v346 = vmul.f32 %v312, %v329
  %v347 = vmul.f32 %v314, %v333
  %v348 = vmul.f32 %v318, %v329
  %v349 = vmul.f32 %v320, %v333
  %v350 = vld [vmem:[%s3] sm:$0x3]
  %v352 = vlaneseq
  %v353 = vshrl.u32 %v352, 7
  %v354 = vsub.s32 0, %v353
  %v355 = vrot.slane %v350, %v354
  %v356 = vlaneseq
  %v357 = vshrl.u32 %v356, 7
  %v358 = vsub.s32 1, %v357
  %v359 = vrot.slane %v350, %v358
  %v362 = vadd.f32 %v336, %v355
  %v363 = vadd.f32 %v337, %v359
  %v364 = vadd.f32 %v338, %v355
  %v365 = vadd.f32 %v339, %v359
  %v366 = vadd.f32 %v340, %v355
  %v367 = vadd.f32 %v341, %v359
  %v368 = vadd.f32 %v342, %v355
  %v369 = vadd.f32 %v343, %v359
  %v370 = vadd.f32 %v344, %v355
  %v371 = vadd.f32 %v345, %v359
  %v372 = vadd.f32 %v346, %v355
  %v373 = vadd.f32 %v347, %v359
  %v374 = vadd.f32 %v348, %v355
  %v375 = vadd.f32 %v349, %v359
  %vm376 = vcmp.gt.f32.partialorder %v362, 0.0
  %vm377 = vcmp.gt.f32.partialorder %v363, 0.0
  %vm378 = vcmp.gt.f32.partialorder %v364, 0.0
  %vm379 = vcmp.gt.f32.partialorder %v365, 0.0
  %vm380 = vcmp.gt.f32.partialorder %v366, 0.0
  %vm381 = vcmp.gt.f32.partialorder %v367, 0.0
  %vm382 = vcmp.gt.f32.partialorder %v368, 0.0
  %vm383 = vcmp.gt.f32.partialorder %v369, 0.0
  %vm384 = vcmp.gt.f32.partialorder %v370, 0.0
  %vm385 = vcmp.gt.f32.partialorder %v371, 0.0
  %vm386 = vcmp.gt.f32.partialorder %v372, 0.0
  %vm387 = vcmp.gt.f32.partialorder %v373, 0.0
  %vm388 = vcmp.gt.f32.partialorder %v374, 0.0
  %vm389 = vcmp.gt.f32.partialorder %v375, 0.0
  %v390 = vmul.f32 %v362, 0.1
  %v391 = vmul.f32 %v363, 0.1
  %v392 = vmul.f32 %v364, 0.1
  %v393 = vmul.f32 %v365, 0.1
  %v394 = vmul.f32 %v366, 0.1
  %v395 = vmul.f32 %v367, 0.1
  %v396 = vmul.f32 %v368, 0.1
  %v397 = vmul.f32 %v369, 0.1
  %v398 = vmul.f32 %v370, 0.1
  %v399 = vmul.f32 %v371, 0.1
  %v400 = vmul.f32 %v372, 0.1
  %v401 = vmul.f32 %v373, 0.1
  %v402 = vmul.f32 %v374, 0.1
  %v403 = vmul.f32 %v375, 0.1
  %v404 = vsel %vm376, %v362, %v390
  %v405 = vsel %vm377, %v363, %v391
  %v406 = vsel %vm378, %v364, %v392
  %v407 = vsel %vm379, %v365, %v393
  %v408 = vsel %vm380, %v366, %v394
  %v409 = vsel %vm381, %v367, %v395
  %v410 = vsel %vm382, %v368, %v396
  %v411 = vsel %vm383, %v369, %v397
  %v412 = vsel %vm384, %v370, %v398
  %v413 = vsel %vm385, %v371, %v399
  %v414 = vsel %vm386, %v372, %v400
  %v415 = vsel %vm387, %v373, %v401
  %v416 = vsel %vm388, %v374, %v402
  %v417 = vsel %vm389, %v375, %v403
  %v418 = vpack.c.bf16 %v406, %v404
  %v419 = vpack.c.bf16 %v407, %v405
  %v420 = vpack.c.bf16 %v410, %v408
  %v421 = vpack.c.bf16 %v411, %v409
  %v422 = vpack.c.bf16 %v414, %v412
  %v423 = vpack.c.bf16 %v415, %v413
  %v424 = vpack.c.bf16 %v416, %v416
  %v425 = vpack.c.bf16 %v417, %v417
  %v434 = vunpack.c.l.b16 %v418
  %v435 = vunpack.c.l.b16 %v419
  %v436 = vunpack.c.h.b16 %v418
  %v437 = vunpack.c.h.b16 %v419
  %v438 = vunpack.c.l.b16 %v420
  %v439 = vunpack.c.l.b16 %v421
  %v440 = vunpack.c.h.b16 %v420
  %v441 = vunpack.c.h.b16 %v421
  %v442 = vunpack.c.l.b16 %v422
  %v443 = vunpack.c.l.b16 %v423
  %v444 = vunpack.c.h.b16 %v422
  %v445 = vunpack.c.h.b16 %v423
  %v446 = vunpack.c.l.b16 %v424
  %v447 = vunpack.c.l.b16 %v425
  %v448 = vpack.c.b16 %v435, %v434
  %v449 = vpack.c.b16 %v437, %v436
  %v450 = vpack.c.b16 %v439, %v438
  %v451 = vpack.c.b16 %v441, %v440
  %v452 = vpack.c.b16 %v443, %v442
  %v453 = vpack.c.b16 %v445, %v444
  %v454 = vpack.c.b16 %v447, %v446
  %462 = vst [vmem:[%s4] sm:$0xff] %v448
  %463 = vst [vmem:[%s4 + $0x8] sm:$0xff] %v449
  %464 = vst [vmem:[%s4 + $0x10] sm:$0xff] %v450
  %465 = vst [vmem:[%s4 + $0x18] sm:$0xff] %v451
  %466 = vst [vmem:[%s4 + $0x20] sm:$0xff] %v452
  %467 = vst [vmem:[%s4 + $0x28] sm:$0xff] %v453
  %468 = vst [vmem:[%s4 + $0x30] sm:$0xff] %v454
  // Predicated region
  $region18: #{vae_forward.15} parent=0 // pred_check
    _
  $region19: #{vae_forward.15} parent=0 // pred_check_branch
    %470 = sbr.rel (0) target = $region21
  $region20: #{vae_forward.15} parent=0 // pred_region
    _
  $region21: #{vae_forward.15} parent=0 // pred_fallthru
    _
  // Predicated region
  $region22: #{vae_forward.15} parent=0 // pred_check
    _
  $region23: #{vae_forward.15} parent=0 // pred_check_branch
    %472 = sbr.rel (0) target = $region25
  $region24: #{vae_forward.15} parent=0 // pred_region
    _
  $region25: #{vae_forward.15} parent=0 // pred_fallthru
    _

// kernel: vae_forward.16
$region0: #{vae_forward.16}
  #allocation0 [shape = 'u32[]', space=smem, size = 0x4, offset = 0x4, fixed_abs, tag = 'smem constant byte address 0x4 - core index']
  #allocation1 [shape = 'u32[144,128]{1,0:T(1,128)}', space=vmem, size = 0x12000, scoped, tag = 'internal scratch']
  %s0 = inlined_call_operand.vmem [shape: bf16[168,256], index: 0, kind: input, shape index: {}]
  %s1 = inlined_call_operand.vmem [shape: bf16[256,128], index: 1, kind: input, shape index: {}]
  %s2 = inlined_call_operand.vmem [shape: f32[1,128], index: 2, kind: input, shape index: {}]
  %s3 = inlined_call_operand.vmem [shape: f32[1,128], index: 3, kind: input, shape index: {}]
  %s4 = inlined_call_operand.vmem [shape: bf16[168,128], index: 4, kind: output, shape index: {}]
  %s5 = sld [smem:[#allocation0]]
  $region26: #{vae_forward.16} parent=0
    _
  %s7 = ssub.s32 1, %s5
  %s8 = scalar_select 0, %s7, %s5
  // Predicated region
  $region2: #{vae_forward.16} parent=0 // pred_check
    _
  $region3: #{vae_forward.16} parent=0 // pred_check_branch
    %10 = sbr.rel (0) target = $region5
  $region4: #{vae_forward.16} parent=0 // pred_region
    _
  $region5: #{vae_forward.16} parent=0 // pred_fallthru
    _
  // Predicated region
  $region6: #{vae_forward.16} parent=0 // pred_check
    _
  $region7: #{vae_forward.16} parent=0 // pred_check_branch
    %12 = sbr.rel (0) target = $region9
  $region8: #{vae_forward.16} parent=0 // pred_region
    _
  $region9: #{vae_forward.16} parent=0 // pred_fallthru
    _
  // Predicated region
  $region10: #{vae_forward.16} parent=0 // pred_check
    _
  $region11: #{vae_forward.16} parent=0 // pred_check_branch
    %14 = sbr.rel (0) target = $region13
  $region12: #{vae_forward.16} parent=0 // pred_region
    _
  $region13: #{vae_forward.16} parent=0 // pred_fallthru
    _
  // Predicated region
  $region14: #{vae_forward.16} parent=0 // pred_check
    _
  $region15: #{vae_forward.16} parent=0 // pred_check_branch
    %16 = sbr.rel (0) target = $region17
  $region16: #{vae_forward.16} parent=0 // pred_region
    _
  $region17: #{vae_forward.16} parent=0 // pred_fallthru
    _
  %v18 = vld [vmem:[%s0] sm:$0xff]
  %v19 = vld [vmem:[%s0 + $0x8] sm:$0xff]
  %v20 = vld [vmem:[%s0 + $0x10] sm:$0xff]
  %v21 = vld [vmem:[%s0 + $0x18] sm:$0xff]
  %v22 = vld [vmem:[%s0 + $0x20] sm:$0xff]
  %v23 = vld [vmem:[%s0 + $0x28] sm:$0xff]
  %v24 = vld [vmem:[%s0 + $0x30] sm:$0xff]
  %v25 = vld [vmem:[%s0 + $0x38] sm:$0xff]
  %v26 = vld [vmem:[%s0 + $0x40] sm:$0xff]
  %v27 = vld [vmem:[%s0 + $0x48] sm:$0xff]
  %v28 = vld [vmem:[%s0 + $0x50] sm:$0xff]
  %v29 = vld [vmem:[%s0 + $0x58] sm:$0xff]
  %v30 = vld [vmem:[%s0 + $0x60] sm:$0xff]
  %v31 = vld [vmem:[%s0 + $0x68] sm:$0xff]
  %v32 = vld [vmem:[%s0 + $0x70] sm:$0xff]
  %v33 = vld [vmem:[%s0 + $0x78] sm:$0xff]
  %v34 = vld [vmem:[%s0 + $0x80] sm:$0xff]
  %v35 = vld [vmem:[%s0 + $0x88] sm:$0xff]
  %v36 = vld [vmem:[%s0 + $0x90] sm:$0xff]
  %v37 = vld [vmem:[%s0 + $0x98] sm:$0xff]
  %v38 = vld [vmem:[%s0 + $0xa0] sm:$0xff]
  %v39 = vld [vmem:[%s1] sm:$0xf]
  %v40 = vld [vmem:[%s1 + $0x4] sm:$0xf]
  %v41 = vld [vmem:[%s1 + $0x8] sm:$0xf]
  %v42 = vld [vmem:[%s1 + $0xc] sm:$0xf]
  %v43 = vld [vmem:[%s1 + $0x10] sm:$0xf]
  %v44 = vld [vmem:[%s1 + $0x14] sm:$0xf]
  %v45 = vld [vmem:[%s1 + $0x18] sm:$0xf]
  %v46 = vld [vmem:[%s1 + $0x1c] sm:$0xf]
  %v47 = vld [vmem:[%s1 + $0x20] sm:$0xf]
  %v48 = vld [vmem:[%s1 + $0x24] sm:$0xf]
  %v49 = vld [vmem:[%s1 + $0x28] sm:$0xf]
  %v50 = vld [vmem:[%s1 + $0x2c] sm:$0xf]
  %v51 = vld [vmem:[%s1 + $0x30] sm:$0xf]
  %v52 = vld [vmem:[%s1 + $0x34] sm:$0xf]
  %v53 = vld [vmem:[%s1 + $0x38] sm:$0xf]
  %v54 = vld [vmem:[%s1 + $0x3c] sm:$0xf]
  %v55 = vld [vmem:[%s1 + $0x40] sm:$0xf]
  %v56 = vld [vmem:[%s1 + $0x44] sm:$0xf]
  %v57 = vld [vmem:[%s1 + $0x48] sm:$0xf]
  %v58 = vld [vmem:[%s1 + $0x4c] sm:$0xf]
  %v59 = vld [vmem:[%s1 + $0x50] sm:$0xf]
  %v60 = vld [vmem:[%s1 + $0x54] sm:$0xf]
  %v61 = vld [vmem:[%s1 + $0x58] sm:$0xf]
  %v62 = vld [vmem:[%s1 + $0x5c] sm:$0xf]
  %v63 = vld [vmem:[%s1 + $0x60] sm:$0xf]
  %v64 = vld [vmem:[%s1 + $0x64] sm:$0xf]
  %v65 = vld [vmem:[%s1 + $0x68] sm:$0xf]
  %v66 = vld [vmem:[%s1 + $0x6c] sm:$0xf]
  %v67 = vld [vmem:[%s1 + $0x70] sm:$0xf]
  %v68 = vld [vmem:[%s1 + $0x74] sm:$0xf]
  %v69 = vld [vmem:[%s1 + $0x78] sm:$0xf]
  %v70 = vld [vmem:[%s1 + $0x7c] sm:$0xf]
  %v92 = vunpack.c.l.b16 %v18
  %v93 = vunpack.c.h.b16 %v18
  %v94 = vunpack.c.l.b16 %v19
  %v95 = vunpack.c.h.b16 %v19
  %v96 = vunpack.c.l.b16 %v20
  %v97 = vunpack.c.h.b16 %v20
  %v98 = vunpack.c.l.b16 %v21
  %v99 = vunpack.c.h.b16 %v21
  %v100 = vunpack.c.l.b16 %v22
  %v101 = vunpack.c.h.b16 %v22
  %v102 = vunpack.c.l.b16 %v23
  %v103 = vunpack.c.h.b16 %v23
  %v104 = vunpack.c.l.b16 %v24
  %v105 = vunpack.c.h.b16 %v24
  %v106 = vunpack.c.l.b16 %v25
  %v107 = vunpack.c.h.b16 %v25
  %v108 = vunpack.c.l.b16 %v26
  %v109 = vunpack.c.h.b16 %v26
  %v110 = vunpack.c.l.b16 %v27
  %v111 = vunpack.c.h.b16 %v27
  %v112 = vunpack.c.l.b16 %v28
  %v113 = vunpack.c.h.b16 %v28
  %v114 = vunpack.c.l.b16 %v29
  %v115 = vunpack.c.h.b16 %v29
  %v116 = vunpack.c.l.b16 %v30
  %v117 = vunpack.c.h.b16 %v30
  %v118 = vunpack.c.l.b16 %v31
  %v119 = vunpack.c.h.b16 %v31
  %v120 = vunpack.c.l.b16 %v32
  %v121 = vunpack.c.h.b16 %v32
  %v122 = vunpack.c.l.b16 %v33
  %v123 = vunpack.c.h.b16 %v33
  %v124 = vunpack.c.l.b16 %v34
  %v125 = vunpack.c.h.b16 %v34
  %v126 = vunpack.c.l.b16 %v35
  %v127 = vunpack.c.h.b16 %v35
  %v128 = vunpack.c.l.b16 %v36
  %v129 = vunpack.c.h.b16 %v36
  %v130 = vunpack.c.l.b16 %v37
  %v131 = vunpack.c.h.b16 %v37
  %v132 = vunpack.c.l.b16 %v38
  %v133 = vunpack.c.h.b16 %v38
  %v134 = vpack.c.b16 %v94, %v92
  %v135 = vpack.c.b16 %v95, %v93
  %v136 = vpack.c.b16 %v98, %v96
  %v137 = vpack.c.b16 %v99, %v97
  %v138 = vpack.c.b16 %v102, %v100
  %v139 = vpack.c.b16 %v103, %v101
  %v140 = vpack.c.b16 %v106, %v104
  %v141 = vpack.c.b16 %v107, %v105
  %v142 = vpack.c.b16 %v110, %v108
  %v143 = vpack.c.b16 %v111, %v109
  %v144 = vpack.c.b16 %v114, %v112
  %v145 = vpack.c.b16 %v115, %v113
  %v146 = vpack.c.b16 %v118, %v116
  %v147 = vpack.c.b16 %v119, %v117
  %v148 = vpack.c.b16 %v122, %v120
  %v149 = vpack.c.b16 %v123, %v121
  %v150 = vpack.c.b16 %v126, %v124
  %v151 = vpack.c.b16 %v127, %v125
  %v152 = vpack.c.b16 %v130, %v128
  %v153 = vpack.c.b16 %v131, %v129
  %v154 = vpack.c.b16 %v132, %v132
  %v155 = vpack.c.b16 %v133, %v133
  %v210 = vunpack.c.l.b16 %v39
  %v211 = vunpack.c.l.b16 %v40
  %v212 = vunpack.c.l.b16 %v41
  %v213 = vunpack.c.l.b16 %v42
  %v214 = vunpack.c.l.b16 %v43
  %v215 = vunpack.c.l.b16 %v44
  %v216 = vunpack.c.l.b16 %v45
  %v217 = vunpack.c.l.b16 %v46
  %v218 = vunpack.c.l.b16 %v47
  %v219 = vunpack.c.l.b16 %v48
  %v220 = vunpack.c.l.b16 %v49
  %v221 = vunpack.c.l.b16 %v50
  %v222 = vunpack.c.l.b16 %v51
  %v223 = vunpack.c.l.b16 %v52
  %v224 = vunpack.c.l.b16 %v53
  %v225 = vunpack.c.l.b16 %v54
  %v226 = vunpack.c.l.b16 %v55
  %v227 = vunpack.c.l.b16 %v56
  %v228 = vunpack.c.l.b16 %v57
  %v229 = vunpack.c.l.b16 %v58
  %v230 = vunpack.c.l.b16 %v59
  %v231 = vunpack.c.l.b16 %v60
  %v232 = vunpack.c.l.b16 %v61
  %v233 = vunpack.c.l.b16 %v62
  %v234 = vunpack.c.l.b16 %v63
  %v235 = vunpack.c.l.b16 %v64
  %v236 = vunpack.c.l.b16 %v65
  %v237 = vunpack.c.l.b16 %v66
  %v238 = vunpack.c.l.b16 %v67
  %v239 = vunpack.c.l.b16 %v68
  %v240 = vunpack.c.l.b16 %v69
  %v241 = vunpack.c.l.b16 %v70
  %v242 = vpack.c.b16 %v211, %v210
  %v243 = vpack.c.b16 %v213, %v212
  %v244 = vpack.c.b16 %v215, %v214
  %v245 = vpack.c.b16 %v217, %v216
  %v246 = vpack.c.b16 %v219, %v218
  %v247 = vpack.c.b16 %v221, %v220
  %v248 = vpack.c.b16 %v223, %v222
  %v249 = vpack.c.b16 %v225, %v224
  %v250 = vpack.c.b16 %v227, %v226
  %v251 = vpack.c.b16 %v229, %v228
  %v252 = vpack.c.b16 %v231, %v230
  %v253 = vpack.c.b16 %v233, %v232
  %v254 = vpack.c.b16 %v235, %v234
  %v255 = vpack.c.b16 %v237, %v236
  %v256 = vpack.c.b16 %v239, %v238
  %v257 = vpack.c.b16 %v241, %v240
  %274 = vmatprep.subr.bf16.mxu0 0
  %275 = vmatpush1.bf16.msra.mxu0 %v242
  %276 = vmatprep.subr.bf16.mxu0 0
  %277 = vmatpush1.bf16.msra.mxu0 %v243
  %278 = vmatprep.subr.bf16.mxu0 0
  %279 = vmatpush1.bf16.msra.mxu0 %v244
  %280 = vmatprep.subr.bf16.mxu0 0
  %281 = vmatpush1.bf16.msra.mxu0 %v245
  %282 = vmatprep.subr.bf16.mxu0 0
  %283 = vmatpush1.bf16.msra.mxu0 %v246
  %284 = vmatprep.subr.bf16.mxu0 0
  %285 = vmatpush1.bf16.msra.mxu0 %v247
  %286 = vmatprep.subr.bf16.mxu0 0
  %287 = vmatpush1.bf16.msra.mxu0 %v248
  %288 = vmatprep.subr.bf16.mxu0 0
  %289 = vmatpush1.bf16.msra.mxu0 %v249
  %290 = vmatprep.subr.bf16.mxu0 0
  %291 = vmatpush1.bf16.msra.mxu0 %v250
  %292 = vmatprep.subr.bf16.mxu0 0
  %293 = vmatpush1.bf16.msra.mxu0 %v251
  %294 = vmatprep.subr.bf16.mxu0 0
  %295 = vmatpush1.bf16.msra.mxu0 %v252
  %296 = vmatprep.subr.bf16.mxu0 0
  %297 = vmatpush1.bf16.msra.mxu0 %v253
  %298 = vmatprep.subr.bf16.mxu0 0
  %299 = vmatpush1.bf16.msra.mxu0 %v254
  %300 = vmatprep.subr.bf16.mxu0 0
  %301 = vmatpush1.bf16.msra.mxu0 %v255
  %302 = vmatprep.subr.bf16.mxu0 0
  %303 = vmatpush1.bf16.msra.mxu0 %v256
  %304 = vmatprep.subr.bf16.mxu0 0
  %305 = vmatpush1.bf16.msra.mxu0 %v257
  %306 = vmatprep.mubr.bf16.mxu0 %v135
  %307 = vmatmul.mubr.bf16.gmra.mrb[0].mxu0 %v134
  %v308 = vpop.f32.mrb[0].mxu0
  %v309 = vadd.f32 0.0, %v308
  %v310 = vpop.f32.mrb[0].mxu0
  %v311 = vpop.f32.mrb[0].mxu0
  %v312 = vadd.f32 0.0, %v311
  %v313 = vpop.f32.mrb[0].mxu0
  %314 = vmatprep.mubr.bf16.mxu0 %v137
  %315 = vmatmul.mubr.bf16.gmra.mrb[0].mxu0 %v136
  %v316 = vpop.f32.mrb[0].mxu0
  %v317 = vadd.f32 0.0, %v316
  %v318 = vpop.f32.mrb[0].mxu0
  %v319 = vpop.f32.mrb[0].mxu0
  %v320 = vadd.f32 0.0, %v319
  %v321 = vpop.f32.mrb[0].mxu0
  %322 = vmatprep.mubr.bf16.mxu0 %v139
  %323 = vmatmul.mubr.bf16.gmra.mrb[0].mxu0 %v138
  %v324 = vpop.f32.mrb[0].mxu0
  %v325 = vadd.f32 0.0, %v324
  %v326 = vpop.f32.mrb[0].mxu0
  %v327 = vpop.f32.mrb[0].mxu0
  %v328 = vadd.f32 0.0, %v327
  %v329 = vpop.f32.mrb[0].mxu0
  %330 = vmatprep.mubr.bf16.mxu0 %v141
  %331 = vmatmul.mubr.bf16.gmra.mrb[0].mxu0 %v140
  %v332 = vpop.f32.mrb[0].mxu0
  %v333 = vadd.f32 0.0, %v332
  %v334 = vpop.f32.mrb[0].mxu0
  %v335 = vpop.f32.mrb[0].mxu0
  %v336 = vadd.f32 0.0, %v335
  %v337 = vpop.f32.mrb[0].mxu0
  %338 = vmatprep.mubr.bf16.mxu0 %v143
  %339 = vmatmul.mubr.bf16.gmra.mrb[0].mxu0 %v142
  %v340 = vpop.f32.mrb[0].mxu0
  %v341 = vadd.f32 0.0, %v340
  %v342 = vpop.f32.mrb[0].mxu0
  %v343 = vpop.f32.mrb[0].mxu0
  %v344 = vadd.f32 0.0, %v343
  %v345 = vpop.f32.mrb[0].mxu0
  %346 = vmatprep.mubr.bf16.mxu0 %v145
  %347 = vmatmul.mubr.bf16.gmra.mrb[0].mxu0 %v144
  %v348 = vpop.f32.mrb[0].mxu0
  %v349 = vadd.f32 0.0, %v348
  %v350 = vpop.f32.mrb[0].mxu0
  %v351 = vpop.f32.mrb[0].mxu0
  %v352 = vadd.f32 0.0, %v351
  %v353 = vpop.f32.mrb[0].mxu0
  %354 = vmatprep.mubr.bf16.mxu0 %v147
  %355 = vmatmul.mubr.bf16.gmra.mrb[0].mxu0 %v146
  %v356 = vpop.f32.mrb[0].mxu0
  %v357 = vadd.f32 0.0, %v356
  %v358 = vpop.f32.mrb[0].mxu0
  %v359 = vpop.f32.mrb[0].mxu0
  %v360 = vadd.f32 0.0, %v359
  %v361 = vpop.f32.mrb[0].mxu0
  %362 = vmatprep.mubr.bf16.mxu0 %v149
  %363 = vmatmul.mubr.bf16.gmra.mrb[0].mxu0 %v148
  %v364 = vpop.f32.mrb[0].mxu0
  %v365 = vadd.f32 0.0, %v364
  %v366 = vpop.f32.mrb[0].mxu0
  %v367 = vpop.f32.mrb[0].mxu0
  %v368 = vadd.f32 0.0, %v367
  %v369 = vpop.f32.mrb[0].mxu0
  %370 = vmatprep.mubr.bf16.mxu0 %v151
  %371 = vmatmul.mubr.bf16.gmra.mrb[0].mxu0 %v150
  %v372 = vpop.f32.mrb[0].mxu0
  %v373 = vadd.f32 0.0, %v372
  %v374 = vpop.f32.mrb[0].mxu0
  %v375 = vpop.f32.mrb[0].mxu0
  %v376 = vadd.f32 0.0, %v375
  %v377 = vpop.f32.mrb[0].mxu0
  %378 = vmatprep.mubr.bf16.mxu0 %v153
  %379 = vmatmul.mubr.bf16.gmra.mrb[0].mxu0 %v152
  %v380 = vpop.f32.mrb[0].mxu0
  %v381 = vadd.f32 0.0, %v380
  %v382 = vpop.f32.mrb[0].mxu0
  %v383 = vpop.f32.mrb[0].mxu0
  %v384 = vadd.f32 0.0, %v383
  %v385 = vpop.f32.mrb[0].mxu0
  %386 = vmatprep.mubr.bf16.mxu0 %v155
  %387 = vmatmul.mubr.bf16.gmra.mrb[0].mxu0 %v154
  %v388 = vpop.f32.mrb[0].mxu0
  %v389 = vadd.f32 0.0, %v388
  %v390 = vpop.f32.mrb[0].mxu0
  %v391 = vpop.f32.mrb[0].mxu0
  %v392 = vpop.f32.mrb[0].mxu0
  %393 = vdwg.mxu0
  %v394 = vld [vmem:[%s2] sm:$0x1]
  %v396 = vlaneseq
  %v397 = vshrl.u32 %v396, 7
  %v398 = vsub.s32 0, %v397
  %v399 = vrot.slane %v394, %v398
  %v401 = vmul.f32 %v309, %v399
  %v402 = vmul.f32 %v312, %v399
  %v403 = vmul.f32 %v317, %v399
  %v404 = vmul.f32 %v320, %v399
  %v405 = vmul.f32 %v325, %v399
  %v406 = vmul.f32 %v328, %v399
  %v407 = vmul.f32 %v333, %v399
  %v408 = vmul.f32 %v336, %v399
  %v409 = vmul.f32 %v341, %v399
  %v410 = vmul.f32 %v344, %v399
  %v411 = vmul.f32 %v349, %v399
  %v412 = vmul.f32 %v352, %v399
  %v413 = vmul.f32 %v357, %v399
  %v414 = vmul.f32 %v360, %v399
  %v415 = vmul.f32 %v365, %v399
  %v416 = vmul.f32 %v368, %v399
  %v417 = vmul.f32 %v373, %v399
  %v418 = vmul.f32 %v376, %v399
  %v419 = vmul.f32 %v381, %v399
  %v420 = vmul.f32 %v384, %v399
  %v421 = vmul.f32 %v389, %v399
  %v422 = vld [vmem:[%s3] sm:$0x1]
  %v424 = vlaneseq
  %v425 = vshrl.u32 %v424, 7
  %v426 = vsub.s32 0, %v425
  %v427 = vrot.slane %v422, %v426
  %v429 = vadd.f32 %v401, %v427
  %v430 = vadd.f32 %v402, %v427
  %v431 = vadd.f32 %v403, %v427
  %v432 = vadd.f32 %v404, %v427
  %v433 = vadd.f32 %v405, %v427
  %v434 = vadd.f32 %v406, %v427
  %v435 = vadd.f32 %v407, %v427
  %v436 = vadd.f32 %v408, %v427
  %v437 = vadd.f32 %v409, %v427
  %v438 = vadd.f32 %v410, %v427
  %v439 = vadd.f32 %v411, %v427
  %v440 = vadd.f32 %v412, %v427
  %v441 = vadd.f32 %v413, %v427
  %v442 = vadd.f32 %v414, %v427
  %v443 = vadd.f32 %v415, %v427
  %v444 = vadd.f32 %v416, %v427
  %v445 = vadd.f32 %v417, %v427
  %v446 = vadd.f32 %v418, %v427
  %v447 = vadd.f32 %v419, %v427
  %v448 = vadd.f32 %v420, %v427
  %v449 = vadd.f32 %v421, %v427
  %vm450 = vcmp.gt.f32.partialorder %v429, 0.0
  %vm451 = vcmp.gt.f32.partialorder %v430, 0.0
  %vm452 = vcmp.gt.f32.partialorder %v431, 0.0
  %vm453 = vcmp.gt.f32.partialorder %v432, 0.0
  %vm454 = vcmp.gt.f32.partialorder %v433, 0.0
  %vm455 = vcmp.gt.f32.partialorder %v434, 0.0
  %vm456 = vcmp.gt.f32.partialorder %v435, 0.0
  %vm457 = vcmp.gt.f32.partialorder %v436, 0.0
  %vm458 = vcmp.gt.f32.partialorder %v437, 0.0
  %vm459 = vcmp.gt.f32.partialorder %v438, 0.0
  %vm460 = vcmp.gt.f32.partialorder %v439, 0.0
  %vm461 = vcmp.gt.f32.partialorder %v440, 0.0
  %vm462 = vcmp.gt.f32.partialorder %v441, 0.0
  %vm463 = vcmp.gt.f32.partialorder %v442, 0.0
  %vm464 = vcmp.gt.f32.partialorder %v443, 0.0
  %vm465 = vcmp.gt.f32.partialorder %v444, 0.0
  %vm466 = vcmp.gt.f32.partialorder %v445, 0.0
  %vm467 = vcmp.gt.f32.partialorder %v446, 0.0
  %vm468 = vcmp.gt.f32.partialorder %v447, 0.0
  %vm469 = vcmp.gt.f32.partialorder %v448, 0.0
  %vm470 = vcmp.gt.f32.partialorder %v449, 0.0
  %v471 = vmul.f32 %v429, 0.1
  %v472 = vmul.f32 %v430, 0.1
  %v473 = vmul.f32 %v431, 0.1
  %v474 = vmul.f32 %v432, 0.1
  %v475 = vmul.f32 %v433, 0.1
  %v476 = vmul.f32 %v434, 0.1
  %v477 = vmul.f32 %v435, 0.1
  %v478 = vmul.f32 %v436, 0.1
  %v479 = vmul.f32 %v437, 0.1
  %v480 = vmul.f32 %v438, 0.1
  %v481 = vmul.f32 %v439, 0.1
  %v482 = vmul.f32 %v440, 0.1
  %v483 = vmul.f32 %v441, 0.1
  %v484 = vmul.f32 %v442, 0.1
  %v485 = vmul.f32 %v443, 0.1
  %v486 = vmul.f32 %v444, 0.1
  %v487 = vmul.f32 %v445, 0.1
  %v488 = vmul.f32 %v446, 0.1
  %v489 = vmul.f32 %v447, 0.1
  %v490 = vmul.f32 %v448, 0.1
  %v491 = vmul.f32 %v449, 0.1
  %v492 = vsel %vm450, %v429, %v471
  %v493 = vsel %vm451, %v430, %v472
  %v494 = vsel %vm452, %v431, %v473
  %v495 = vsel %vm453, %v432, %v474
  %v496 = vsel %vm454, %v433, %v475
  %v497 = vsel %vm455, %v434, %v476
  %v498 = vsel %vm456, %v435, %v477
  %v499 = vsel %vm457, %v436, %v478
  %v500 = vsel %vm458, %v437, %v479
  %v501 = vsel %vm459, %v438, %v480
  %v502 = vsel %vm460, %v439, %v481
  %v503 = vsel %vm461, %v440, %v482
  %v504 = vsel %vm462, %v441, %v483
  %v505 = vsel %vm463, %v442, %v484
  %v506 = vsel %vm464, %v443, %v485
  %v507 = vsel %vm465, %v444, %v486
  %v508 = vsel %vm466, %v445, %v487
  %v509 = vsel %vm467, %v446, %v488
  %v510 = vsel %vm468, %v447, %v489
  %v511 = vsel %vm469, %v448, %v490
  %v512 = vsel %vm470, %v449, %v491
  %v513 = vpack.c.bf16 %v493, %v492
  %v514 = vpack.c.bf16 %v495, %v494
  %v515 = vpack.c.bf16 %v497, %v496
  %v516 = vpack.c.bf16 %v499, %v498
  %v517 = vpack.c.bf16 %v501, %v500
  %v518 = vpack.c.bf16 %v503, %v502
  %v519 = vpack.c.bf16 %v505, %v504
  %v520 = vpack.c.bf16 %v507, %v506
  %v521 = vpack.c.bf16 %v509, %v508
  %v522 = vpack.c.bf16 %v511, %v510
  %v523 = vpack.c.bf16 %v512, %v512
  %v535 = vunpack.c.l.b16 %v513
  %v536 = vunpack.c.h.b16 %v513
  %v537 = vunpack.c.l.b16 %v514
  %v538 = vunpack.c.h.b16 %v514
  %v539 = vunpack.c.l.b16 %v515
  %v540 = vunpack.c.h.b16 %v515
  %v541 = vunpack.c.l.b16 %v516
  %v542 = vunpack.c.h.b16 %v516
  %v543 = vunpack.c.l.b16 %v517
  %v544 = vunpack.c.h.b16 %v517
  %v545 = vunpack.c.l.b16 %v518
  %v546 = vunpack.c.h.b16 %v518
  %v547 = vunpack.c.l.b16 %v519
  %v548 = vunpack.c.h.b16 %v519
  %v549 = vunpack.c.l.b16 %v520
  %v550 = vunpack.c.h.b16 %v520
  %v551 = vunpack.c.l.b16 %v521
  %v552 = vunpack.c.h.b16 %v521
  %v553 = vunpack.c.l.b16 %v522
  %v554 = vunpack.c.h.b16 %v522
  %v555 = vunpack.c.l.b16 %v523
  %v556 = vpack.c.b16 %v535, %v535
  %v557 = vpack.c.b16 %v536, %v536
  %v558 = vpack.c.b16 %v537, %v537
  %v559 = vpack.c.b16 %v538, %v538
  %v560 = vpack.c.b16 %v539, %v539
  %v561 = vpack.c.b16 %v540, %v540
  %v562 = vpack.c.b16 %v541, %v541
  %v563 = vpack.c.b16 %v542, %v542
  %v564 = vpack.c.b16 %v543, %v543
  %v565 = vpack.c.b16 %v544, %v544
  %v566 = vpack.c.b16 %v545, %v545
  %v567 = vpack.c.b16 %v546, %v546
  %v568 = vpack.c.b16 %v547, %v547
  %v569 = vpack.c.b16 %v548, %v548
  %v570 = vpack.c.b16 %v549, %v549
  %v571 = vpack.c.b16 %v550, %v550
  %v572 = vpack.c.b16 %v551, %v551
  %v573 = vpack.c.b16 %v552, %v552
  %v574 = vpack.c.b16 %v553, %v553
  %v575 = vpack.c.b16 %v554, %v554
  %v576 = vpack.c.b16 %v555, %v555
  %598 = vst [vmem:[%s4] sm:$0xf] %v556
  %599 = vst [vmem:[%s4 + $0x4] sm:$0xf] %v557
  %600 = vst [vmem:[%s4 + $0x8] sm:$0xf] %v558
  %601 = vst [vmem:[%s4 + $0xc] sm:$0xf] %v559
  %602 = vst [vmem:[%s4 + $0x10] sm:$0xf] %v560
  %603 = vst [vmem:[%s4 + $0x14] sm:$0xf] %v561
  %604 = vst [vmem:[%s4 + $0x18] sm:$0xf] %v562
  %605 = vst [vmem:[%s4 + $0x1c] sm:$0xf] %v563
  %606 = vst [vmem:[%s4 + $0x20] sm:$0xf] %v564
  %607 = vst [vmem:[%s4 + $0x24] sm:$0xf] %v565
  %608 = vst [vmem:[%s4 + $0x28] sm:$0xf] %v566
  %609 = vst [vmem:[%s4 + $0x2c] sm:$0xf] %v567
  %610 = vst [vmem:[%s4 + $0x30] sm:$0xf] %v568
  %611 = vst [vmem:[%s4 + $0x34] sm:$0xf] %v569
  %612 = vst [vmem:[%s4 + $0x38] sm:$0xf] %v570
  %613 = vst [vmem:[%s4 + $0x3c] sm:$0xf] %v571
  %614 = vst [vmem:[%s4 + $0x40] sm:$0xf] %v572
  %615 = vst [vmem:[%s4 + $0x44] sm:$0xf] %v573
  %616 = vst [vmem:[%s4 + $0x48] sm:$0xf] %v574
  %617 = vst [vmem:[%s4 + $0x4c] sm:$0xf] %v575
  %618 = vst [vmem:[%s4 + $0x50] sm:$0xf] %v576
  // Predicated region
  $region18: #{vae_forward.16} parent=0 // pred_check
    _
  $region19: #{vae_forward.16} parent=0 // pred_check_branch
    %620 = sbr.rel (0) target = $region21
  $region20: #{vae_forward.16} parent=0 // pred_region
    _
  $region21: #{vae_forward.16} parent=0 // pred_fallthru
    _
  // Predicated region
  $region22: #{vae_forward.16} parent=0 // pred_check
    _
  $region23: #{vae_forward.16} parent=0 // pred_check_branch
    %622 = sbr.rel (0) target = $region25
  $region24: #{vae_forward.16} parent=0 // pred_region
    _
  $region25: #{vae_forward.16} parent=0 // pred_fallthru
    _

// kernel: vae_forward.17
$region0: #{vae_forward.17}
  #allocation0 [shape = 'u32[]', space=smem, size = 0x4, offset = 0x4, fixed_abs, tag = 'smem constant byte address 0x4 - core index']
  #allocation1 [shape = 'u32[144,128]{1,0:T(1,128)}', space=vmem, size = 0x12000, scoped, tag = 'internal scratch']
  %s0 = inlined_call_operand.vmem [shape: bf16[512,128], index: 0, kind: input, shape index: {}]
  %s1 = inlined_call_operand.vmem [shape: bf16[128,12], index: 1, kind: input, shape index: {}]
  %s2 = inlined_call_operand.vmem [shape: f32[1,12], index: 2, kind: input, shape index: {}]
  %s3 = inlined_call_operand.vmem [shape: f32[1,12], index: 3, kind: input, shape index: {}]
  %s4 = inlined_call_operand.vmem [shape: f32[512,12], index: 4, kind: output, shape index: {}]
  %s5 = sld [smem:[#allocation0]]
  $region49: #{vae_forward.17} parent=0
    _
  %s7 = ssub.s32 1, %s5
  %s8 = scalar_select 0, %s7, %s5
  loop: start=0, step=1, limit=4
  $region2: #{vae_forward.17} parent=0 // loop_pre_header
    _
  $region3: #{vae_forward.17} parent=0 // loop_header
    %s10 = sphi 0, %s14
    %p11 = scmp.ge.s32.totalorder %s10, 4
    %s20 = sphi 0, %s22
    %s23 = sphi 0, %s20
    %s24 = sphi 0, %s23
    %s40 = sphi 0, %s24
    %s44 = sphi 0, %s44
    %s46 = sphi 0, %s44
    %s47 = sphi 0, %s46
    %s61 = sphi 0, %s47
    %s65 = sphi 0, %s65
    %s67 = sphi 0, %s65
    %s68 = sphi 0, %s67
    %s82 = sphi 0, %s68
    %s86 = sphi 0, %s86
    %s88 = sphi 0, %s86
    %s89 = sphi 0, %s88
    %s103 = sphi 0, %s89
    %s109 = sphi 0, %s111
    %s112 = sphi 0, %s109
    %s113 = sphi 0, %s112
    %s129 = sphi 0, %s113
  $region4: #{vae_forward.17} parent=0 // loop_header_branch
    %13 = sbr.rel (%p11) target = $region8
  $region5: #{vae_forward.17} parent=0 // loop_body
    %s15 = ssub.s32 %s10, 1
    %s16 = ssub.s32 %s10, 2
    %s17 = sadd.s32 %s10, 1
    %s18 = ssub.s32 %s10, %s17
    %p19 = scmp.eq.s32.totalorder %s18, 0
    %s21 = sadd.s32 %s20, 1
    %s22 = scalar_select %p19, %s20, %s21
    %p25 = pneg %p19
    %p26 = scmp.eq.s32.totalorder %s10, 1
    %p27 = por %p25, %p26
    %p28 = scmp.ne.s32.totalorder %s20, %s23
    %p29 = scmp.eq.s32.totalorder %s10, 0
    %p30 = por %p28, %p29
    %p31 = scmp.ne.s32.totalorder %s20, %s23
    %p32 = scmp.eq.s32.totalorder %s15, 1
    %p33 = por %p31, %p32
    %p34 = scmp.ne.s32.totalorder %s23, %s24
    %p35 = scmp.eq.s32.totalorder %s15, 0
    %p36 = por %p34, %p35
    %p37 = scmp.ne.s32.totalorder %s23, %s24
    %p38 = scmp.eq.s32.totalorder %s16, 1
    %p39 = por %p37, %p38
    %p41 = scmp.ne.s32.totalorder %s24, %s40
    %p42 = scmp.eq.s32.totalorder %s16, 0
    %p43 = por %p41, %p42
    %s45 = sadd.s32 %s44, 1
    %p48 = scmp.eq.s32.totalorder %s10, 1
    %p49 = scmp.ne.s32.totalorder %s44, %s46
    %p50 = scmp.eq.s32.totalorder %s10, 0
    %p51 = por %p49, %p50
    %p52 = scmp.ne.s32.totalorder %s44, %s46
    %p53 = scmp.eq.s32.totalorder %s15, 1
    %p54 = por %p52, %p53
    %p55 = scmp.ne.s32.totalorder %s46, %s47
    %p56 = scmp.eq.s32.totalorder %s15, 0
    %p57 = por %p55, %p56
    %p58 = scmp.ne.s32.totalorder %s46, %s47
    %p59 = scmp.eq.s32.totalorder %s16, 1
    %p60 = por %p58, %p59
    %p62 = scmp.ne.s32.totalorder %s47, %s61
    %p63 = scmp.eq.s32.totalorder %s16, 0
    %p64 = por %p62, %p63
    %s66 = sadd.s32 %s65, 1
    %p69 = scmp.eq.s32.totalorder %s10, 1
    %p70 = scmp.ne.s32.totalorder %s65, %s67
    %p71 = scmp.eq.s32.totalorder %s10, 0
    %p72 = por %p70, %p71
    %p73 = scmp.ne.s32.totalorder %s65, %s67
    %p74 = scmp.eq.s32.totalorder %s15, 1
    %p75 = por %p73, %p74
    %p76 = scmp.ne.s32.totalorder %s67, %s68
    %p77 = scmp.eq.s32.totalorder %s15, 0
    %p78 = por %p76, %p77
    %p79 = scmp.ne.s32.totalorder %s67, %s68
    %p80 = scmp.eq.s32.totalorder %s16, 1
    %p81 = por %p79, %p80
    %p83 = scmp.ne.s32.totalorder %s68, %s82
    %p84 = scmp.eq.s32.totalorder %s16, 0
    %p85 = por %p83, %p84
    %s87 = sadd.s32 %s86, 1
    %p90 = scmp.eq.s32.totalorder %s10, 1
    %p91 = scmp.ne.s32.totalorder %s86, %s88
    %p92 = scmp.eq.s32.totalorder %s10, 0
    %p93 = por %p91, %p92
    %p94 = scmp.ne.s32.totalorder %s86, %s88
    %p95 = scmp.eq.s32.totalorder %s15, 1
    %p96 = por %p94, %p95
    %p97 = scmp.ne.s32.totalorder %s88, %s89
    %p98 = scmp.eq.s32.totalorder %s15, 0
    %p99 = por %p97, %p98
    %p100 = scmp.ne.s32.totalorder %s88, %s89
    %p101 = scmp.eq.s32.totalorder %s16, 1
    %p102 = por %p100, %p101
    %p104 = scmp.ne.s32.totalorder %s89, %s103
    %p105 = scmp.eq.s32.totalorder %s16, 0
    %p106 = por %p104, %p105
    %s107 = ssub.s32 %s10, %s17
    %p108 = scmp.eq.s32.totalorder %s107, 0
    %s110 = sadd.s32 %s109, 1
    %s111 = scalar_select %p108, %s109, %s110
    %p114 = pneg %p108
    %p115 = scmp.eq.s32.totalorder %s10, 1
    %p116 = por %p114, %p115
    %p117 = scmp.ne.s32.totalorder %s109, %s112
    %p118 = scmp.eq.s32.totalorder %s10, 0
    %p119 = por %p117, %p118
    %p120 = scmp.ne.s32.totalorder %s109, %s112
    %p121 = scmp.eq.s32.totalorder %s15, 1
    %p122 = por %p120, %p121
    %p123 = scmp.ne.s32.totalorder %s112, %s113
    %p124 = scmp.eq.s32.totalorder %s15, 0
    %p125 = por %p123, %p124
    %p126 = scmp.ne.s32.totalorder %s112, %s113
    %p127 = scmp.eq.s32.totalorder %s16, 1
    %p128 = por %p126, %p127
    %p130 = scmp.ne.s32.totalorder %s113, %s129
    %p131 = scmp.eq.s32.totalorder %s16, 0
    %p132 = por %p130, %p131
    %p133 = scmp.le.s32.totalorder 1, %s10
    %p134 = scmp.lt.s32.totalorder %s10, 3
    %p135 = pnand %p133, %p134
    %p136 = pneg %p135
    // Predicated region
    $region9: #{vae_forward.17} parent=5 // pred_check
      _
    $region10: #{vae_forward.17} parent=5 // pred_check_branch
      %138 = sbr.rel (%p135) target = $region12
    $region11: #{vae_forward.17} parent=5 // pred_region
      %s139 = ssub.s32 %s10, 1
      // Predicated region
      $region13: #{vae_forward.17} parent=11 // pred_check
        %p140 = pneg %p57
      $region14: #{vae_forward.17} parent=11 // pred_check_branch
        %142 = sbr.rel (%p140) target = $region16
      $region15: #{vae_forward.17} parent=11 // pred_region
        _
      $region16: #{vae_forward.17} parent=11 // pred_fallthru
        _
      // Predicated region
      $region17: #{vae_forward.17} parent=11 // pred_check
        %p143 = pneg %p78
      $region18: #{vae_forward.17} parent=11 // pred_check_branch
        %145 = sbr.rel (%p143) target = $region20
      $region19: #{vae_forward.17} parent=11 // pred_region
        _
      $region20: #{vae_forward.17} parent=11 // pred_fallthru
        _
      // Predicated region
      $region21: #{vae_forward.17} parent=11 // pred_check
        %p146 = pneg %p99
      $region22: #{vae_forward.17} parent=11 // pred_check_branch
        %148 = sbr.rel (%p146) target = $region24
      $region23: #{vae_forward.17} parent=11 // pred_region
        _
      $region24: #{vae_forward.17} parent=11 // pred_fallthru
        _
    $region12: #{vae_forward.17} parent=5 // pred_fallthru
      _
    %p149 = scmp.lt.s32.totalorder %s10, 2
    // Predicated region
    $region25: #{vae_forward.17} parent=5 // pred_check
      %p150 = pneg %p149
    $region26: #{vae_forward.17} parent=5 // pred_check_branch
      %152 = sbr.rel (%p150) target = $region28
    $region27: #{vae_forward.17} parent=5 // pred_region
      // Predicated region
      $region29: #{vae_forward.17} parent=27 // pred_check
        %p153 = pneg %p30
      $region30: #{vae_forward.17} parent=27 // pred_check_branch
        %155 = sbr.rel (%p153) target = $region32
      $region31: #{vae_forward.17} parent=27 // pred_region
        %s156 = smul.u32 32, %s10
        %p157 = scmp.lt.s32.totalorder %s156, 63
        %s158 = scalar_select %p157, %s156, 63
        %s159 = smul.addr %s158, 4
        %s160 = scalar_lea.vmem %s0, %s159
        %s161 = smul.u32 32, %s10
      $region32: #{vae_forward.17} parent=27 // pred_fallthru
        _
    $region28: #{vae_forward.17} parent=5 // pred_fallthru
      _
    %p162 = scmp.le.s32.totalorder 1, %s10
    %p163 = scmp.lt.s32.totalorder %s10, 3
    %p164 = pnand %p162, %p163
    %p165 = pneg %p164
    // Predicated region
    $region33: #{vae_forward.17} parent=5 // pred_check
      _
    $region34: #{vae_forward.17} parent=5 // pred_check_branch
      %167 = sbr.rel (%p164) target = $region36
    $region35: #{vae_forward.17} parent=5 // pred_region
      %s168 = ssub.s32 %s10, 1
      %s169 = smul.u32 32, %s15
      %p170 = scmp.lt.s32.totalorder %s169, 63
      %s171 = scalar_select %p170, %s169, 63
      %s172 = smul.addr %s171, 4
      %s173 = scalar_lea.vmem %s0, %s172
      %p174 = pneg %p36
      %p175 = pneg %p33
      %p176 = pneg %p57
      %p177 = pneg %p54
      %p178 = pneg %p78
      %p179 = pneg %p75
      %p180 = pneg %p99
      %p181 = pneg %p96
      %p182 = pneg %p125
      %p183 = pneg %p122
      %s184 = smul.u32 32, %s15
      %p185 = scmp.lt.s32.totalorder %s184, 63
      %s186 = scalar_select %p185, %s184, 63
      %s187 = smul.addr %s186, 8
      %s188 = scalar_lea.vmem %s4, %s187
      %s189 = smul.u32 32, %s15
      %p190 = scmp.lt.s32.totalorder %s189, 63
      %s191 = scalar_select %p190, %s189, 63
      %s192 = smul.addr %s191, 4
      %s193 = scalar_lea.vmem %s0, %s192
      %s194 = smul.u32 32, %s15
      %s195 = smul.u32 32, %s15
      %p196 = scmp.lt.s32.totalorder %s195, 63
      %s197 = scalar_select %p196, %s195, 63
      %s198 = smul.addr %s197, 8
      %s199 = scalar_lea.vmem %s4, %s198
      %s200 = smul.u32 32, %s15
      %v202 = vld [vmem:[%s193] sm:$0xf]
      %v203 = vld [vmem:[%s193 + $0x4] sm:$0xf]
      %v204 = vld [vmem:[%s193 + $0x8] sm:$0xf]
      %v205 = vld [vmem:[%s193 + $0xc] sm:$0xf]
      %v206 = vld [vmem:[%s193 + $0x10] sm:$0xf]
      %v207 = vld [vmem:[%s193 + $0x14] sm:$0xf]
      %v208 = vld [vmem:[%s193 + $0x18] sm:$0xf]
      %v209 = vld [vmem:[%s193 + $0x1c] sm:$0xf]
      %v210 = vld [vmem:[%s193 + $0x20] sm:$0xf]
      %v211 = vld [vmem:[%s193 + $0x24] sm:$0xf]
      %v212 = vld [vmem:[%s193 + $0x28] sm:$0xf]
      %v213 = vld [vmem:[%s193 + $0x2c] sm:$0xf]
      %v214 = vld [vmem:[%s193 + $0x30] sm:$0xf]
      %v215 = vld [vmem:[%s193 + $0x34] sm:$0xf]
      %v216 = vld [vmem:[%s193 + $0x38] sm:$0xf]
      %v217 = vld [vmem:[%s193 + $0x3c] sm:$0xf]
      %v218 = vld [vmem:[%s193 + $0x40] sm:$0xf]
      %v219 = vld [vmem:[%s193 + $0x44] sm:$0xf]
      %v220 = vld [vmem:[%s193 + $0x48] sm:$0xf]
      %v221 = vld [vmem:[%s193 + $0x4c] sm:$0xf]
      %v222 = vld [vmem:[%s193 + $0x50] sm:$0xf]
      %v223 = vld [vmem:[%s193 + $0x54] sm:$0xf]
      %v224 = vld [vmem:[%s193 + $0x58] sm:$0xf]
      %v225 = vld [vmem:[%s193 + $0x5c] sm:$0xf]
      %v226 = vld [vmem:[%s193 + $0x60] sm:$0xf]
      %v227 = vld [vmem:[%s193 + $0x64] sm:$0xf]
      %v228 = vld [vmem:[%s193 + $0x68] sm:$0xf]
      %v229 = vld [vmem:[%s193 + $0x6c] sm:$0xf]
      %v230 = vld [vmem:[%s193 + $0x70] sm:$0xf]
      %v231 = vld [vmem:[%s193 + $0x74] sm:$0xf]
      %v232 = vld [vmem:[%s193 + $0x78] sm:$0xf]
      %v233 = vld [vmem:[%s193 + $0x7c] sm:$0xf]
      %v234 = vld [vmem:[%s1] sm:$0xf]
      %v235 = vld [vmem:[%s1 + $0x4] sm:$0xf]
      %v236 = vld [vmem:[%s1 + $0x8] sm:$0xf]
      %v237 = vld [vmem:[%s1 + $0xc] sm:$0xf]
      %v238 = vld [vmem:[%s1 + $0x10] sm:$0xf]
      %v239 = vld [vmem:[%s1 + $0x14] sm:$0xf]
      %v240 = vld [vmem:[%s1 + $0x18] sm:$0xf]
      %v241 = vld [vmem:[%s1 + $0x1c] sm:$0xf]
      %v242 = vld [vmem:[%s1 + $0x20] sm:$0xf]
      %v243 = vld [vmem:[%s1 + $0x24] sm:$0xf]
      %v244 = vld [vmem:[%s1 + $0x28] sm:$0xf]
      %v245 = vld [vmem:[%s1 + $0x2c] sm:$0xf]
      %v246 = vld [vmem:[%s1 + $0x30] sm:$0xf]
      %v247 = vld [vmem:[%s1 + $0x34] sm:$0xf]
      %v248 = vld [vmem:[%s1 + $0x38] sm:$0xf]
      %v249 = vld [vmem:[%s1 + $0x3c] sm:$0xf]
      %v282 = vunpack.c.l.b16 %v202
      %v283 = vunpack.c.l.b16 %v203
      %v284 = vunpack.c.l.b16 %v204
      %v285 = vunpack.c.l.b16 %v205
      %v286 = vunpack.c.l.b16 %v206
      %v287 = vunpack.c.l.b16 %v207
      %v288 = vunpack.c.l.b16 %v208
      %v289 = vunpack.c.l.b16 %v209
      %v290 = vunpack.c.l.b16 %v210
      %v291 = vunpack.c.l.b16 %v211
      %v292 = vunpack.c.l.b16 %v212
      %v293 = vunpack.c.l.b16 %v213
      %v294 = vunpack.c.l.b16 %v214
      %v295 = vunpack.c.l.b16 %v215
      %v296 = vunpack.c.l.b16 %v216
      %v297 = vunpack.c.l.b16 %v217
      %v298 = vunpack.c.l.b16 %v218
      %v299 = vunpack.c.l.b16 %v219
      %v300 = vunpack.c.l.b16 %v220
      %v301 = vunpack.c.l.b16 %v221
      %v302 = vunpack.c.l.b16 %v222
      %v303 = vunpack.c.l.b16 %v223
      %v304 = vunpack.c.l.b16 %v224
      %v305 = vunpack.c.l.b16 %v225
      %v306 = vunpack.c.l.b16 %v226
      %v307 = vunpack.c.l.b16 %v227
      %v308 = vunpack.c.l.b16 %v228
      %v309 = vunpack.c.l.b16 %v229
      %v310 = vunpack.c.l.b16 %v230
      %v311 = vunpack.c.l.b16 %v231
      %v312 = vunpack.c.l.b16 %v232
      %v313 = vunpack.c.l.b16 %v233
      %v314 = vpack.c.b16 %v283, %v282
      %v315 = vpack.c.b16 %v285, %v284
      %v316 = vpack.c.b16 %v287, %v286
      %v317 = vpack.c.b16 %v289, %v288
      %v318 = vpack.c.b16 %v291, %v290
      %v319 = vpack.c.b16 %v293, %v292
      %v320 = vpack.c.b16 %v295, %v294
      %v321 = vpack.c.b16 %v297, %v296
      %v322 = vpack.c.b16 %v299, %v298
      %v323 = vpack.c.b16 %v301, %v300
      %v324 = vpack.c.b16 %v303, %v302
      %v325 = vpack.c.b16 %v305, %v304
      %v326 = vpack.c.b16 %v307, %v306
      %v327 = vpack.c.b16 %v309, %v308
      %v328 = vpack.c.b16 %v311, %v310
      %v329 = vpack.c.b16 %v313, %v312
      %v362 = vunpack.c.l.b16 %v234
      %v363 = vunpack.c.l.b16 %v235
      %v364 = vunpack.c.l.b16 %v236
      %v365 = vunpack.c.l.b16 %v237
      %v366 = vunpack.c.l.b16 %v238
      %v367 = vunpack.c.l.b16 %v239
      %v368 = vunpack.c.l.b16 %v240
      %v369 = vunpack.c.l.b16 %v241
      %v370 = vunpack.c.l.b16 %v242
      %v371 = vunpack.c.l.b16 %v243
      %v372 = vunpack.c.l.b16 %v244
      %v373 = vunpack.c.l.b16 %v245
      %v374 = vunpack.c.l.b16 %v246
      %v375 = vunpack.c.l.b16 %v247
      %v376 = vunpack.c.l.b16 %v248
      %v377 = vunpack.c.l.b16 %v249
      %v378 = vpack.c.b16 %v363, %v362
      %v379 = vpack.c.b16 %v365, %v364
      %v380 = vpack.c.b16 %v367, %v366
      %v381 = vpack.c.b16 %v369, %v368
      %v382 = vpack.c.b16 %v371, %v370
      %v383 = vpack.c.b16 %v373, %v372
      %v384 = vpack.c.b16 %v375, %v374
      %v385 = vpack.c.b16 %v377, %v376
      %394 = vmatprep.subr.bf16.mxu0 0
      %395 = vmatpush1.bf16.msra.mxu0 %v378
      %396 = vmatprep.subr.bf16.mxu0 0
      %397 = vmatpush1.bf16.msra.mxu0 %v379
      %398 = vmatprep.subr.bf16.mxu0 0
      %399 = vmatpush1.bf16.msra.mxu0 %v380
      %400 = vmatprep.subr.bf16.mxu0 0
      %401 = vmatpush1.bf16.msra.mxu0 %v381
      %402 = vmatprep.subr.bf16.mxu0 0
      %403 = vmatpush1.bf16.msra.mxu0 %v382
      %404 = vmatprep.subr.bf16.mxu0 0
      %405 = vmatpush1.bf16.msra.mxu0 %v383
      %406 = vmatprep.subr.bf16.mxu0 0
      %407 = vmatpush1.bf16.msra.mxu0 %v384
      %408 = vmatprep.subr.bf16.mxu0 0
      %409 = vmatpush1.bf16.msra.mxu0 %v385
      %410 = vmatprep.subr.bf16.mxu0 0
      %411 = vmatpush1.bf16.msra.mxu0 0
      %412 = vmatprep.subr.bf16.mxu0 0
      %413 = vmatpush1.bf16.msra.mxu0 0
      %414 = vmatprep.subr.bf16.mxu0 0
      %415 = vmatpush1.bf16.msra.mxu0 0
      %416 = vmatprep.subr.bf16.mxu0 0
      %417 = vmatpush1.bf16.msra.mxu0 0
      %418 = vmatprep.subr.bf16.mxu0 0
      %419 = vmatpush1.bf16.msra.mxu0 0
      %420 = vmatprep.subr.bf16.mxu0 0
      %421 = vmatpush1.bf16.msra.mxu0 0
      %422 = vmatprep.subr.bf16.mxu0 0
      %423 = vmatpush1.bf16.msra.mxu0 0
      %424 = vmatprep.subr.bf16.mxu0 0
      %425 = vmatpush1.bf16.msra.mxu0 0
      %426 = vmatprep.mubr.bf16.mxu0 0
      %427 = vmatmul.mubr.bf16.gmra.mrb[0].mxu0 %v314
      %v428 = vpop.f32.mrb[0].mxu0
      %v429 = vadd.f32 0.0, %v428
      %v430 = vpop.f32.mrb[0].mxu0
      %v431 = vpop.f32.mrb[0].mxu0
      %v432 = vadd.f32 0.0, %v431
      %v433 = vpop.f32.mrb[0].mxu0
      %434 = vmatprep.mubr.bf16.mxu0 0
      %435 = vmatmul.mubr.bf16.gmra.mrb[0].mxu0 %v315
      %v436 = vpop.f32.mrb[0].mxu0
      %v437 = vadd.f32 0.0, %v436
      %v438 = vpop.f32.mrb[0].mxu0
      %v439 = vpop.f32.mrb[0].mxu0
      %v440 = vadd.f32 0.0, %v439
      %v441 = vpop.f32.mrb[0].mxu0
      %442 = vmatprep.mubr.bf16.mxu0 0
      %443 = vmatmul.mubr.bf16.gmra.mrb[0].mxu0 %v316
      %v444 = vpop.f32.mrb[0].mxu0
      %v445 = vadd.f32 0.0, %v444
      %v446 = vpop.f32.mrb[0].mxu0
      %v447 = vpop.f32.mrb[0].mxu0
      %v448 = vadd.f32 0.0, %v447
      %v449 = vpop.f32.mrb[0].mxu0
      %450 = vmatprep.mubr.bf16.mxu0 0
      %451 = vmatmul.mubr.bf16.gmra.mrb[0].mxu0 %v317
      %v452 = vpop.f32.mrb[0].mxu0
      %v453 = vadd.f32 0.0, %v452
      %v454 = vpop.f32.mrb[0].mxu0
      %v455 = vpop.f32.mrb[0].mxu0
      %v456 = vadd.f32 0.0, %v455
      %v457 = vpop.f32.mrb[0].mxu0
      %458 = vmatprep.mubr.bf16.mxu0 0
      %459 = vmatmul.mubr.bf16.gmra.mrb[0].mxu0 %v318
      %v460 = vpop.f32.mrb[0].mxu0
      %v461 = vadd.f32 0.0, %v460
      %v462 = vpop.f32.mrb[0].mxu0
      %v463 = vpop.f32.mrb[0].mxu0
      %v464 = vadd.f32 0.0, %v463
      %v465 = vpop.f32.mrb[0].mxu0
      %466 = vmatprep.mubr.bf16.mxu0 0
      %467 = vmatmul.mubr.bf16.gmra.mrb[0].mxu0 %v319
      %v468 = vpop.f32.mrb[0].mxu0
      %v469 = vadd.f32 0.0, %v468
      %v470 = vpop.f32.mrb[0].mxu0
      %v471 = vpop.f32.mrb[0].mxu0
      %v472 = vadd.f32 0.0, %v471
      %v473 = vpop.f32.mrb[0].mxu0
      %474 = vmatprep.mubr.bf16.mxu0 0
      %475 = vmatmul.mubr.bf16.gmra.mrb[0].mxu0 %v320
      %v476 = vpop.f32.mrb[0].mxu0
      %v477 = vadd.f32 0.0, %v476
      %v478 = vpop.f32.mrb[0].mxu0
      %v479 = vpop.f32.mrb[0].mxu0
      %v480 = vadd.f32 0.0, %v479
      %v481 = vpop.f32.mrb[0].mxu0
      %482 = vmatprep.mubr.bf16.mxu0 0
      %483 = vmatmul.mubr.bf16.gmra.mrb[0].mxu0 %v321
      %v484 = vpop.f32.mrb[0].mxu0
      %v485 = vadd.f32 0.0, %v484
      %v486 = vpop.f32.mrb[0].mxu0
      %v487 = vpop.f32.mrb[0].mxu0
      %v488 = vadd.f32 0.0, %v487
      %v489 = vpop.f32.mrb[0].mxu0
      %490 = vmatprep.mubr.bf16.mxu0 0
      %491 = vmatmul.mubr.bf16.gmra.mrb[0].mxu0 %v322
      %v492 = vpop.f32.mrb[0].mxu0
      %v493 = vadd.f32 0.0, %v492
      %v494 = vpop.f32.mrb[0].mxu0
      %v495 = vpop.f32.mrb[0].mxu0
      %v496 = vadd.f32 0.0, %v495
      %v497 = vpop.f32.mrb[0].mxu0
      %498 = vmatprep.mubr.bf16.mxu0 0
      %499 = vmatmul.mubr.bf16.gmra.mrb[0].mxu0 %v323
      %v500 = vpop.f32.mrb[0].mxu0
      %v501 = vadd.f32 0.0, %v500
      %v502 = vpop.f32.mrb[0].mxu0
      %v503 = vpop.f32.mrb[0].mxu0
      %v504 = vadd.f32 0.0, %v503
      %v505 = vpop.f32.mrb[0].mxu0
      %506 = vmatprep.mubr.bf16.mxu0 0
      %507 = vmatmul.mubr.bf16.gmra.mrb[0].mxu0 %v324
      %v508 = vpop.f32.mrb[0].mxu0
      %v509 = vadd.f32 0.0, %v508
      %v510 = vpop.f32.mrb[0].mxu0
      %v511 = vpop.f32.mrb[0].mxu0
      %v512 = vadd.f32 0.0, %v511
      %v513 = vpop.f32.mrb[0].mxu0
      %514 = vmatprep.mubr.bf16.mxu0 0
      %515 = vmatmul.mubr.bf16.gmra.mrb[0].mxu0 %v325
      %v516 = vpop.f32.mrb[0].mxu0
      %v517 = vadd.f32 0.0, %v516
      %v518 = vpop.f32.mrb[0].mxu0
      %v519 = vpop.f32.mrb[0].mxu0
      %v520 = vadd.f32 0.0, %v519
      %v521 = vpop.f32.mrb[0].mxu0
      %522 = vmatprep.mubr.bf16.mxu0 0
      %523 = vmatmul.mubr.bf16.gmra.mrb[0].mxu0 %v326
      %v524 = vpop.f32.mrb[0].mxu0
      %v525 = vadd.f32 0.0, %v524
      %v526 = vpop.f32.mrb[0].mxu0
      %v527 = vpop.f32.mrb[0].mxu0
      %v528 = vadd.f32 0.0, %v527
      %v529 = vpop.f32.mrb[0].mxu0
      %530 = vmatprep.mubr.bf16.mxu0 0
      %531 = vmatmul.mubr.bf16.gmra.mrb[0].mxu0 %v327
      %v532 = vpop.f32.mrb[0].mxu0
      %v533 = vadd.f32 0.0, %v532
      %v534 = vpop.f32.mrb[0].mxu0
      %v535 = vpop.f32.mrb[0].mxu0
      %v536 = vadd.f32 0.0, %v535
      %v537 = vpop.f32.mrb[0].mxu0
      %538 = vmatprep.mubr.bf16.mxu0 0
      %539 = vmatmul.mubr.bf16.gmra.mrb[0].mxu0 %v328
      %v540 = vpop.f32.mrb[0].mxu0
      %v541 = vadd.f32 0.0, %v540
      %v542 = vpop.f32.mrb[0].mxu0
      %v543 = vpop.f32.mrb[0].mxu0
      %v544 = vadd.f32 0.0, %v543
      %v545 = vpop.f32.mrb[0].mxu0
      %546 = vmatprep.mubr.bf16.mxu0 0
      %547 = vmatmul.mubr.bf16.gmra.mrb[0].mxu0 %v329
      %v548 = vpop.f32.mrb[0].mxu0
      %v549 = vadd.f32 0.0, %v548
      %v550 = vpop.f32.mrb[0].mxu0
      %v551 = vpop.f32.mrb[0].mxu0
      %v552 = vadd.f32 0.0, %v551
      %v553 = vpop.f32.mrb[0].mxu0
      %554 = vdwg.mxu0
      %v555 = vld [vmem:[%s2] sm:$0x1]
      %v557 = vlaneseq
      %v558 = vshrl.u32 %v557, 7
      %v559 = vsub.s32 0, %v558
      %v560 = vrot.slane %v555, %v559
      %v562 = vmul.f32 %v429, %v560
      %v563 = vmul.f32 %v432, %v560
      %v564 = vmul.f32 %v437, %v560
      %v565 = vmul.f32 %v440, %v560
      %v566 = vmul.f32 %v445, %v560
      %v567 = vmul.f32 %v448, %v560
      %v568 = vmul.f32 %v453, %v560
      %v569 = vmul.f32 %v456, %v560
      %v570 = vmul.f32 %v461, %v560
      %v571 = vmul.f32 %v464, %v560
      %v572 = vmul.f32 %v469, %v560
      %v573 = vmul.f32 %v472, %v560
      %v574 = vmul.f32 %v477, %v560
      %v575 = vmul.f32 %v480, %v560
      %v576 = vmul.f32 %v485, %v560
      %v577 = vmul.f32 %v488, %v560
      %v578 = vmul.f32 %v493, %v560
      %v579 = vmul.f32 %v496, %v560
      %v580 = vmul.f32 %v501, %v560
      %v581 = vmul.f32 %v504, %v560
      %v582 = vmul.f32 %v509, %v560
      %v583 = vmul.f32 %v512, %v560
      %v584 = vmul.f32 %v517, %v560
      %v585 = vmul.f32 %v520, %v560
      %v586 = vmul.f32 %v525, %v560
      %v587 = vmul.f32 %v528, %v560
      %v588 = vmul.f32 %v533, %v560
      %v589 = vmul.f32 %v536, %v560
      %v590 = vmul.f32 %v541, %v560
      %v591 = vmul.f32 %v544, %v560
      %v592 = vmul.f32 %v549, %v560
      %v593 = vmul.f32 %v552, %v560
      %v594 = vld [vmem:[%s3] sm:$0x1]
      %v596 = vlaneseq
      %v597 = vshrl.u32 %v596, 7
      %v598 = vsub.s32 0, %v597
      %v599 = vrot.slane %v594, %v598
      %v601 = vadd.f32 %v562, %v599
      %v602 = vadd.f32 %v563, %v599
      %v603 = vadd.f32 %v564, %v599
      %v604 = vadd.f32 %v565, %v599
      %v605 = vadd.f32 %v566, %v599
      %v606 = vadd.f32 %v567, %v599
      %v607 = vadd.f32 %v568, %v599
      %v608 = vadd.f32 %v569, %v599
      %v609 = vadd.f32 %v570, %v599
      %v610 = vadd.f32 %v571, %v599
      %v611 = vadd.f32 %v572, %v599
      %v612 = vadd.f32 %v573, %v599
      %v613 = vadd.f32 %v574, %v599
      %v614 = vadd.f32 %v575, %v599
      %v615 = vadd.f32 %v576, %v599
      %v616 = vadd.f32 %v577, %v599
      %v617 = vadd.f32 %v578, %v599
      %v618 = vadd.f32 %v579, %v599
      %v619 = vadd.f32 %v580, %v599
      %v620 = vadd.f32 %v581, %v599
      %v621 = vadd.f32 %v582, %v599
      %v622 = vadd.f32 %v583, %v599
      %v623 = vadd.f32 %v584, %v599
      %v624 = vadd.f32 %v585, %v599
      %v625 = vadd.f32 %v586, %v599
      %v626 = vadd.f32 %v587, %v599
      %v627 = vadd.f32 %v588, %v599
      %v628 = vadd.f32 %v589, %v599
      %v629 = vadd.f32 %v590, %v599
      %v630 = vadd.f32 %v591, %v599
      %v631 = vadd.f32 %v592, %v599
      %v632 = vadd.f32 %v593, %v599
      %v633 = vand.u32 2147483647, %v601
      %v634 = vand.u32 2147483647, %v602
      %v635 = vand.u32 2147483647, %v603
      %v636 = vand.u32 2147483647, %v604
      %v637 = vand.u32 2147483647, %v605
      %v638 = vand.u32 2147483647, %v606
      %v639 = vand.u32 2147483647, %v607
      %v640 = vand.u32 2147483647, %v608
      %v641 = vand.u32 2147483647, %v609
      %v642 = vand.u32 2147483647, %v610
      %v643 = vand.u32 2147483647, %v611
      %v644 = vand.u32 2147483647, %v612
      %v645 = vand.u32 2147483647, %v613
      %v646 = vand.u32 2147483647, %v614
      %v647 = vand.u32 2147483647, %v615
      %v648 = vand.u32 2147483647, %v616
      %v649 = vand.u32 2147483647, %v617
      %v650 = vand.u32 2147483647, %v618
      %v651 = vand.u32 2147483647, %v619
      %v652 = vand.u32 2147483647, %v620
      %v653 = vand.u32 2147483647, %v621
      %v654 = vand.u32 2147483647, %v622
      %v655 = vand.u32 2147483647, %v623
      %v656 = vand.u32 2147483647, %v624
      %v657 = vand.u32 2147483647, %v625
      %v658 = vand.u32 2147483647, %v626
      %v659 = vand.u32 2147483647, %v627
      %v660 = vand.u32 2147483647, %v628
      %v661 = vand.u32 2147483647, %v629
      %v662 = vand.u32 2147483647, %v630
      %v663 = vand.u32 2147483647, %v631
      %v664 = vand.u32 2147483647, %v632
      %v665 = vsub.f32 0.0, %v633
      %v666 = vsub.f32 0.0, %v634
      %v667 = vsub.f32 0.0, %v635
      %v668 = vsub.f32 0.0, %v636
      %v669 = vsub.f32 0.0, %v637
      %v670 = vsub.f32 0.0, %v638
      %v671 = vsub.f32 0.0, %v639
      %v672 = vsub.f32 0.0, %v640
      %v673 = vsub.f32 0.0, %v641
      %v674 = vsub.f32 0.0, %v642
      %v675 = vsub.f32 0.0, %v643
      %v676 = vsub.f32 0.0, %v644
      %v677 = vsub.f32 0.0, %v645
      %v678 = vsub.f32 0.0, %v646
      %v679 = vsub.f32 0.0, %v647
      %v680 = vsub.f32 0.0, %v648
      %v681 = vsub.f32 0.0, %v649
      %v682 = vsub.f32 0.0, %v650
      %v683 = vsub.f32 0.0, %v651
      %v684 = vsub.f32 0.0, %v652
      %v685 = vsub.f32 0.0, %v653
      %v686 = vsub.f32 0.0, %v654
      %v687 = vsub.f32 0.0, %v655
      %v688 = vsub.f32 0.0, %v656
      %v689 = vsub.f32 0.0, %v657
      %v690 = vsub.f32 0.0, %v658
      %v691 = vsub.f32 0.0, %v659
      %v692 = vsub.f32 0.0, %v660
      %v693 = vsub.f32 0.0, %v661
      %v694 = vsub.f32 0.0, %v662
      %v695 = vsub.f32 0.0, %v663
      %v696 = vsub.f32 0.0, %v664
      %v697 = vmul.f32 %v665, 1.442695
      %v698 = vpow.pop %v697
      %v699 = vmul.f32 %v666, 1.442695
      %v700 = vpow.pop %v699
      %v701 = vmul.f32 %v667, 1.442695
      %v702 = vpow.pop %v701
      %v703 = vmul.f32 %v668, 1.442695
      %v704 = vpow.pop %v703
      %v705 = vmul.f32 %v669, 1.442695
      %v706 = vpow.pop %v705
      %v707 = vmul.f32 %v670, 1.442695
      %v708 = vpow.pop %v707
      %v709 = vmul.f32 %v671, 1.442695
      %v710 = vpow.pop %v709
      %v711 = vmul.f32 %v672, 1.442695
      %v712 = vpow.pop %v711
      %v713 = vmul.f32 %v673, 1.442695
      %v714 = vpow.pop %v713
      %v715 = vmul.f32 %v674, 1.442695
      %v716 = vpow.pop %v715
      %v717 = vmul.f32 %v675, 1.442695
      %v718 = vpow.pop %v717
      %v719 = vmul.f32 %v676, 1.442695
      %v720 = vpow.pop %v719
      %v721 = vmul.f32 %v677, 1.442695
      %v722 = vpow.pop %v721
      %v723 = vmul.f32 %v678, 1.442695
      %v724 = vpow.pop %v723
      %v725 = vmul.f32 %v679, 1.442695
      %v726 = vpow.pop %v725
      %v727 = vmul.f32 %v680, 1.442695
      %v728 = vpow.pop %v727
      %v729 = vmul.f32 %v681, 1.442695
      %v730 = vpow.pop %v729
      %v731 = vmul.f32 %v682, 1.442695
      %v732 = vpow.pop %v731
      %v733 = vmul.f32 %v683, 1.442695
      %v734 = vpow.pop %v733
      %v735 = vmul.f32 %v684, 1.442695
      %v736 = vpow.pop %v735
      %v737 = vmul.f32 %v685, 1.442695
      %v738 = vpow.pop %v737
      %v739 = vmul.f32 %v686, 1.442695
      %v740 = vpow.pop %v739
      %v741 = vmul.f32 %v687, 1.442695
      %v742 = vpow.pop %v741
      %v743 = vmul.f32 %v688, 1.442695
      %v744 = vpow.pop %v743
      %v745 = vmul.f32 %v689, 1.442695
      %v746 = vpow.pop %v745
      %v747 = vmul.f32 %v690, 1.442695
      %v748 = vpow.pop %v747
      %v749 = vmul.f32 %v691, 1.442695
      %v750 = vpow.pop %v749
      %v751 = vmul.f32 %v692, 1.442695
      %v752 = vpow.pop %v751
      %v753 = vmul.f32 %v693, 1.442695
      %v754 = vpow.pop %v753
      %v755 = vmul.f32 %v694, 1.442695
      %v756 = vpow.pop %v755
      %v757 = vmul.f32 %v695, 1.442695
      %v758 = vpow.pop %v757
      %v759 = vmul.f32 %v696, 1.442695
      %v760 = vpow.pop %v759
      %vm761 = vcmp.ge.f32.partialorder %v601, 0.0
      %vm762 = vcmp.ge.f32.partialorder %v602, 0.0
      %vm763 = vcmp.ge.f32.partialorder %v603, 0.0
      %vm764 = vcmp.ge.f32.partialorder %v604, 0.0
      %vm765 = vcmp.ge.f32.partialorder %v605, 0.0
      %vm766 = vcmp.ge.f32.partialorder %v606, 0.0
      %vm767 = vcmp.ge.f32.partialorder %v607, 0.0
      %vm768 = vcmp.ge.f32.partialorder %v608, 0.0
      %vm769 = vcmp.ge.f32.partialorder %v609, 0.0
      %vm770 = vcmp.ge.f32.partialorder %v610, 0.0
      %vm771 = vcmp.ge.f32.partialorder %v611, 0.0
      %vm772 = vcmp.ge.f32.partialorder %v612, 0.0
      %vm773 = vcmp.ge.f32.partialorder %v613, 0.0
      %vm774 = vcmp.ge.f32.partialorder %v614, 0.0
      %vm775 = vcmp.ge.f32.partialorder %v615, 0.0
      %vm776 = vcmp.ge.f32.partialorder %v616, 0.0
      %vm777 = vcmp.ge.f32.partialorder %v617, 0.0
      %vm778 = vcmp.ge.f32.partialorder %v618, 0.0
      %vm779 = vcmp.ge.f32.partialorder %v619, 0.0
      %vm780 = vcmp.ge.f32.partialorder %v620, 0.0
      %vm781 = vcmp.ge.f32.partialorder %v621, 0.0
      %vm782 = vcmp.ge.f32.partialorder %v622, 0.0
      %vm783 = vcmp.ge.f32.partialorder %v623, 0.0
      %vm784 = vcmp.ge.f32.partialorder %v624, 0.0
      %vm785 = vcmp.ge.f32.partialorder %v625, 0.0
      %vm786 = vcmp.ge.f32.partialorder %v626, 0.0
      %vm787 = vcmp.ge.f32.partialorder %v627, 0.0
      %vm788 = vcmp.ge.f32.partialorder %v628, 0.0
      %vm789 = vcmp.ge.f32.partialorder %v629, 0.0
      %vm790 = vcmp.ge.f32.partialorder %v630, 0.0
      %vm791 = vcmp.ge.f32.partialorder %v631, 0.0
      %vm792 = vcmp.ge.f32.partialorder %v632, 0.0
      %v793 = vsel %vm761, 1.0, %v698
      %v794 = vsel %vm762, 1.0, %v700
      %v795 = vsel %vm763, 1.0, %v702
      %v796 = vsel %vm764, 1.0, %v704
      %v797 = vsel %vm765, 1.0, %v706
      %v798 = vsel %vm766, 1.0, %v708
      %v799 = vsel %vm767, 1.0, %v710
      %v800 = vsel %vm768, 1.0, %v712
      %v801 = vsel %vm769, 1.0, %v714
      %v802 = vsel %vm770, 1.0, %v716
      %v803 = vsel %vm771, 1.0, %v718
      %v804 = vsel %vm772, 1.0, %v720
      %v805 = vsel %vm773, 1.0, %v722
      %v806 = vsel %vm774, 1.0, %v724
      %v807 = vsel %vm775, 1.0, %v726
      %v808 = vsel %vm776, 1.0, %v728
      %v809 = vsel %vm777, 1.0, %v730
      %v810 = vsel %vm778, 1.0, %v732
      %v811 = vsel %vm779, 1.0, %v734
      %v812 = vsel %vm780, 1.0, %v736
      %v813 = vsel %vm781, 1.0, %v738
      %v814 = vsel %vm782, 1.0, %v740
      %v815 = vsel %vm783, 1.0, %v742
      %v816 = vsel %vm784, 1.0, %v744
      %v817 = vsel %vm785, 1.0, %v746
      %v818 = vsel %vm786, 1.0, %v748
      %v819 = vsel %vm787, 1.0, %v750
      %v820 = vsel %vm788, 1.0, %v752
      %v821 = vsel %vm789, 1.0, %v754
      %v822 = vsel %vm790, 1.0, %v756
      %v823 = vsel %vm791, 1.0, %v758
      %v824 = vsel %vm792, 1.0, %v760
      %v825 = vadd.f32 %v698, 1.0
      %v826 = vadd.f32 %v700, 1.0
      %v827 = vadd.f32 %v702, 1.0
      %v828 = vadd.f32 %v704, 1.0
      %v829 = vadd.f32 %v706, 1.0
      %v830 = vadd.f32 %v708, 1.0
      %v831 = vadd.f32 %v710, 1.0
      %v832 = vadd.f32 %v712, 1.0
      %v833 = vadd.f32 %v714, 1.0
      %v834 = vadd.f32 %v716, 1.0
      %v835 = vadd.f32 %v718, 1.0
      %v836 = vadd.f32 %v720, 1.0
      %v837 = vadd.f32 %v722, 1.0
      %v838 = vadd.f32 %v724, 1.0
      %v839 = vadd.f32 %v726, 1.0
      %v840 = vadd.f32 %v728, 1.0
      %v841 = vadd.f32 %v730, 1.0
      %v842 = vadd.f32 %v732, 1.0
      %v843 = vadd.f32 %v734, 1.0
      %v844 = vadd.f32 %v736, 1.0
      %v845 = vadd.f32 %v738, 1.0
      %v846 = vadd.f32 %v740, 1.0
      %v847 = vadd.f32 %v742, 1.0
      %v848 = vadd.f32 %v744, 1.0
      %v849 = vadd.f32 %v746, 1.0
      %v850 = vadd.f32 %v748, 1.0
      %v851 = vadd.f32 %v750, 1.0
      %v852 = vadd.f32 %v752, 1.0
      %v853 = vadd.f32 %v754, 1.0
      %v854 = vadd.f32 %v756, 1.0
      %v855 = vadd.f32 %v758, 1.0
      %v856 = vadd.f32 %v760, 1.0
      %v857 = vrcp.pop %v825
      %v858 = vmul.f32 %v793, %v857
      %v859 = vrcp.pop %v826
      %v860 = vmul.f32 %v794, %v859
      %v861 = vrcp.pop %v827
      %v862 = vmul.f32 %v795, %v861
      %v863 = vrcp.pop %v828
      %v864 = vmul.f32 %v796, %v863
      %v865 = vrcp.pop %v829
      %v866 = vmul.f32 %v797, %v865
      %v867 = vrcp.pop %v830
      %v868 = vmul.f32 %v798, %v867
      %v869 = vrcp.pop %v831
      %v870 = vmul.f32 %v799, %v869
      %v871 = vrcp.pop %v832
      %v872 = vmul.f32 %v800, %v871
      %v873 = vrcp.pop %v833
      %v874 = vmul.f32 %v801, %v873
      %v875 = vrcp.pop %v834
      %v876 = vmul.f32 %v802, %v875
      %v877 = vrcp.pop %v835
      %v878 = vmul.f32 %v803, %v877
      %v879 = vrcp.pop %v836
      %v880 = vmul.f32 %v804, %v879
      %v881 = vrcp.pop %v837
      %v882 = vmul.f32 %v805, %v881
      %v883 = vrcp.pop %v838
      %v884 = vmul.f32 %v806, %v883
      %v885 = vrcp.pop %v839
      %v886 = vmul.f32 %v807, %v885
      %v887 = vrcp.pop %v840
      %v888 = vmul.f32 %v808, %v887
      %v889 = vrcp.pop %v841
      %v890 = vmul.f32 %v809, %v889
      %v891 = vrcp.pop %v842
      %v892 = vmul.f32 %v810, %v891
      %v893 = vrcp.pop %v843
      %v894 = vmul.f32 %v811, %v893
      %v895 = vrcp.pop %v844
      %v896 = vmul.f32 %v812, %v895
      %v897 = vrcp.pop %v845
      %v898 = vmul.f32 %v813, %v897
      %v899 = vrcp.pop %v846
      %v900 = vmul.f32 %v814, %v899
      %v901 = vrcp.pop %v847
      %v902 = vmul.f32 %v815, %v901
      %v903 = vrcp.pop %v848
      %v904 = vmul.f32 %v816, %v903
      %v905 = vrcp.pop %v849
      %v906 = vmul.f32 %v817, %v905
      %v907 = vrcp.pop %v850
      %v908 = vmul.f32 %v818, %v907
      %v909 = vrcp.pop %v851
      %v910 = vmul.f32 %v819, %v909
      %v911 = vrcp.pop %v852
      %v912 = vmul.f32 %v820, %v911
      %v913 = vrcp.pop %v853
      %v914 = vmul.f32 %v821, %v913
      %v915 = vrcp.pop %v854
      %v916 = vmul.f32 %v822, %v915
      %v917 = vrcp.pop %v855
      %v918 = vmul.f32 %v823, %v917
      %v919 = vrcp.pop %v856
      %v920 = vmul.f32 %v824, %v919
      %vm921 = vcmask 97280
      %922 = vst.msk [vmem:[%s199] sm:$0xff] %vm921, %v858
      %923 = vst.msk [vmem:[%s199 + $0x8] sm:$0xff] %vm921, %v860
      %924 = vst.msk [vmem:[%s199 + $0x10] sm:$0xff] %vm921, %v862
      %925 = vst.msk [vmem:[%s199 + $0x18] sm:$0xff] %vm921, %v864
      %926 = vst.msk [vmem:[%s199 + $0x20] sm:$0xff] %vm921, %v866
      %927 = vst.msk [vmem:[%s199 + $0x28] sm:$0xff] %vm921, %v868
      %928 = vst.msk [vmem:[%s199 + $0x30] sm:$0xff] %vm921, %v870
      %929 = vst.msk [vmem:[%s199 + $0x38] sm:$0xff] %vm921, %v872
      %930 = vst.msk [vmem:[%s199 + $0x40] sm:$0xff] %vm921, %v874
      %931 = vst.msk [vmem:[%s199 + $0x48] sm:$0xff] %vm921, %v876
      %932 = vst.msk [vmem:[%s199 + $0x50] sm:$0xff] %vm921, %v878
      %933 = vst.msk [vmem:[%s199 + $0x58] sm:$0xff] %vm921, %v880
      %934 = vst.msk [vmem:[%s199 + $0x60] sm:$0xff] %vm921, %v882
      %935 = vst.msk [vmem:[%s199 + $0x68] sm:$0xff] %vm921, %v884
      %936 = vst.msk [vmem:[%s199 + $0x70] sm:$0xff] %vm921, %v886
      %937 = vst.msk [vmem:[%s199 + $0x78] sm:$0xff] %vm921, %v888
      %938 = vst.msk [vmem:[%s199 + $0x80] sm:$0xff] %vm921, %v890
      %939 = vst.msk [vmem:[%s199 + $0x88] sm:$0xff] %vm921, %v892
      %940 = vst.msk [vmem:[%s199 + $0x90] sm:$0xff] %vm921, %v894
      %941 = vst.msk [vmem:[%s199 + $0x98] sm:$0xff] %vm921, %v896
      %942 = vst.msk [vmem:[%s199 + $0xa0] sm:$0xff] %vm921, %v898
      %943 = vst.msk [vmem:[%s199 + $0xa8] sm:$0xff] %vm921, %v900
      %944 = vst.msk [vmem:[%s199 + $0xb0] sm:$0xff] %vm921, %v902
      %945 = vst.msk [vmem:[%s199 + $0xb8] sm:$0xff] %vm921, %v904
      %946 = vst.msk [vmem:[%s199 + $0xc0] sm:$0xff] %vm921, %v906
      %947 = vst.msk [vmem:[%s199 + $0xc8] sm:$0xff] %vm921, %v908
      %948 = vst.msk [vmem:[%s199 + $0xd0] sm:$0xff] %vm921, %v910
      %949 = vst.msk [vmem:[%s199 + $0xd8] sm:$0xff] %vm921, %v912
      %950 = vst.msk [vmem:[%s199 + $0xe0] sm:$0xff] %vm921, %v914
      %951 = vst.msk [vmem:[%s199 + $0xe8] sm:$0xff] %vm921, %v916
      %952 = vst.msk [vmem:[%s199 + $0xf0] sm:$0xff] %vm921, %v918
      %953 = vst.msk [vmem:[%s199 + $0xf8] sm:$0xff] %vm921, %v920
      %s954 = smul.u32 32, %s15
      %p955 = scmp.lt.s32.totalorder %s954, 63
      %s956 = scalar_select %p955, %s954, 63
      %s957 = smul.addr %s956, 8
      %s958 = scalar_lea.vmem %s4, %s957
      // Predicated region
      $region37: #{vae_forward.17} parent=35 // pred_check
        %p959 = pneg %p122
      $region38: #{vae_forward.17} parent=35 // pred_check_branch
        %961 = sbr.rel (%p959) target = $region40
      $region39: #{vae_forward.17} parent=35 // pred_region
        %s962 = smul.u32 32, %s15
      $region40: #{vae_forward.17} parent=35 // pred_fallthru
        _
    $region36: #{vae_forward.17} parent=5 // pred_fallthru
      _
    %p963 = scmp.le.s32.totalorder 2, %s10
    // Predicated region
    $region41: #{vae_forward.17} parent=5 // pred_check
      %p964 = pneg %p963
    $region42: #{vae_forward.17} parent=5 // pred_check_branch
      %966 = sbr.rel (%p964) target = $region44
    $region43: #{vae_forward.17} parent=5 // pred_region
      %s967 = ssub.s32 %s10, 2
      // Predicated region
      $region45: #{vae_forward.17} parent=43 // pred_check
        %p968 = pneg %p128
      $region46: #{vae_forward.17} parent=43 // pred_check_branch
        %970 = sbr.rel (%p968) target = $region48
      $region47: #{vae_forward.17} parent=43 // pred_region
        %s971 = smul.u32 32, %s16
        %p972 = scmp.lt.s32.totalorder %s971, 63
        %s973 = scalar_select %p972, %s971, 63
        %s974 = smul.addr %s973, 8
        %s975 = scalar_lea.vmem %s4, %s974
      $region48: #{vae_forward.17} parent=43 // pred_fallthru
        _
    $region44: #{vae_forward.17} parent=5 // pred_fallthru
      _
  $region6: #{vae_forward.17} parent=0 // loop_footer
    %s14 = sadd.s32 1, %s10
  $region7: #{vae_forward.17} parent=0 // loop_footer_branch
    %9 = sbr.rel target = $region3
  $region8: #{vae_forward.17} parent=0 // loop_exit
    _

</llo_original>
